<compile_context>
chip_gen: v7x
topology: tpu7x:2x2x1
jax: 0.10.0
libtpu: 0.0.40
codegen_flags: <defaults>
</compile_context>

<pallas_src>
import functools

import jax
import jax.numpy as jnp
from jax import lax
from jax.experimental import pallas as pl
from jax.experimental.pallas import tpu as pltpu

EPS = 1e-5  # torch.nn.InstanceNorm2d default


def _residual_block_kernel(x_ref, w1_ref, g1_ref, be1_ref,
                           w2_ref, g2_ref, be2_ref, o_ref, pad_ref, *, tm):
    # x_ref: (H, W, Cp) f32 input for one batch element (batch squeezed).
    # w*_ref: (9*Cp, Cp) bf16 im2col-ordered conv weights.  g*/be*: (1, Cp) f32 affine params.
    # o_ref: (H, W, Cp) f32 output (also used as the raw-conv accumulator).
    # pad_ref: (H+2, W+2, Cp) f32 VMEM scratch holding the reflect-padded conv input.
    H, W, Cp = o_ref.shape
    n_strips = H // tm
    n_inv = 1.0 / float(H * W)

    def reflect_pad(y):
        # y: (H, W, Cp) f32 value -> reflect-padded into pad_ref (no concatenates).
        pad_ref[1:H + 1, 1:W + 1, :] = y
        pad_ref[0:1, 1:W + 1, :] = y[1:2]                     # top    = row 1 mirrored
        pad_ref[H + 1:H + 2, 1:W + 1, :] = y[H - 2:H - 1]     # bottom = row H-2 mirrored
        pad_ref[:, 0:1, :] = pad_ref[:, 2:3, :]               # left   (padded rows -> corners ok)
        pad_ref[:, W + 1:W + 2, :] = pad_ref[:, W - 1:W, :]   # right

    def conv3x3(w_ref):
        # 3x3 VALID conv of pad_ref with im2col-ordered weights, M-tiled over row strips:
        # per strip build a (tm*W, 9*Cp) bf16 patch and do one deep-K MXU matmul (f32 acc).
        w = w_ref[...]

        @pl.loop(0, n_strips)
        def _(s):
            r0 = pl.multiple_of(s * tm, tm)
            strip = pad_ref[pl.ds(r0, tm + 2), :, :].astype(jnp.bfloat16)
            cols = [strip[kh:kh + tm, kw:kw + W, :] for kh in range(3) for kw in range(3)]
            patch = jnp.concatenate(cols, axis=-1).reshape(tm * W, 9 * Cp)
            y = jnp.dot(patch, w, preferred_element_type=jnp.float32)
            o_ref[pl.ds(r0, tm), :, :] = y.reshape(tm, W, Cp)

    def instance_norm(g_ref, be_ref):
        # Reads the raw conv output from o_ref. Two-pass stats (mean, then centered variance),
        # biased variance to match InstanceNorm2d; returns the normalized (H, W, Cp) f32 value.
        y = o_ref[...].reshape(H * W, Cp)
        mean = jnp.sum(y, axis=0, keepdims=True) * n_inv
        d = y - mean
        var = jnp.sum(d * d, axis=0, keepdims=True) * n_inv
        scale = g_ref[...] * lax.rsqrt(var + EPS)
        return (d * scale + be_ref[...]).reshape(H, W, Cp)

    # ConvBlock 1: reflect-pad -> conv (bias cancelled by IN) -> InstanceNorm -> ReLU
    reflect_pad(x_ref[...])
    conv3x3(w1_ref)
    y1 = jnp.maximum(instance_norm(g1_ref, be1_ref), 0.0)

    # ConvBlock 2: reflect-pad -> conv -> InstanceNorm (no ReLU), then the residual add.
    reflect_pad(y1)
    conv3x3(w2_ref)
    o_ref[...] = instance_norm(g2_ref, be2_ref) + x_ref[...]


def _pick_tm(H, W, Cp, budget_bytes=2 * 1024 * 1024):
    """Largest divisor of H whose (tm*W, 9*Cp) bf16 im2col strip fits the per-strip budget."""
    best = 1
    for tm in range(1, H + 1):
        if H % tm == 0 and tm * W * 9 * Cp * 2 <= budget_bytes:
            best = tm
    return best


def _vmem_limit_bytes():
    # Per-generation scoped-VMEM limit (leave headroom for double-buffered I/O + compiler
    # scratch): ~48 MiB on v7x (64 MiB physical), ~96-100 MiB on 128 MiB v5e/v6e parts.
    try:
        cap = int(pltpu.get_tpu_info().vmem_capacity_bytes)
    except Exception:
        cap = 128 * 1024 * 1024
    return int(min(cap * 3 // 4, 100 * 1024 * 1024))


def residual_block_pallas(x_nchw, params):
    """x_nchw: (B, C, H, W) float32. params: PyTorch-layout conv/IN parameters."""
    B, C, H, W = x_nchw.shape
    Cp = ((C + 127) // 128) * 128  # lane-dense channel axis (multiple of 128)
    # TODO(synk): for C << 128 (like this demo's C=4) the channel pad does mostly-zero math; a
    # W-on-lanes layout would avoid it, but for the intended C=128 residual blocks Cp == C.

    # NCHW -> NHWC + channel zero-pad.  For a stack of residual blocks these layout ops should be
    # paid once for the whole network (keep activations NHWC/Cp between blocks), not per block.
    x_nhwc = jnp.transpose(x_nchw, (0, 2, 3, 1)).astype(jnp.float32)
    x_nhwc = jnp.pad(x_nhwc, ((0, 0), (0, 0), (0, 0), (0, Cp - C)))

    def prep_w(w_oihw):
        # OIHW -> (kh, kw, Cin, Cout), zero-pad channels, flatten taps to the im2col order,
        # cast to bf16 (MXU inputs; halves weight DMA + VMEM, accumulation stays f32).
        w = jnp.transpose(w_oihw, (2, 3, 1, 0)).astype(jnp.float32)
        w = jnp.pad(w, ((0, 0), (0, 0), (0, Cp - C), (0, Cp - C)))
        return w.reshape(9 * Cp, Cp).astype(jnp.bfloat16)

    def prep_v(v):
        return jnp.pad(v.astype(jnp.float32), (0, Cp - C)).reshape(1, Cp)

    w1, w2 = prep_w(params["w1"]), prep_w(params["w2"])
    g1, be1 = prep_v(params["g1"]), prep_v(params["be1"])
    g2, be2 = prep_v(params["g2"]), prep_v(params["be2"])
    # NOTE: conv biases b1/b2 are intentionally not passed to the kernel — a per-channel constant
    # added before InstanceNorm is exactly cancelled by the mean subtraction.

    tm = _pick_tm(H, W, Cp)
    kernel = functools.partial(_residual_block_kernel, tm=tm)

    full_w = lambda b: (0, 0)
    row = lambda b: (0, 0)

    out_nhwc = pl.pallas_call(
        kernel,
        out_shape=jax.ShapeDtypeStruct((B, H, W, Cp), jnp.float32),
        grid_spec=pltpu.PrefetchScalarGridSpec(
            num_scalar_prefetch=0,
            grid=(B,),
            in_specs=[
                pl.BlockSpec((None, H, W, Cp), lambda b: (b, 0, 0, 0)),  # x (unpadded)
                pl.BlockSpec((9 * Cp, Cp), full_w),   # w1 (bf16, im2col layout)
                pl.BlockSpec((1, Cp), row),           # gamma1
                pl.BlockSpec((1, Cp), row),           # beta1
                pl.BlockSpec((9 * Cp, Cp), full_w),   # w2
                pl.BlockSpec((1, Cp), row),           # gamma2
                pl.BlockSpec((1, Cp), row),           # beta2
            ],
            out_specs=pl.BlockSpec((None, H, W, Cp), lambda b: (b, 0, 0, 0)),
            scratch_shapes=[pltpu.VMEM((H + 2, W + 2, Cp), jnp.float32)],
        ),
        compiler_params=pltpu.CompilerParams(
            dimension_semantics=("parallel",),
            vmem_limit_bytes=_vmem_limit_bytes(),
        ),
    )(x_nhwc, w1, g1, be1, w2, g2, be2)

    # Drop channel padding, back to NCHW.
    return jnp.transpose(out_nhwc[..., :C], (0, 3, 1, 2))


def residual_block_reference(x, params):
    """Pure-JAX NCHW reference mirroring the PyTorch module (conv biases included, f32 math)."""
    def conv_block(h, w, b, g, be, relu):
        hp = jnp.pad(h, ((0, 0), (0, 0), (1, 1), (1, 1)), mode="reflect")
        y = lax.conv_general_dilated(
            hp, w, window_strides=(1, 1), padding="VALID",
            dimension_numbers=("NCHW", "OIHW", "NCHW")) + b[None, :, None, None]
        mean = y.mean(axis=(2, 3), keepdims=True)
        var = ((y - mean) ** 2).mean(axis=(2, 3), keepdims=True)
        y = (y - mean) / jnp.sqrt(var + EPS) * g[None, :, None, None] + be[None, :, None, None]
        return jnp.maximum(y, 0.0) if relu else y

    h = conv_block(x, params["w1"], params["b1"], params["g1"], params["be1"], True)
    h = conv_block(h, params["w2"], params["b2"], params["g2"], params["be2"], False)
    return h + x


if __name__ == "__main__":
    B, C, H, W = 2, 4, 16, 16
    key = jax.random.PRNGKey(0)
    ks = jax.random.split(key, 9)

    # Deterministic synthetic parameters (PyTorch shapes: conv weight OIHW, 1-D bias/affine).
    params = {
        "w1": 0.1 * jax.random.normal(ks[0], (C, C, 3, 3), jnp.float32),
        "b1": 0.05 * jax.random.normal(ks[1], (C,), jnp.float32),
        "g1": 1.0 + 0.1 * jax.random.normal(ks[2], (C,), jnp.float32),
        "be1": 0.05 * jax.random.normal(ks[3], (C,), jnp.float32),
        "w2": 0.1 * jax.random.normal(ks[4], (C, C, 3, 3), jnp.float32),
        "b2": 0.05 * jax.random.normal(ks[5], (C,), jnp.float32),
        "g2": 1.0 + 0.1 * jax.random.normal(ks[6], (C,), jnp.float32),
        "be2": 0.05 * jax.random.normal(ks[7], (C,), jnp.float32),
    }
    x = jax.random.normal(ks[8], (B, C, H, W), jnp.float32)

    out = jax.block_until_ready(residual_block_pallas(x, params))
    ref = jax.block_until_ready(residual_block_reference(x, params))

    assert out.shape == (B, C, H, W)
    err = float(jnp.max(jnp.abs(out - ref)))
    # The MXU runs on bf16 inputs with f32 accumulation; across two InstanceNorm-normalized conv
    # layers the expected max abs deviation from the pure-f32 reference is ~1e-2, so the check
    # uses a bf16-appropriate tolerance (a real bug — wrong tap order, missing affine/pad — would
    # produce O(1) errors and still be caught).
    assert err < 4e-2, f"max abs err = {err}"

    print("KERNEL_OK")
</pallas_src>

<mosaic_0001>
module attributes {stable_mosaic.version = 11 : i64} {
  func.func @_residual_block_kernel(%arg0: i32, %arg1: memref<1x16x16x128xf32, #tpu.memory_space<vmem>>, %arg2: memref<1152x128xbf16, #tpu.memory_space<vmem>>, %arg3: memref<1x128xf32, #tpu.memory_space<vmem>>, %arg4: memref<1x128xf32, #tpu.memory_space<vmem>>, %arg5: memref<1152x128xbf16, #tpu.memory_space<vmem>>, %arg6: memref<1x128xf32, #tpu.memory_space<vmem>>, %arg7: memref<1x128xf32, #tpu.memory_space<vmem>>, %arg8: memref<1x16x16x128xf32, #tpu.memory_space<vmem>>, %arg9: memref<18x18x128xf32, #tpu.memory_space<vmem>>) attributes {dimension_semantics = [#tpu.dimension_semantics<parallel>], iteration_bounds = array<i64: 2>, scalar_prefetch = 0 : i64, scratch_operands = 1 : i64, tpu.core_type = #tpu.core_type<tc>, window_params = [{transform_indices = @transform_0, window_bounds = array<i64: 1, 16, 16, 128>}, {pipeline_mode = #tpu.pipeline_mode<synchronous>, transform_indices = @transform_1, window_bounds = array<i64: 1152, 128>}, {pipeline_mode = #tpu.pipeline_mode<synchronous>, transform_indices = @transform_2, window_bounds = array<i64: 1, 128>}, {pipeline_mode = #tpu.pipeline_mode<synchronous>, transform_indices = @transform_3, window_bounds = array<i64: 1, 128>}, {pipeline_mode = #tpu.pipeline_mode<synchronous>, transform_indices = @transform_4, window_bounds = array<i64: 1152, 128>}, {pipeline_mode = #tpu.pipeline_mode<synchronous>, transform_indices = @transform_5, window_bounds = array<i64: 1, 128>}, {pipeline_mode = #tpu.pipeline_mode<synchronous>, transform_indices = @transform_6, window_bounds = array<i64: 1, 128>}, {transform_indices = @transform_7, window_bounds = array<i64: 1, 16, 16, 128>}]} {
    %c0 = arith.constant 0 : index
    %c0_0 = arith.constant 0 : index
    %c0_1 = arith.constant 0 : index
    %c0_2 = arith.constant 0 : index
    %0 = vector.load %arg1[%c0, %c0_0, %c0_1, %c0_2] : memref<1x16x16x128xf32, #tpu.memory_space<vmem>>, vector<1x16x16x128xf32>
    %1 = vector.shape_cast %0 : vector<1x16x16x128xf32> to vector<16x16x128xf32>
    %c1 = arith.constant 1 : index
    %c1_3 = arith.constant 1 : index
    %c0_4 = arith.constant 0 : index
    %2 = vector.load %arg9[%c1, %c1_3, %c0_4] : memref<18x18x128xf32, #tpu.memory_space<vmem>>, vector<16x16x128xf32>
    tpu.vector_store %arg9[%c1, %c1_3, %c0_4], %1 {strides = array<i32>} : memref<18x18x128xf32, #tpu.memory_space<vmem>>, vector<16x16x128xf32>,
    %3 = vector.extract_strided_slice %1 {offsets = [1, 0, 0], sizes = [1, 16, 128], strides = [1, 1, 1]} : vector<16x16x128xf32> to vector<1x16x128xf32>
    %c0_5 = arith.constant 0 : index
    %c1_6 = arith.constant 1 : index
    %c0_7 = arith.constant 0 : index
    %4 = vector.load %arg9[%c0_5, %c1_6, %c0_7] : memref<18x18x128xf32, #tpu.memory_space<vmem>>, vector<1x16x128xf32>
    tpu.vector_store %arg9[%c0_5, %c1_6, %c0_7], %3 {strides = array<i32>} : memref<18x18x128xf32, #tpu.memory_space<vmem>>, vector<1x16x128xf32>,
    %5 = vector.extract_strided_slice %1 {offsets = [14, 0, 0], sizes = [1, 16, 128], strides = [1, 1, 1]} : vector<16x16x128xf32> to vector<1x16x128xf32>
    %c17 = arith.constant 17 : index
    %c1_8 = arith.constant 1 : index
    %c0_9 = arith.constant 0 : index
    %6 = vector.load %arg9[%c17, %c1_8, %c0_9] : memref<18x18x128xf32, #tpu.memory_space<vmem>>, vector<1x16x128xf32>
    tpu.vector_store %arg9[%c17, %c1_8, %c0_9], %5 {strides = array<i32>} : memref<18x18x128xf32, #tpu.memory_space<vmem>>, vector<1x16x128xf32>,
    %c0_10 = arith.constant 0 : index
    %c2 = arith.constant 2 : index
    %c0_11 = arith.constant 0 : index
    %7 = vector.load %arg9[%c0_10, %c2, %c0_11] : memref<18x18x128xf32, #tpu.memory_space<vmem>>, vector<18x1x128xf32>
    %c0_12 = arith.constant 0 : index
    %c0_13 = arith.constant 0 : index
    %c0_14 = arith.constant 0 : index
    %8 = vector.load %arg9[%c0_12, %c0_13, %c0_14] : memref<18x18x128xf32, #tpu.memory_space<vmem>>, vector<18x1x128xf32>
    tpu.vector_store %arg9[%c0_12, %c0_13, %c0_14], %7 {strides = array<i32>} : memref<18x18x128xf32, #tpu.memory_space<vmem>>, vector<18x1x128xf32>,
    %c0_15 = arith.constant 0 : index
    %c15 = arith.constant 15 : index
    %c0_16 = arith.constant 0 : index
    %9 = vector.load %arg9[%c0_15, %c15, %c0_16] : memref<18x18x128xf32, #tpu.memory_space<vmem>>, vector<18x1x128xf32>
    %c0_17 = arith.constant 0 : index
    %c17_18 = arith.constant 17 : index
    %c0_19 = arith.constant 0 : index
    %10 = vector.load %arg9[%c0_17, %c17_18, %c0_19] : memref<18x18x128xf32, #tpu.memory_space<vmem>>, vector<18x1x128xf32>
    tpu.vector_store %arg9[%c0_17, %c17_18, %c0_19], %9 {strides = array<i32>} : memref<18x18x128xf32, #tpu.memory_space<vmem>>, vector<18x1x128xf32>,
    %c0_20 = arith.constant 0 : index
    %c0_21 = arith.constant 0 : index
    %11 = vector.load %arg2[%c0_20, %c0_21] : memref<1152x128xbf16, #tpu.memory_space<vmem>>, vector<1152x128xbf16>
    %c0_i32 = arith.constant 0 : i32
    %c1_i32 = arith.constant 1 : i32
    %12 = arith.muli %c0_i32, %c1_i32 : i32
    %c0_i32_22 = arith.constant 0 : i32
    %13 = arith.addi %c0_i32_22, %12 : i32
    %c16_i32 = arith.constant 16 : i32
    %14 = arith.muli %13, %c16_i32 : i32
    %15 = tpu.assume_multiple %14, 16 : i32
    %16 = arith.index_cast %15 : i32 to index
    %c0_23 = arith.constant 0 : index
    %c0_24 = arith.constant 0 : index
    %17 = vector.load %arg9[%16, %c0_23, %c0_24] : memref<18x18x128xf32, #tpu.memory_space<vmem>>, vector<18x18x128xf32>
    %18 = arith.truncf %17 : vector<18x18x128xf32> to vector<18x18x128xbf16>
    %19 = vector.extract_strided_slice %18 {offsets = [0, 0, 0], sizes = [16, 16, 128], strides = [1, 1, 1]} : vector<18x18x128xbf16> to vector<16x16x128xbf16>
    %20 = vector.extract_strided_slice %18 {offsets = [0, 1, 0], sizes = [16, 16, 128], strides = [1, 1, 1]} : vector<18x18x128xbf16> to vector<16x16x128xbf16>
    %21 = vector.extract_strided_slice %18 {offsets = [0, 2, 0], sizes = [16, 16, 128], strides = [1, 1, 1]} : vector<18x18x128xbf16> to vector<16x16x128xbf16>
    %22 = vector.extract_strided_slice %18 {offsets = [1, 0, 0], sizes = [16, 16, 128], strides = [1, 1, 1]} : vector<18x18x128xbf16> to vector<16x16x128xbf16>
    %23 = vector.extract_strided_slice %18 {offsets = [1, 1, 0], sizes = [16, 16, 128], strides = [1, 1, 1]} : vector<18x18x128xbf16> to vector<16x16x128xbf16>
    %24 = vector.extract_strided_slice %18 {offsets = [1, 2, 0], sizes = [16, 16, 128], strides = [1, 1, 1]} : vector<18x18x128xbf16> to vector<16x16x128xbf16>
    %25 = vector.extract_strided_slice %18 {offsets = [2, 0, 0], sizes = [16, 16, 128], strides = [1, 1, 1]} : vector<18x18x128xbf16> to vector<16x16x128xbf16>
    %26 = vector.extract_strided_slice %18 {offsets = [2, 1, 0], sizes = [16, 16, 128], strides = [1, 1, 1]} : vector<18x18x128xbf16> to vector<16x16x128xbf16>
    %27 = vector.extract_strided_slice %18 {offsets = [2, 2, 0], sizes = [16, 16, 128], strides = [1, 1, 1]} : vector<18x18x128xbf16> to vector<16x16x128xbf16>
    %28 = tpu.concatenate %19, %20, %21, %22, %23, %24, %25, %26, %27 in 2 : vector<16x16x128xbf16>, vector<16x16x128xbf16>, vector<16x16x128xbf16>, vector<16x16x128xbf16>, vector<16x16x128xbf16>, vector<16x16x128xbf16>, vector<16x16x128xbf16>, vector<16x16x128xbf16>, vector<16x16x128xbf16> -> vector<16x16x1152xbf16>
    %29 = vector.shape_cast %28 : vector<16x16x1152xbf16> to vector<256x1152xbf16>
    %cst = arith.constant dense<0.000000e+00> : vector<256x128xf32>
    %30 = tpu.matmul %29, %11, %cst {dimension_numbers = #tpu.dot_dimension_numbers<[1], [0], [0], [1], [0, 0, 1, 1], [], []>} : vector<256x1152xbf16>, vector<1152x128xbf16>, vector<256x128xf32> -> vector<256x128xf32>
    %31 = vector.shape_cast %30 : vector<256x128xf32> to vector<16x16x128xf32>
    %c0_25 = arith.constant 0 : index
    %32 = arith.index_cast %15 : i32 to index
    %c0_26 = arith.constant 0 : index
    %c0_27 = arith.constant 0 : index
    %33 = vector.load %arg8[%c0_25, %32, %c0_26, %c0_27] : memref<1x16x16x128xf32, #tpu.memory_space<vmem>>, vector<1x16x16x128xf32>
    %34 = vector.shape_cast %33 : vector<1x16x16x128xf32> to vector<16x16x128xf32>
    %35 = vector.shape_cast %31 : vector<16x16x128xf32> to vector<1x16x16x128xf32>
    tpu.vector_store %arg8[%c0_25, %32, %c0_26, %c0_27], %35 {strides = array<i32>} : memref<1x16x16x128xf32, #tpu.memory_space<vmem>>, vector<1x16x16x128xf32>,
    %c1_i32_28 = arith.constant 1 : i32
    %c0_29 = arith.constant 0 : index
    %c0_30 = arith.constant 0 : index
    %c0_31 = arith.constant 0 : index
    %c0_32 = arith.constant 0 : index
    %36 = vector.load %arg8[%c0_29, %c0_30, %c0_31, %c0_32] : memref<1x16x16x128xf32, #tpu.memory_space<vmem>>, vector<1x16x16x128xf32>
    %37 = vector.shape_cast %36 : vector<1x16x16x128xf32> to vector<16x16x128xf32>
    %38 = vector.shape_cast %37 : vector<16x16x128xf32> to vector<256x128xf32>
    %cst_33 = arith.constant dense<0.000000e+00> : vector<128xf32>
    %39 = vector.multi_reduction <add>, %38, %cst_33 [0] : vector<256x128xf32> to vector<128xf32>
    %40 = vector.shape_cast %39 : vector<128xf32> to vector<1x128xf32>
    %cst_34 = arith.constant 3.906250e-03 : f32
    %41 = vector.broadcast %cst_34 : f32 to vector<1x128xf32>
    %42 = arith.mulf %40, %41 : vector<1x128xf32>
    %43 = vector.broadcast %42 : vector<1x128xf32> to vector<256x128xf32>
    %44 = arith.subf %38, %43 : vector<256x128xf32>
    %45 = arith.mulf %44, %44 : vector<256x128xf32>
    %cst_35 = arith.constant dense<0.000000e+00> : vector<128xf32>
    %46 = vector.multi_reduction <add>, %45, %cst_35 [0] : vector<256x128xf32> to vector<128xf32>
    %47 = vector.shape_cast %46 : vector<128xf32> to vector<1x128xf32>
    %cst_36 = arith.constant 3.906250e-03 : f32
    %48 = vector.broadcast %cst_36 : f32 to vector<1x128xf32>
    %49 = arith.mulf %47, %48 : vector<1x128xf32>
    %c0_37 = arith.constant 0 : index
    %c0_38 = arith.constant 0 : index
    %50 = vector.load %arg3[%c0_37, %c0_38] : memref<1x128xf32, #tpu.memory_space<vmem>>, vector<1x128xf32>
    %cst_39 = arith.constant 9.99999974E-6 : f32
    %51 = vector.broadcast %cst_39 : f32 to vector<1x128xf32>
    %52 = arith.addf %49, %51 : vector<1x128xf32>
    %53 = math.rsqrt %52 : vector<1x128xf32>
    %54 = arith.mulf %50, %53 : vector<1x128xf32>
    %55 = vector.broadcast %54 : vector<1x128xf32> to vector<256x128xf32>
    %56 = arith.mulf %44, %55 : vector<256x128xf32>
    %c0_40 = arith.constant 0 : index
    %c0_41 = arith.constant 0 : index
    %57 = vector.load %arg4[%c0_40, %c0_41] : memref<1x128xf32, #tpu.memory_space<vmem>>, vector<1x128xf32>
    %58 = vector.broadcast %57 : vector<1x128xf32> to vector<256x128xf32>
    %59 = arith.addf %56, %58 : vector<256x128xf32>
    %60 = vector.shape_cast %59 : vector<256x128xf32> to vector<16x16x128xf32>
    %cst_42 = arith.constant 0.000000e+00 : f32
    %61 = vector.broadcast %cst_42 : f32 to vector<16x16x128xf32>
    %62 = arith.maximumf %60, %61 : vector<16x16x128xf32>
    %c1_43 = arith.constant 1 : index
    %c1_44 = arith.constant 1 : index
    %c0_45 = arith.constant 0 : index
    %63 = vector.load %arg9[%c1_43, %c1_44, %c0_45] : memref<18x18x128xf32, #tpu.memory_space<vmem>>, vector<16x16x128xf32>
    tpu.vector_store %arg9[%c1_43, %c1_44, %c0_45], %62 {strides = array<i32>} : memref<18x18x128xf32, #tpu.memory_space<vmem>>, vector<16x16x128xf32>,
    %64 = vector.extract_strided_slice %62 {offsets = [1, 0, 0], sizes = [1, 16, 128], strides = [1, 1, 1]} : vector<16x16x128xf32> to vector<1x16x128xf32>
    %c0_46 = arith.constant 0 : index
    %c1_47 = arith.constant 1 : index
    %c0_48 = arith.constant 0 : index
    %65 = vector.load %arg9[%c0_46, %c1_47, %c0_48] : memref<18x18x128xf32, #tpu.memory_space<vmem>>, vector<1x16x128xf32>
    tpu.vector_store %arg9[%c0_46, %c1_47, %c0_48], %64 {strides = array<i32>} : memref<18x18x128xf32, #tpu.memory_space<vmem>>, vector<1x16x128xf32>,
    %66 = vector.extract_strided_slice %62 {offsets = [14, 0, 0], sizes = [1, 16, 128], strides = [1, 1, 1]} : vector<16x16x128xf32> to vector<1x16x128xf32>
    %c17_49 = arith.constant 17 : index
    %c1_50 = arith.constant 1 : index
    %c0_51 = arith.constant 0 : index
    %67 = vector.load %arg9[%c17_49, %c1_50, %c0_51] : memref<18x18x128xf32, #tpu.memory_space<vmem>>, vector<1x16x128xf32>
    tpu.vector_store %arg9[%c17_49, %c1_50, %c0_51], %66 {strides = array<i32>} : memref<18x18x128xf32, #tpu.memory_space<vmem>>, vector<1x16x128xf32>,
    %c0_52 = arith.constant 0 : index
    %c2_53 = arith.constant 2 : index
    %c0_54 = arith.constant 0 : index
    %68 = vector.load %arg9[%c0_52, %c2_53, %c0_54] : memref<18x18x128xf32, #tpu.memory_space<vmem>>, vector<18x1x128xf32>
    %c0_55 = arith.constant 0 : index
    %c0_56 = arith.constant 0 : index
    %c0_57 = arith.constant 0 : index
    %69 = vector.load %arg9[%c0_55, %c0_56, %c0_57] : memref<18x18x128xf32, #tpu.memory_space<vmem>>, vector<18x1x128xf32>
    tpu.vector_store %arg9[%c0_55, %c0_56, %c0_57], %68 {strides = array<i32>} : memref<18x18x128xf32, #tpu.memory_space<vmem>>, vector<18x1x128xf32>,
    %c0_58 = arith.constant 0 : index
    %c15_59 = arith.constant 15 : index
    %c0_60 = arith.constant 0 : index
    %70 = vector.load %arg9[%c0_58, %c15_59, %c0_60] : memref<18x18x128xf32, #tpu.memory_space<vmem>>, vector<18x1x128xf32>
    %c0_61 = arith.constant 0 : index
    %c17_62 = arith.constant 17 : index
    %c0_63 = arith.constant 0 : index
    %71 = vector.load %arg9[%c0_61, %c17_62, %c0_63] : memref<18x18x128xf32, #tpu.memory_space<vmem>>, vector<18x1x128xf32>
    tpu.vector_store %arg9[%c0_61, %c17_62, %c0_63], %70 {strides = array<i32>} : memref<18x18x128xf32, #tpu.memory_space<vmem>>, vector<18x1x128xf32>,
    %c0_64 = arith.constant 0 : index
    %c0_65 = arith.constant 0 : index
    %72 = vector.load %arg5[%c0_64, %c0_65] : memref<1152x128xbf16, #tpu.memory_space<vmem>>, vector<1152x128xbf16>
    %c0_i32_66 = arith.constant 0 : i32
    %c1_i32_67 = arith.constant 1 : i32
    %73 = arith.muli %c0_i32_66, %c1_i32_67 : i32
    %c0_i32_68 = arith.constant 0 : i32
    %74 = arith.addi %c0_i32_68, %73 : i32
    %c16_i32_69 = arith.constant 16 : i32
    %75 = arith.muli %74, %c16_i32_69 : i32
    %76 = tpu.assume_multiple %75, 16 : i32
    %77 = arith.index_cast %76 : i32 to index
    %c0_70 = arith.constant 0 : index
    %c0_71 = arith.constant 0 : index
    %78 = vector.load %arg9[%77, %c0_70, %c0_71] : memref<18x18x128xf32, #tpu.memory_space<vmem>>, vector<18x18x128xf32>
    %79 = arith.truncf %78 : vector<18x18x128xf32> to vector<18x18x128xbf16>
    %80 = vector.extract_strided_slice %79 {offsets = [0, 0, 0], sizes = [16, 16, 128], strides = [1, 1, 1]} : vector<18x18x128xbf16> to vector<16x16x128xbf16>
    %81 = vector.extract_strided_slice %79 {offsets = [0, 1, 0], sizes = [16, 16, 128], strides = [1, 1, 1]} : vector<18x18x128xbf16> to vector<16x16x128xbf16>
    %82 = vector.extract_strided_slice %79 {offsets = [0, 2, 0], sizes = [16, 16, 128], strides = [1, 1, 1]} : vector<18x18x128xbf16> to vector<16x16x128xbf16>
    %83 = vector.extract_strided_slice %79 {offsets = [1, 0, 0], sizes = [16, 16, 128], strides = [1, 1, 1]} : vector<18x18x128xbf16> to vector<16x16x128xbf16>
    %84 = vector.extract_strided_slice %79 {offsets = [1, 1, 0], sizes = [16, 16, 128], strides = [1, 1, 1]} : vector<18x18x128xbf16> to vector<16x16x128xbf16>
    %85 = vector.extract_strided_slice %79 {offsets = [1, 2, 0], sizes = [16, 16, 128], strides = [1, 1, 1]} : vector<18x18x128xbf16> to vector<16x16x128xbf16>
    %86 = vector.extract_strided_slice %79 {offsets = [2, 0, 0], sizes = [16, 16, 128], strides = [1, 1, 1]} : vector<18x18x128xbf16> to vector<16x16x128xbf16>
    %87 = vector.extract_strided_slice %79 {offsets = [2, 1, 0], sizes = [16, 16, 128], strides = [1, 1, 1]} : vector<18x18x128xbf16> to vector<16x16x128xbf16>
    %88 = vector.extract_strided_slice %79 {offsets = [2, 2, 0], sizes = [16, 16, 128], strides = [1, 1, 1]} : vector<18x18x128xbf16> to vector<16x16x128xbf16>
    %89 = tpu.concatenate %80, %81, %82, %83, %84, %85, %86, %87, %88 in 2 : vector<16x16x128xbf16>, vector<16x16x128xbf16>, vector<16x16x128xbf16>, vector<16x16x128xbf16>, vector<16x16x128xbf16>, vector<16x16x128xbf16>, vector<16x16x128xbf16>, vector<16x16x128xbf16>, vector<16x16x128xbf16> -> vector<16x16x1152xbf16>
    %90 = vector.shape_cast %89 : vector<16x16x1152xbf16> to vector<256x1152xbf16>
    %cst_72 = arith.constant dense<0.000000e+00> : vector<256x128xf32>
    %91 = tpu.matmul %90, %72, %cst_72 {dimension_numbers = #tpu.dot_dimension_numbers<[1], [0], [0], [1], [0, 0, 1, 1], [], []>} : vector<256x1152xbf16>, vector<1152x128xbf16>, vector<256x128xf32> -> vector<256x128xf32>
    %92 = vector.shape_cast %91 : vector<256x128xf32> to vector<16x16x128xf32>
    %c0_73 = arith.constant 0 : index
    %93 = arith.index_cast %76 : i32 to index
    %c0_74 = arith.constant 0 : index
    %c0_75 = arith.constant 0 : index
    %94 = vector.load %arg8[%c0_73, %93, %c0_74, %c0_75] : memref<1x16x16x128xf32, #tpu.memory_space<vmem>>, vector<1x16x16x128xf32>
    %95 = vector.shape_cast %94 : vector<1x16x16x128xf32> to vector<16x16x128xf32>
    %96 = vector.shape_cast %92 : vector<16x16x128xf32> to vector<1x16x16x128xf32>
    tpu.vector_store %arg8[%c0_73, %93, %c0_74, %c0_75], %96 {strides = array<i32>} : memref<1x16x16x128xf32, #tpu.memory_space<vmem>>, vector<1x16x16x128xf32>,
    %c1_i32_76 = arith.constant 1 : i32
    %c0_77 = arith.constant 0 : index
    %c0_78 = arith.constant 0 : index
    %c0_79 = arith.constant 0 : index
    %c0_80 = arith.constant 0 : index
    %97 = vector.load %arg8[%c0_77, %c0_78, %c0_79, %c0_80] : memref<1x16x16x128xf32, #tpu.memory_space<vmem>>, vector<1x16x16x128xf32>
    %98 = vector.shape_cast %97 : vector<1x16x16x128xf32> to vector<16x16x128xf32>
    %99 = vector.shape_cast %98 : vector<16x16x128xf32> to vector<256x128xf32>
    %cst_81 = arith.constant dense<0.000000e+00> : vector<128xf32>
    %100 = vector.multi_reduction <add>, %99, %cst_81 [0] : vector<256x128xf32> to vector<128xf32>
    %101 = vector.shape_cast %100 : vector<128xf32> to vector<1x128xf32>
    %cst_82 = arith.constant 3.906250e-03 : f32
    %102 = vector.broadcast %cst_82 : f32 to vector<1x128xf32>
    %103 = arith.mulf %101, %102 : vector<1x128xf32>
    %104 = vector.broadcast %103 : vector<1x128xf32> to vector<256x128xf32>
    %105 = arith.subf %99, %104 : vector<256x128xf32>
    %106 = arith.mulf %105, %105 : vector<256x128xf32>
    %cst_83 = arith.constant dense<0.000000e+00> : vector<128xf32>
    %107 = vector.multi_reduction <add>, %106, %cst_83 [0] : vector<256x128xf32> to vector<128xf32>
    %108 = vector.shape_cast %107 : vector<128xf32> to vector<1x128xf32>
    %cst_84 = arith.constant 3.906250e-03 : f32
    %109 = vector.broadcast %cst_84 : f32 to vector<1x128xf32>
    %110 = arith.mulf %108, %109 : vector<1x128xf32>
    %c0_85 = arith.constant 0 : index
    %c0_86 = arith.constant 0 : index
    %111 = vector.load %arg6[%c0_85, %c0_86] : memref<1x128xf32, #tpu.memory_space<vmem>>, vector<1x128xf32>
    %cst_87 = arith.constant 9.99999974E-6 : f32
    %112 = vector.broadcast %cst_87 : f32 to vector<1x128xf32>
    %113 = arith.addf %110, %112 : vector<1x128xf32>
    %114 = math.rsqrt %113 : vector<1x128xf32>
    %115 = arith.mulf %111, %114 : vector<1x128xf32>
    %116 = vector.broadcast %115 : vector<1x128xf32> to vector<256x128xf32>
    %117 = arith.mulf %105, %116 : vector<256x128xf32>
    %c0_88 = arith.constant 0 : index
    %c0_89 = arith.constant 0 : index
    %118 = vector.load %arg7[%c0_88, %c0_89] : memref<1x128xf32, #tpu.memory_space<vmem>>, vector<1x128xf32>
    %119 = vector.broadcast %118 : vector<1x128xf32> to vector<256x128xf32>
    %120 = arith.addf %117, %119 : vector<256x128xf32>
    %121 = vector.shape_cast %120 : vector<256x128xf32> to vector<16x16x128xf32>
    %c0_90 = arith.constant 0 : index
    %c0_91 = arith.constant 0 : index
    %c0_92 = arith.constant 0 : index
    %c0_93 = arith.constant 0 : index
    %122 = vector.load %arg1[%c0_90, %c0_91, %c0_92, %c0_93] : memref<1x16x16x128xf32, #tpu.memory_space<vmem>>, vector<1x16x16x128xf32>
    %123 = vector.shape_cast %122 : vector<1x16x16x128xf32> to vector<16x16x128xf32>
    %124 = arith.addf %121, %123 : vector<16x16x128xf32>
    %c0_94 = arith.constant 0 : index
    %c0_95 = arith.constant 0 : index
    %c0_96 = arith.constant 0 : index
    %c0_97 = arith.constant 0 : index
    %125 = vector.load %arg8[%c0_94, %c0_95, %c0_96, %c0_97] : memref<1x16x16x128xf32, #tpu.memory_space<vmem>>, vector<1x16x16x128xf32>
    %126 = vector.shape_cast %125 : vector<1x16x16x128xf32> to vector<16x16x128xf32>
    %127 = vector.shape_cast %124 : vector<16x16x128xf32> to vector<1x16x16x128xf32>
    tpu.vector_store %arg8[%c0_94, %c0_95, %c0_96, %c0_97], %127 {strides = array<i32>} : memref<1x16x16x128xf32, #tpu.memory_space<vmem>>, vector<1x16x16x128xf32>,
    return
  }
  func.func @transform_0(%arg0: i32) -> (i32, i32, i32, i32) {
    %c0_i32 = arith.constant 0 : i32
    %c0_i32_0 = arith.constant 0 : i32
    %c0_i32_1 = arith.constant 0 : i32
    %c0_i32_2 = arith.constant 0 : i32
    return %arg0, %c0_i32, %c0_i32_0, %c0_i32_1 : i32, i32, i32, i32
  }
  func.func @transform_1(%arg0: i32) -> (i32, i32) {
    %c0_i32 = arith.constant 0 : i32
    %c0_i32_0 = arith.constant 0 : i32
    %c0_i32_1 = arith.constant 0 : i32
    return %c0_i32, %c0_i32_0 : i32, i32
  }
  func.func @transform_2(%arg0: i32) -> (i32, i32) {
    %c0_i32 = arith.constant 0 : i32
    %c0_i32_0 = arith.constant 0 : i32
    %c0_i32_1 = arith.constant 0 : i32
    return %c0_i32, %c0_i32_0 : i32, i32
  }
  func.func @transform_3(%arg0: i32) -> (i32, i32) {
    %c0_i32 = arith.constant 0 : i32
    %c0_i32_0 = arith.constant 0 : i32
    %c0_i32_1 = arith.constant 0 : i32
    return %c0_i32, %c0_i32_0 : i32, i32
  }
  func.func @transform_4(%arg0: i32) -> (i32, i32) {
    %c0_i32 = arith.constant 0 : i32
    %c0_i32_0 = arith.constant 0 : i32
    %c0_i32_1 = arith.constant 0 : i32
    return %c0_i32, %c0_i32_0 : i32, i32
  }
  func.func @transform_5(%arg0: i32) -> (i32, i32) {
    %c0_i32 = arith.constant 0 : i32
    %c0_i32_0 = arith.constant 0 : i32
    %c0_i32_1 = arith.constant 0 : i32
    return %c0_i32, %c0_i32_0 : i32, i32
  }
  func.func @transform_6(%arg0: i32) -> (i32, i32) {
    %c0_i32 = arith.constant 0 : i32
    %c0_i32_0 = arith.constant 0 : i32
    %c0_i32_1 = arith.constant 0 : i32
    return %c0_i32, %c0_i32_0 : i32, i32
  }
  func.func @transform_7(%arg0: i32) -> (i32, i32, i32, i32) {
    %c0_i32 = arith.constant 0 : i32
    %c0_i32_0 = arith.constant 0 : i32
    %c0_i32_1 = arith.constant 0 : i32
    %c0_i32_2 = arith.constant 0 : i32
    return %arg0, %c0_i32, %c0_i32_0, %c0_i32_1 : i32, i32, i32, i32
  }
}

</mosaic_0001>

<llo_original>
// kernel: tpu_custom_call.1
$region0: #{tpu_custom_call.1}
  #allocation0 [shape = 'u32[]', space=smem, size = 0x4, offset = 0x4, fixed_abs, tag = 'smem constant byte address 0x4 - core index']
  #allocation1 [shape = 'u32[144,128]{1,0:T(1,128)}', space=vmem, size = 0x12000, scoped, tag = 'internal scratch']
  #allocation2 [shape = 'f32[18,18,128]{2,1,0:T(8,128)}', space=vmem, size = 0x36000, scoped, tag = 'scratch operand']
  %s0 = inlined_call_operand.hbm [shape: f32[2,16,16,128], index: 0, kind: input, shape index: {}]
  %s1 = inlined_call_operand.hbm [shape: bf16[1152,128], index: 1, kind: input, shape index: {}]
  %s2 = inlined_call_operand.hbm [shape: f32[1,128], index: 2, kind: input, shape index: {}]
  %s3 = inlined_call_operand.hbm [shape: f32[1,128], index: 3, kind: input, shape index: {}]
  %s4 = inlined_call_operand.hbm [shape: bf16[1152,128], index: 4, kind: input, shape index: {}]
  %s5 = inlined_call_operand.hbm [shape: f32[1,128], index: 5, kind: input, shape index: {}]
  %s6 = inlined_call_operand.hbm [shape: f32[1,128], index: 6, kind: input, shape index: {}]
  %s7 = inlined_call_operand.hbm [shape: f32[2,16,16,128], index: 7, kind: output, shape index: {}]
  %s8 = sld [smem:[#allocation0]]
  $region89: #{tpu_custom_call.1} parent=0
    _
  %s10 = ssub.s32 1, %s8
  %s11 = scalar_select 0, %s10, %s8
  $region1: #{tpu_custom_call.1} parent=0
    #allocation3 [shape = 'u8[262144]{0}', space=vmem, size = 0x40000, scoped, tag = 'input window, operand 0']
    #allocation4 [shape = 's32[2]{0}', space=sflag, size = 0x8, scoped, tag = 'scoped memory for tpu_custom_call.1']
    #allocation5 [shape = 's32[2]{0}', space=sflag, size = 0x8, scoped, tag = 'scoped memory for tpu_custom_call.1']
    #allocation6 [shape = 'u8[294912]{0}', space=vmem, size = 0x48000, scoped, tag = 'input window, operand 1, single buffered']
    #allocation7 [shape = 's32[1]{0}', space=sflag, size = 0x4, scoped, tag = 'scoped memory for tpu_custom_call.1']
    #allocation8 [shape = 'u8[512]{0}', space=vmem, size = 0x400, scoped, tag = 'input window, operand 2, single buffered']
    #allocation9 [shape = 'u8[512]{0}', space=vmem, size = 0x400, scoped, tag = 'input window, operand 3, single buffered']
    #allocation10 [shape = 's32[1]{0}', space=sflag, size = 0x4, scoped, tag = 'scoped memory for tpu_custom_call.1']
    #allocation11 [shape = 'u8[294912]{0}', space=vmem, size = 0x48000, scoped, tag = 'input window, operand 4, single buffered']
    #allocation12 [shape = 'u8[512]{0}', space=vmem, size = 0x400, scoped, tag = 'input window, operand 5, single buffered']
    #allocation13 [shape = 's32[1]{0}', space=sflag, size = 0x4, scoped, tag = 'scoped memory for tpu_custom_call.1']
    #allocation14 [shape = 'u8[512]{0}', space=vmem, size = 0x400, scoped, tag = 'input window, operand 6, single buffered']
    #allocation15 [shape = 'u8[262144]{0}', space=vmem, size = 0x40000, scoped, tag = 'output window, operand 0']
    %12 = vsyncpa [#allocation4], 0
    %s13 = scalar_lea.sflag [#allocation4], 1
    %14 = vsyncpa %s13, 0
    %15 = vsyncpa [#allocation7], 0
    %16 = vsyncpa [#allocation10], 0
    %17 = vsyncpa [#allocation13], 0
    %18 = vsyncpa [#allocation5], 0
    %s19 = scalar_lea.sflag [#allocation5], 1
    %20 = vsyncpa %s19, 0
    loop: start=0, step=1, limit=4
    $region2: #{tpu_custom_call.1} parent=1 // loop_pre_header
      _
    $region3: #{tpu_custom_call.1} parent=1 // loop_header
      %s22 = sphi 0, %s26
      %p23 = scmp.ge.s32.totalorder %s22, 4
      %s32 = sphi 0, %s34
      %s35 = sphi 0, %s32
      %s36 = sphi 0, %s35
      %s52 = sphi 0, %s36
      %s56 = sphi 0, %s56
      %s58 = sphi 0, %s56
      %s59 = sphi 0, %s58
      %s73 = sphi 0, %s59
      %s77 = sphi 0, %s77
      %s79 = sphi 0, %s77
      %s80 = sphi 0, %s79
      %s94 = sphi 0, %s80
      %s98 = sphi 0, %s98
      %s100 = sphi 0, %s98
      %s101 = sphi 0, %s100
      %s115 = sphi 0, %s101
      %s119 = sphi 0, %s119
      %s121 = sphi 0, %s119
      %s122 = sphi 0, %s121
      %s136 = sphi 0, %s122
      %s140 = sphi 0, %s140
      %s142 = sphi 0, %s140
      %s143 = sphi 0, %s142
      %s157 = sphi 0, %s143
      %s161 = sphi 0, %s161
      %s163 = sphi 0, %s161
      %s164 = sphi 0, %s163
      %s178 = sphi 0, %s164
      %s184 = sphi 0, %s186
      %s187 = sphi 0, %s184
      %s188 = sphi 0, %s187
      %s204 = sphi 0, %s188
    $region4: #{tpu_custom_call.1} parent=1 // loop_header_branch
      %25 = sbr.rel (%p23) target = $region8
    $region5: #{tpu_custom_call.1} parent=1 // loop_body
      %s27 = ssub.s32 %s22, 1
      %s28 = ssub.s32 %s22, 2
      %s29 = sadd.s32 %s22, 1
      %s30 = ssub.s32 %s22, %s29
      %p31 = scmp.eq.s32.totalorder %s30, 0
      %s33 = sadd.s32 %s32, 1
      %s34 = scalar_select %p31, %s32, %s33
      %p37 = pneg %p31
      %p38 = scmp.eq.s32.totalorder %s22, 1
      %p39 = por %p37, %p38
      %p40 = scmp.ne.s32.totalorder %s32, %s35
      %p41 = scmp.eq.s32.totalorder %s22, 0
      %p42 = por %p40, %p41
      %p43 = scmp.ne.s32.totalorder %s32, %s35
      %p44 = scmp.eq.s32.totalorder %s27, 1
      %p45 = por %p43, %p44
      %p46 = scmp.ne.s32.totalorder %s35, %s36
      %p47 = scmp.eq.s32.totalorder %s27, 0
      %p48 = por %p46, %p47
      %p49 = scmp.ne.s32.totalorder %s35, %s36
      %p50 = scmp.eq.s32.totalorder %s28, 1
      %p51 = por %p49, %p50
      %p53 = scmp.ne.s32.totalorder %s36, %s52
      %p54 = scmp.eq.s32.totalorder %s28, 0
      %p55 = por %p53, %p54
      %s57 = sadd.s32 %s56, 1
      %p60 = scmp.eq.s32.totalorder %s22, 1
      %p61 = scmp.ne.s32.totalorder %s56, %s58
      %p62 = scmp.eq.s32.totalorder %s22, 0
      %p63 = por %p61, %p62
      %p64 = scmp.ne.s32.totalorder %s56, %s58
      %p65 = scmp.eq.s32.totalorder %s27, 1
      %p66 = por %p64, %p65
      %p67 = scmp.ne.s32.totalorder %s58, %s59
      %p68 = scmp.eq.s32.totalorder %s27, 0
      %p69 = por %p67, %p68
      %p70 = scmp.ne.s32.totalorder %s58, %s59
      %p71 = scmp.eq.s32.totalorder %s28, 1
      %p72 = por %p70, %p71
      %p74 = scmp.ne.s32.totalorder %s59, %s73
      %p75 = scmp.eq.s32.totalorder %s28, 0
      %p76 = por %p74, %p75
      %s78 = sadd.s32 %s77, 1
      %p81 = scmp.eq.s32.totalorder %s22, 1
      %p82 = scmp.ne.s32.totalorder %s77, %s79
      %p83 = scmp.eq.s32.totalorder %s22, 0
      %p84 = por %p82, %p83
      %p85 = scmp.ne.s32.totalorder %s77, %s79
      %p86 = scmp.eq.s32.totalorder %s27, 1
      %p87 = por %p85, %p86
      %p88 = scmp.ne.s32.totalorder %s79, %s80
      %p89 = scmp.eq.s32.totalorder %s27, 0
      %p90 = por %p88, %p89
      %p91 = scmp.ne.s32.totalorder %s79, %s80
      %p92 = scmp.eq.s32.totalorder %s28, 1
      %p93 = por %p91, %p92
      %p95 = scmp.ne.s32.totalorder %s80, %s94
      %p96 = scmp.eq.s32.totalorder %s28, 0
      %p97 = por %p95, %p96
      %s99 = sadd.s32 %s98, 1
      %p102 = scmp.eq.s32.totalorder %s22, 1
      %p103 = scmp.ne.s32.totalorder %s98, %s100
      %p104 = scmp.eq.s32.totalorder %s22, 0
      %p105 = por %p103, %p104
      %p106 = scmp.ne.s32.totalorder %s98, %s100
      %p107 = scmp.eq.s32.totalorder %s27, 1
      %p108 = por %p106, %p107
      %p109 = scmp.ne.s32.totalorder %s100, %s101
      %p110 = scmp.eq.s32.totalorder %s27, 0
      %p111 = por %p109, %p110
      %p112 = scmp.ne.s32.totalorder %s100, %s101
      %p113 = scmp.eq.s32.totalorder %s28, 1
      %p114 = por %p112, %p113
      %p116 = scmp.ne.s32.totalorder %s101, %s115
      %p117 = scmp.eq.s32.totalorder %s28, 0
      %p118 = por %p116, %p117
      %s120 = sadd.s32 %s119, 1
      %p123 = scmp.eq.s32.totalorder %s22, 1
      %p124 = scmp.ne.s32.totalorder %s119, %s121
      %p125 = scmp.eq.s32.totalorder %s22, 0
      %p126 = por %p124, %p125
      %p127 = scmp.ne.s32.totalorder %s119, %s121
      %p128 = scmp.eq.s32.totalorder %s27, 1
      %p129 = por %p127, %p128
      %p130 = scmp.ne.s32.totalorder %s121, %s122
      %p131 = scmp.eq.s32.totalorder %s27, 0
      %p132 = por %p130, %p131
      %p133 = scmp.ne.s32.totalorder %s121, %s122
      %p134 = scmp.eq.s32.totalorder %s28, 1
      %p135 = por %p133, %p134
      %p137 = scmp.ne.s32.totalorder %s122, %s136
      %p138 = scmp.eq.s32.totalorder %s28, 0
      %p139 = por %p137, %p138
      %s141 = sadd.s32 %s140, 1
      %p144 = scmp.eq.s32.totalorder %s22, 1
      %p145 = scmp.ne.s32.totalorder %s140, %s142
      %p146 = scmp.eq.s32.totalorder %s22, 0
      %p147 = por %p145, %p146
      %p148 = scmp.ne.s32.totalorder %s140, %s142
      %p149 = scmp.eq.s32.totalorder %s27, 1
      %p150 = por %p148, %p149
      %p151 = scmp.ne.s32.totalorder %s142, %s143
      %p152 = scmp.eq.s32.totalorder %s27, 0
      %p153 = por %p151, %p152
      %p154 = scmp.ne.s32.totalorder %s142, %s143
      %p155 = scmp.eq.s32.totalorder %s28, 1
      %p156 = por %p154, %p155
      %p158 = scmp.ne.s32.totalorder %s143, %s157
      %p159 = scmp.eq.s32.totalorder %s28, 0
      %p160 = por %p158, %p159
      %s162 = sadd.s32 %s161, 1
      %p165 = scmp.eq.s32.totalorder %s22, 1
      %p166 = scmp.ne.s32.totalorder %s161, %s163
      %p167 = scmp.eq.s32.totalorder %s22, 0
      %p168 = por %p166, %p167
      %p169 = scmp.ne.s32.totalorder %s161, %s163
      %p170 = scmp.eq.s32.totalorder %s27, 1
      %p171 = por %p169, %p170
      %p172 = scmp.ne.s32.totalorder %s163, %s164
      %p173 = scmp.eq.s32.totalorder %s27, 0
      %p174 = por %p172, %p173
      %p175 = scmp.ne.s32.totalorder %s163, %s164
      %p176 = scmp.eq.s32.totalorder %s28, 1
      %p177 = por %p175, %p176
      %p179 = scmp.ne.s32.totalorder %s164, %s178
      %p180 = scmp.eq.s32.totalorder %s28, 0
      %p181 = por %p179, %p180
      %s182 = ssub.s32 %s22, %s29
      %p183 = scmp.eq.s32.totalorder %s182, 0
      %s185 = sadd.s32 %s184, 1
      %s186 = scalar_select %p183, %s184, %s185
      %p189 = pneg %p183
      %p190 = scmp.eq.s32.totalorder %s22, 1
      %p191 = por %p189, %p190
      %p192 = scmp.ne.s32.totalorder %s184, %s187
      %p193 = scmp.eq.s32.totalorder %s22, 0
      %p194 = por %p192, %p193
      %p195 = scmp.ne.s32.totalorder %s184, %s187
      %p196 = scmp.eq.s32.totalorder %s27, 1
      %p197 = por %p195, %p196
      %p198 = scmp.ne.s32.totalorder %s187, %s188
      %p199 = scmp.eq.s32.totalorder %s27, 0
      %p200 = por %p198, %p199
      %p201 = scmp.ne.s32.totalorder %s187, %s188
      %p202 = scmp.eq.s32.totalorder %s28, 1
      %p203 = por %p201, %p202
      %p205 = scmp.ne.s32.totalorder %s188, %s204
      %p206 = scmp.eq.s32.totalorder %s28, 0
      %p207 = por %p205, %p206
      %p208 = scmp.le.s32.totalorder 1, %s22
      %p209 = scmp.lt.s32.totalorder %s22, 3
      %p210 = pnand %p208, %p209
      %p211 = pneg %p210
      // Predicated region
      $region9: #{tpu_custom_call.1} parent=5 // pred_check
        _
      $region10: #{tpu_custom_call.1} parent=5 // pred_check_branch
        %213 = sbr.rel (%p210) target = $region12
      $region11: #{tpu_custom_call.1} parent=5 // pred_region
        %s214 = ssub.s32 %s22, 1
        // Predicated region
        $region13: #{tpu_custom_call.1} parent=11 // pred_check
          %p215 = pneg %p69
        $region14: #{tpu_custom_call.1} parent=11 // pred_check_branch
          %217 = sbr.rel (%p215) target = $region16
        $region15: #{tpu_custom_call.1} parent=11 // pred_region
          %s219 = ssub.s32 9216, 9216
          %220 = vsyncadd [#allocation7], %s219
          %s221 = sshll.u32 [#allocation6], 4
          %s222 = int_to_ptr.vmem [resolvable:$true] %s221
          %227 = dma.hbm_to_vmem [thread:$0]  %s1, 9216, %s222, [#allocation7], 64, 64, 4
        $region16: #{tpu_custom_call.1} parent=11 // pred_fallthru
          _
        // Predicated region
        $region17: #{tpu_custom_call.1} parent=11 // pred_check
          %p228 = pneg %p90
        $region18: #{tpu_custom_call.1} parent=11 // pred_check_branch
          %230 = sbr.rel (%p228) target = $region20
        $region19: #{tpu_custom_call.1} parent=11 // pred_region
          %s232 = ssub.s32 16, 16
          %233 = vsyncadd [#allocation7], %s232
          %s235 = sshll.u32 [#allocation8], 4
          %s236 = int_to_ptr.vmem [resolvable:$true] %s235
          %238 = dma.hbm_to_vmem [thread:$0]  %s2, 16, %s236, [#allocation7]
        $region20: #{tpu_custom_call.1} parent=11 // pred_fallthru
          _
        // Predicated region
        $region21: #{tpu_custom_call.1} parent=11 // pred_check
          %p239 = pneg %p111
        $region22: #{tpu_custom_call.1} parent=11 // pred_check_branch
          %241 = sbr.rel (%p239) target = $region24
        $region23: #{tpu_custom_call.1} parent=11 // pred_region
          %s243 = ssub.s32 16, 16
          %244 = vsyncadd [#allocation10], %s243
          %s246 = sshll.u32 [#allocation9], 4
          %s247 = int_to_ptr.vmem [resolvable:$true] %s246
          %249 = dma.hbm_to_vmem [thread:$0]  %s3, 16, %s247, [#allocation10]
        $region24: #{tpu_custom_call.1} parent=11 // pred_fallthru
          _
        // Predicated region
        $region25: #{tpu_custom_call.1} parent=11 // pred_check
          %p250 = pneg %p132
        $region26: #{tpu_custom_call.1} parent=11 // pred_check_branch
          %252 = sbr.rel (%p250) target = $region28
        $region27: #{tpu_custom_call.1} parent=11 // pred_region
          %s254 = ssub.s32 9216, 9216
          %255 = vsyncadd [#allocation10], %s254
          %s256 = sshll.u32 [#allocation11], 4
          %s257 = int_to_ptr.vmem [resolvable:$true] %s256
          %262 = dma.hbm_to_vmem [thread:$0]  %s4, 9216, %s257, [#allocation10], 64, 64, 4
        $region28: #{tpu_custom_call.1} parent=11 // pred_fallthru
          _
        // Predicated region
        $region29: #{tpu_custom_call.1} parent=11 // pred_check
          %p263 = pneg %p153
        $region30: #{tpu_custom_call.1} parent=11 // pred_check_branch
          %265 = sbr.rel (%p263) target = $region32
        $region31: #{tpu_custom_call.1} parent=11 // pred_region
          %s267 = ssub.s32 16, 16
          %268 = vsyncadd [#allocation13], %s267
          %s270 = sshll.u32 [#allocation12], 4
          %s271 = int_to_ptr.vmem [resolvable:$true] %s270
          %273 = dma.hbm_to_vmem [thread:$0]  %s5, 16, %s271, [#allocation13]
        $region32: #{tpu_custom_call.1} parent=11 // pred_fallthru
          _
        // Predicated region
        $region33: #{tpu_custom_call.1} parent=11 // pred_check
          %p274 = pneg %p174
        $region34: #{tpu_custom_call.1} parent=11 // pred_check_branch
          %276 = sbr.rel (%p274) target = $region36
        $region35: #{tpu_custom_call.1} parent=11 // pred_region
          %s278 = ssub.s32 16, 16
          %279 = vsyncadd [#allocation13], %s278
          %s281 = sshll.u32 [#allocation14], 4
          %s282 = int_to_ptr.vmem [resolvable:$true] %s281
          %284 = dma.hbm_to_vmem [thread:$0]  %s6, 16, %s282, [#allocation13]
        $region36: #{tpu_custom_call.1} parent=11 // pred_fallthru
          _
      $region12: #{tpu_custom_call.1} parent=5 // pred_fallthru
        _
      %p285 = scmp.lt.s32.totalorder %s22, 2
      // Predicated region
      $region37: #{tpu_custom_call.1} parent=5 // pred_check
        %p286 = pneg %p285
      $region38: #{tpu_custom_call.1} parent=5 // pred_check_branch
        %288 = sbr.rel (%p286) target = $region40
      $region39: #{tpu_custom_call.1} parent=5 // pred_region
        // Predicated region
        $region41: #{tpu_custom_call.1} parent=39 // pred_check
          %p289 = pneg %p42
        $region42: #{tpu_custom_call.1} parent=39 // pred_check_branch
          %291 = sbr.rel (%p289) target = $region44
        $region43: #{tpu_custom_call.1} parent=39 // pred_region
          %s292 = sand.u32 %s32, 1
          %s293 = scalar_lea.sflag [#allocation4], %s292
          %s294 = sand.u32 %s32, 1
          %s295 = smul.addr %s294, 256
          %s296 = scalar_lea.vmem [#allocation3], %s295
          %s298 = ssub.s32 4096, 4096
          %299 = vsyncadd %s293, %s298
          %s300 = smul.addr %s22, 32
          %s301 = smul.addr %s300, 128
          %s302 = scalar_lea.hbm %s0, %s301
          %s303 = sshll.u32 %s296, 4
          %s304 = int_to_ptr.vmem [resolvable:$true] %s303
          %309 = dma.hbm_to_vmem [thread:$0]  %s302, 4096, %s304, %s293, 128, 128, 8
        $region44: #{tpu_custom_call.1} parent=39 // pred_fallthru
          _
      $region40: #{tpu_custom_call.1} parent=5 // pred_fallthru
        _
      %p310 = scmp.le.s32.totalorder 1, %s22
      %p311 = scmp.lt.s32.totalorder %s22, 3
      %p312 = pnand %p310, %p311
      %p313 = pneg %p312
      // Predicated region
      $region45: #{tpu_custom_call.1} parent=5 // pred_check
        _
      $region46: #{tpu_custom_call.1} parent=5 // pred_check_branch
        %315 = sbr.rel (%p312) target = $region48
      $region47: #{tpu_custom_call.1} parent=5 // pred_region
        %s316 = ssub.s32 %s22, 1
        %s317 = sand.u32 %s35, 1
        %s318 = scalar_lea.sflag [#allocation4], %s317
        %s319 = sand.u32 %s35, 1
        %s320 = smul.addr %s319, 256
        %s321 = scalar_lea.vmem [#allocation3], %s320
        // Predicated region
        $region49: #{tpu_custom_call.1} parent=47 // pred_check
          %p322 = pneg %p48
        $region50: #{tpu_custom_call.1} parent=47 // pred_check_branch
          %324 = sbr.rel (%p322) target = $region52
        $region51: #{tpu_custom_call.1} parent=47 // pred_region
          %325 = dma.done %s318, 4096
        $region52: #{tpu_custom_call.1} parent=47 // pred_fallthru
          _
        // Predicated region
        $region53: #{tpu_custom_call.1} parent=47 // pred_check
          %p326 = pneg %p69
        $region54: #{tpu_custom_call.1} parent=47 // pred_check_branch
          %328 = sbr.rel (%p326) target = $region56
        $region55: #{tpu_custom_call.1} parent=47 // pred_region
          %329 = dma.done [#allocation7], 9216
        $region56: #{tpu_custom_call.1} parent=47 // pred_fallthru
          _
        // Predicated region
        $region57: #{tpu_custom_call.1} parent=47 // pred_check
          %p330 = pneg %p90
        $region58: #{tpu_custom_call.1} parent=47 // pred_check_branch
          %332 = sbr.rel (%p330) target = $region60
        $region59: #{tpu_custom_call.1} parent=47 // pred_region
          %333 = dma.done [#allocation7], 16
        $region60: #{tpu_custom_call.1} parent=47 // pred_fallthru
          _
        // Predicated region
        $region61: #{tpu_custom_call.1} parent=47 // pred_check
          %p334 = pneg %p111
        $region62: #{tpu_custom_call.1} parent=47 // pred_check_branch
          %336 = sbr.rel (%p334) target = $region64
        $region63: #{tpu_custom_call.1} parent=47 // pred_region
          %337 = dma.done [#allocation10], 16
        $region64: #{tpu_custom_call.1} parent=47 // pred_fallthru
          _
        // Predicated region
        $region65: #{tpu_custom_call.1} parent=47 // pred_check
          %p338 = pneg %p132
        $region66: #{tpu_custom_call.1} parent=47 // pred_check_branch
          %340 = sbr.rel (%p338) target = $region68
        $region67: #{tpu_custom_call.1} parent=47 // pred_region
          %341 = dma.done [#allocation10], 9216
        $region68: #{tpu_custom_call.1} parent=47 // pred_fallthru
          _
        // Predicated region
        $region69: #{tpu_custom_call.1} parent=47 // pred_check
          %p342 = pneg %p153
        $region70: #{tpu_custom_call.1} parent=47 // pred_check_branch
          %344 = sbr.rel (%p342) target = $region72
        $region71: #{tpu_custom_call.1} parent=47 // pred_region
          %345 = dma.done [#allocation13], 16
        $region72: #{tpu_custom_call.1} parent=47 // pred_fallthru
          _
        // Predicated region
        $region73: #{tpu_custom_call.1} parent=47 // pred_check
          %p346 = pneg %p174
        $region74: #{tpu_custom_call.1} parent=47 // pred_check_branch
          %348 = sbr.rel (%p346) target = $region76
        $region75: #{tpu_custom_call.1} parent=47 // pred_region
          %349 = dma.done [#allocation13], 16
        $region76: #{tpu_custom_call.1} parent=47 // pred_fallthru
          _
        %s350 = sand.u32 %s35, 1
        %s351 = scalar_lea.sflag [#allocation4], %s350
        %s352 = sand.u32 %s35, 1
        %s353 = smul.addr %s352, 256
        %s354 = scalar_lea.vmem [#allocation3], %s353
        %p355 = pneg %p48
        %p356 = pneg %p45
        %p357 = pneg %p69
        %p358 = pneg %p66
        %p359 = pneg %p90
        %p360 = pneg %p87
        %p361 = pneg %p111
        %p362 = pneg %p108
        %p363 = pneg %p132
        %p364 = pneg %p129
        %p365 = pneg %p153
        %p366 = pneg %p150
        %p367 = pneg %p174
        %p368 = pneg %p171
        %p369 = pneg %p200
        %p370 = pneg %p197
        %s371 = sand.u32 %s187, 1
        %s372 = scalar_lea.sflag [#allocation5], %s371
        %s373 = sand.u32 %s187, 1
        %s374 = smul.addr %s373, 256
        %s375 = scalar_lea.vmem [#allocation15], %s374
        %v377 = vld [vmem:[%s321] sm:$0xff]
        %v378 = vld [vmem:[%s321 + $0x8] sm:$0xff]
        %v379 = vld [vmem:[%s321 + $0x10] sm:$0xff]
        %v380 = vld [vmem:[%s321 + $0x18] sm:$0xff]
        %v381 = vld [vmem:[%s321 + $0x20] sm:$0xff]
        %v382 = vld [vmem:[%s321 + $0x28] sm:$0xff]
        %v383 = vld [vmem:[%s321 + $0x30] sm:$0xff]
        %v384 = vld [vmem:[%s321 + $0x38] sm:$0xff]
        %v385 = vld [vmem:[%s321 + $0x40] sm:$0xff]
        %v386 = vld [vmem:[%s321 + $0x48] sm:$0xff]
        %v387 = vld [vmem:[%s321 + $0x50] sm:$0xff]
        %v388 = vld [vmem:[%s321 + $0x58] sm:$0xff]
        %v389 = vld [vmem:[%s321 + $0x60] sm:$0xff]
        %v390 = vld [vmem:[%s321 + $0x68] sm:$0xff]
        %v391 = vld [vmem:[%s321 + $0x70] sm:$0xff]
        %v392 = vld [vmem:[%s321 + $0x78] sm:$0xff]
        %v393 = vld [vmem:[%s321 + $0x80] sm:$0xff]
        %v394 = vld [vmem:[%s321 + $0x88] sm:$0xff]
        %v395 = vld [vmem:[%s321 + $0x90] sm:$0xff]
        %v396 = vld [vmem:[%s321 + $0x98] sm:$0xff]
        %v397 = vld [vmem:[%s321 + $0xa0] sm:$0xff]
        %v398 = vld [vmem:[%s321 + $0xa8] sm:$0xff]
        %v399 = vld [vmem:[%s321 + $0xb0] sm:$0xff]
        %v400 = vld [vmem:[%s321 + $0xb8] sm:$0xff]
        %v401 = vld [vmem:[%s321 + $0xc0] sm:$0xff]
        %v402 = vld [vmem:[%s321 + $0xc8] sm:$0xff]
        %v403 = vld [vmem:[%s321 + $0xd0] sm:$0xff]
        %v404 = vld [vmem:[%s321 + $0xd8] sm:$0xff]
        %v405 = vld [vmem:[%s321 + $0xe0] sm:$0xff]
        %v406 = vld [vmem:[%s321 + $0xe8] sm:$0xff]
        %v407 = vld [vmem:[%s321 + $0xf0] sm:$0xff]
        %v408 = vld [vmem:[%s321 + $0xf8] sm:$0xff]
        %s409 = scalar_lea.vmem [#allocation2], 24
        %410 = vst [vmem:[%s409 + $0x1] sm:$0xff] %v377
        %411 = vst [vmem:[%s409 + $0x9] sm:$0xff] %v378
        %412 = vst [vmem:[%s409 + $0x19] sm:$0xff] %v379
        %413 = vst [vmem:[%s409 + $0x21] sm:$0xff] %v380
        %414 = vst [vmem:[%s409 + $0x31] sm:$0xff] %v381
        %415 = vst [vmem:[%s409 + $0x39] sm:$0xff] %v382
        %416 = vst [vmem:[%s409 + $0x49] sm:$0xff] %v383
        %417 = vst [vmem:[%s409 + $0x51] sm:$0xff] %v384
        %418 = vst [vmem:[%s409 + $0x61] sm:$0xff] %v385
        %419 = vst [vmem:[%s409 + $0x69] sm:$0xff] %v386
        %420 = vst [vmem:[%s409 + $0x79] sm:$0xff] %v387
        %421 = vst [vmem:[%s409 + $0x81] sm:$0xff] %v388
        %422 = vst [vmem:[%s409 + $0x91] sm:$0xff] %v389
        %423 = vst [vmem:[%s409 + $0x99] sm:$0xff] %v390
        %424 = vst [vmem:[%s409 + $0xa9] sm:$0xff] %v391
        %425 = vst [vmem:[%s409 + $0xb1] sm:$0xff] %v392
        %426 = vst [vmem:[%s409 + $0xc1] sm:$0xff] %v393
        %427 = vst [vmem:[%s409 + $0xc9] sm:$0xff] %v394
        %428 = vst [vmem:[%s409 + $0xd9] sm:$0xff] %v395
        %429 = vst [vmem:[%s409 + $0xe1] sm:$0xff] %v396
        %430 = vst [vmem:[%s409 + $0xf1] sm:$0xff] %v397
        %431 = vst [vmem:[%s409 + $0xf9] sm:$0xff] %v398
        %432 = vst [vmem:[%s409 + $0x109] sm:$0xff] %v399
        %433 = vst [vmem:[%s409 + $0x111] sm:$0xff] %v400
        %434 = vst [vmem:[%s409 + $0x121] sm:$0xff] %v401
        %435 = vst [vmem:[%s409 + $0x129] sm:$0xff] %v402
        %436 = vst [vmem:[%s409 + $0x139] sm:$0xff] %v403
        %437 = vst [vmem:[%s409 + $0x141] sm:$0xff] %v404
        %438 = vst [vmem:[%s409 + $0x151] sm:$0xff] %v405
        %439 = vst [vmem:[%s409 + $0x159] sm:$0xff] %v406
        %440 = vst [vmem:[%s409 + $0x169] sm:$0xff] %v407
        %441 = vst [vmem:[%s409 + $0x171] sm:$0xff] %v408
        %442 = vst [vmem:[#allocation2 + $0x1] sm:$0xff] %v379
        %443 = vst [vmem:[#allocation2 + $0x9] sm:$0xff] %v380
        %s444 = scalar_lea.vmem [#allocation2], 408
        %445 = vst [vmem:[%s444 + $0x1] sm:$0xff] %v405
        %446 = vst [vmem:[%s444 + $0x9] sm:$0xff] %v406
        %v447 = vld [vmem:[#allocation2 + $0x2] sm:$0x1]
        %v448 = vld [vmem:[#allocation2 + $0x1a] sm:$0x1]
        %v449 = vld [vmem:[#allocation2 + $0x32] sm:$0x1]
        %v450 = vld [vmem:[#allocation2 + $0x4a] sm:$0x1]
        %v451 = vld [vmem:[#allocation2 + $0x62] sm:$0x1]
        %v452 = vld [vmem:[#allocation2 + $0x7a] sm:$0x1]
        %v453 = vld [vmem:[#allocation2 + $0x92] sm:$0x1]
        %v454 = vld [vmem:[#allocation2 + $0xaa] sm:$0x1]
        %v455 = vld [vmem:[#allocation2 + $0xc2] sm:$0x1]
        %v456 = vld [vmem:[#allocation2 + $0xda] sm:$0x1]
        %v457 = vld [vmem:[#allocation2 + $0xf2] sm:$0x1]
        %v458 = vld [vmem:[#allocation2 + $0x10a] sm:$0x1]
        %v459 = vld [vmem:[#allocation2 + $0x122] sm:$0x1]
        %v460 = vld [vmem:[#allocation2 + $0x13a] sm:$0x1]
        %v461 = vld [vmem:[#allocation2 + $0x152] sm:$0x1]
        %v462 = vld [vmem:[#allocation2 + $0x16a] sm:$0x1]
        %v463 = vld [vmem:[#allocation2 + $0x182] sm:$0x1]
        %v464 = vld [vmem:[#allocation2 + $0x19a] sm:$0x1]
        %465 = vst [vmem:[#allocation2] sm:$0x1] %v447
        %466 = vst [vmem:[#allocation2 + $0x18] sm:$0x1] %v448
        %467 = vst [vmem:[#allocation2 + $0x30] sm:$0x1] %v449
        %468 = vst [vmem:[#allocation2 + $0x48] sm:$0x1] %v450
        %469 = vst [vmem:[#allocation2 + $0x60] sm:$0x1] %v451
        %470 = vst [vmem:[#allocation2 + $0x78] sm:$0x1] %v452
        %471 = vst [vmem:[#allocation2 + $0x90] sm:$0x1] %v453
        %472 = vst [vmem:[#allocation2 + $0xa8] sm:$0x1] %v454
        %473 = vst [vmem:[#allocation2 + $0xc0] sm:$0x1] %v455
        %474 = vst [vmem:[#allocation2 + $0xd8] sm:$0x1] %v456
        %475 = vst [vmem:[#allocation2 + $0xf0] sm:$0x1] %v457
        %476 = vst [vmem:[#allocation2 + $0x108] sm:$0x1] %v458
        %477 = vst [vmem:[#allocation2 + $0x120] sm:$0x1] %v459
        %478 = vst [vmem:[#allocation2 + $0x138] sm:$0x1] %v460
        %479 = vst [vmem:[#allocation2 + $0x150] sm:$0x1] %v461
        %480 = vst [vmem:[#allocation2 + $0x168] sm:$0x1] %v462
        %481 = vst [vmem:[#allocation2 + $0x180] sm:$0x1] %v463
        %482 = vst [vmem:[#allocation2 + $0x198] sm:$0x1] %v464
        %v483 = vld [vmem:[#allocation2 + $0xf] sm:$0x1]
        %v484 = vld [vmem:[#allocation2 + $0x27] sm:$0x1]
        %v485 = vld [vmem:[#allocation2 + $0x3f] sm:$0x1]
        %v486 = vld [vmem:[#allocation2 + $0x57] sm:$0x1]
        %v487 = vld [vmem:[#allocation2 + $0x6f] sm:$0x1]
        %v488 = vld [vmem:[#allocation2 + $0x87] sm:$0x1]
        %v489 = vld [vmem:[#allocation2 + $0x9f] sm:$0x1]
        %v490 = vld [vmem:[#allocation2 + $0xb7] sm:$0x1]
        %v491 = vld [vmem:[#allocation2 + $0xcf] sm:$0x1]
        %v492 = vld [vmem:[#allocation2 + $0xe7] sm:$0x1]
        %v493 = vld [vmem:[#allocation2 + $0xff] sm:$0x1]
        %v494 = vld [vmem:[#allocation2 + $0x117] sm:$0x1]
        %v495 = vld [vmem:[#allocation2 + $0x12f] sm:$0x1]
        %v496 = vld [vmem:[#allocation2 + $0x147] sm:$0x1]
        %v497 = vld [vmem:[#allocation2 + $0x15f] sm:$0x1]
        %v498 = vld [vmem:[#allocation2 + $0x177] sm:$0x1]
        %v499 = vld [vmem:[#allocation2 + $0x18f] sm:$0x1]
        %v500 = vld [vmem:[#allocation2 + $0x1a7] sm:$0x1]
        %501 = vst [vmem:[#allocation2 + $0x11] sm:$0x1] %v483
        %502 = vst [vmem:[#allocation2 + $0x29] sm:$0x1] %v484
        %503 = vst [vmem:[#allocation2 + $0x41] sm:$0x1] %v485
        %504 = vst [vmem:[#allocation2 + $0x59] sm:$0x1] %v486
        %505 = vst [vmem:[#allocation2 + $0x71] sm:$0x1] %v487
        %506 = vst [vmem:[#allocation2 + $0x89] sm:$0x1] %v488
        %507 = vst [vmem:[#allocation2 + $0xa1] sm:$0x1] %v489
        %508 = vst [vmem:[#allocation2 + $0xb9] sm:$0x1] %v490
        %509 = vst [vmem:[#allocation2 + $0xd1] sm:$0x1] %v491
        %510 = vst [vmem:[#allocation2 + $0xe9] sm:$0x1] %v492
        %511 = vst [vmem:[#allocation2 + $0x101] sm:$0x1] %v493
        %512 = vst [vmem:[#allocation2 + $0x119] sm:$0x1] %v494
        %513 = vst [vmem:[#allocation2 + $0x131] sm:$0x1] %v495
        %514 = vst [vmem:[#allocation2 + $0x149] sm:$0x1] %v496
        %515 = vst [vmem:[#allocation2 + $0x161] sm:$0x1] %v497
        %516 = vst [vmem:[#allocation2 + $0x179] sm:$0x1] %v498
        %517 = vst [vmem:[#allocation2 + $0x191] sm:$0x1] %v499
        %518 = vst [vmem:[#allocation2 + $0x1a9] sm:$0x1] %v500
        %v519 = vld [vmem:[#allocation6] sm:$0xf]
        %v520 = vld [vmem:[#allocation6 + $0x4] sm:$0xf]
        %v521 = vld [vmem:[#allocation6 + $0x8] sm:$0xf]
        %v522 = vld [vmem:[#allocation6 + $0xc] sm:$0xf]
        %v523 = vld [vmem:[#allocation6 + $0x10] sm:$0xf]
        %v524 = vld [vmem:[#allocation6 + $0x14] sm:$0xf]
        %v525 = vld [vmem:[#allocation6 + $0x18] sm:$0xf]
        %v526 = vld [vmem:[#allocation6 + $0x1c] sm:$0xf]
        %v527 = vld [vmem:[#allocation6 + $0x20] sm:$0xf]
        %v528 = vld [vmem:[#allocation6 + $0x24] sm:$0xf]
        %v529 = vld [vmem:[#allocation6 + $0x28] sm:$0xf]
        %v530 = vld [vmem:[#allocation6 + $0x2c] sm:$0xf]
        %v531 = vld [vmem:[#allocation6 + $0x30] sm:$0xf]
        %v532 = vld [vmem:[#allocation6 + $0x34] sm:$0xf]
        %v533 = vld [vmem:[#allocation6 + $0x38] sm:$0xf]
        %v534 = vld [vmem:[#allocation6 + $0x3c] sm:$0xf]
        %v535 = vld [vmem:[#allocation6 + $0x40] sm:$0xf]
        %v536 = vld [vmem:[#allocation6 + $0x44] sm:$0xf]
        %v537 = vld [vmem:[#allocation6 + $0x48] sm:$0xf]
        %v538 = vld [vmem:[#allocation6 + $0x4c] sm:$0xf]
        %v539 = vld [vmem:[#allocation6 + $0x50] sm:$0xf]
        %v540 = vld [vmem:[#allocation6 + $0x54] sm:$0xf]
        %v541 = vld [vmem:[#allocation6 + $0x58] sm:$0xf]
        %v542 = vld [vmem:[#allocation6 + $0x5c] sm:$0xf]
        %v543 = vld [vmem:[#allocation6 + $0x60] sm:$0xf]
        %v544 = vld [vmem:[#allocation6 + $0x64] sm:$0xf]
        %v545 = vld [vmem:[#allocation6 + $0x68] sm:$0xf]
        %v546 = vld [vmem:[#allocation6 + $0x6c] sm:$0xf]
        %v547 = vld [vmem:[#allocation6 + $0x70] sm:$0xf]
        %v548 = vld [vmem:[#allocation6 + $0x74] sm:$0xf]
        %v549 = vld [vmem:[#allocation6 + $0x78] sm:$0xf]
        %v550 = vld [vmem:[#allocation6 + $0x7c] sm:$0xf]
        %v551 = vld [vmem:[#allocation6 + $0x80] sm:$0xf]
        %v552 = vld [vmem:[#allocation6 + $0x84] sm:$0xf]
        %v553 = vld [vmem:[#allocation6 + $0x88] sm:$0xf]
        %v554 = vld [vmem:[#allocation6 + $0x8c] sm:$0xf]
        %v555 = vld [vmem:[#allocation6 + $0x90] sm:$0xf]
        %v556 = vld [vmem:[#allocation6 + $0x94] sm:$0xf]
        %v557 = vld [vmem:[#allocation6 + $0x98] sm:$0xf]
        %v558 = vld [vmem:[#allocation6 + $0x9c] sm:$0xf]
        %v559 = vld [vmem:[#allocation6 + $0xa0] sm:$0xf]
        %v560 = vld [vmem:[#allocation6 + $0xa4] sm:$0xf]
        %v561 = vld [vmem:[#allocation6 + $0xa8] sm:$0xf]
        %v562 = vld [vmem:[#allocation6 + $0xac] sm:$0xf]
        %v563 = vld [vmem:[#allocation6 + $0xb0] sm:$0xf]
        %v564 = vld [vmem:[#allocation6 + $0xb4] sm:$0xf]
        %v565 = vld [vmem:[#allocation6 + $0xb8] sm:$0xf]
        %v566 = vld [vmem:[#allocation6 + $0xbc] sm:$0xf]
        %v567 = vld [vmem:[#allocation6 + $0xc0] sm:$0xf]
        %v568 = vld [vmem:[#allocation6 + $0xc4] sm:$0xf]
        %v569 = vld [vmem:[#allocation6 + $0xc8] sm:$0xf]
        %v570 = vld [vmem:[#allocation6 + $0xcc] sm:$0xf]
        %v571 = vld [vmem:[#allocation6 + $0xd0] sm:$0xf]
        %v572 = vld [vmem:[#allocation6 + $0xd4] sm:$0xf]
        %v573 = vld [vmem:[#allocation6 + $0xd8] sm:$0xf]
        %v574 = vld [vmem:[#allocation6 + $0xdc] sm:$0xf]
        %v575 = vld [vmem:[#allocation6 + $0xe0] sm:$0xf]
        %v576 = vld [vmem:[#allocation6 + $0xe4] sm:$0xf]
        %v577 = vld [vmem:[#allocation6 + $0xe8] sm:$0xf]
        %v578 = vld [vmem:[#allocation6 + $0xec] sm:$0xf]
        %v579 = vld [vmem:[#allocation6 + $0xf0] sm:$0xf]
        %v580 = vld [vmem:[#allocation6 + $0xf4] sm:$0xf]
        %v581 = vld [vmem:[#allocation6 + $0xf8] sm:$0xf]
        %v582 = vld [vmem:[#allocation6 + $0xfc] sm:$0xf]
        %v583 = vld [vmem:[#allocation6 + $0x100] sm:$0xf]
        %v584 = vld [vmem:[#allocation6 + $0x104] sm:$0xf]
        %v585 = vld [vmem:[#allocation6 + $0x108] sm:$0xf]
        %v586 = vld [vmem:[#allocation6 + $0x10c] sm:$0xf]
        %v587 = vld [vmem:[#allocation6 + $0x110] sm:$0xf]
        %v588 = vld [vmem:[#allocation6 + $0x114] sm:$0xf]
        %v589 = vld [vmem:[#allocation6 + $0x118] sm:$0xf]
        %v590 = vld [vmem:[#allocation6 + $0x11c] sm:$0xf]
        %v591 = vld [vmem:[#allocation6 + $0x120] sm:$0xf]
        %v592 = vld [vmem:[#allocation6 + $0x124] sm:$0xf]
        %v593 = vld [vmem:[#allocation6 + $0x128] sm:$0xf]
        %v594 = vld [vmem:[#allocation6 + $0x12c] sm:$0xf]
        %v595 = vld [vmem:[#allocation6 + $0x130] sm:$0xf]
        %v596 = vld [vmem:[#allocation6 + $0x134] sm:$0xf]
        %v597 = vld [vmem:[#allocation6 + $0x138] sm:$0xf]
        %v598 = vld [vmem:[#allocation6 + $0x13c] sm:$0xf]
        %v599 = vld [vmem:[#allocation6 + $0x140] sm:$0xf]
        %v600 = vld [vmem:[#allocation6 + $0x144] sm:$0xf]
        %v601 = vld [vmem:[#allocation6 + $0x148] sm:$0xf]
        %v602 = vld [vmem:[#allocation6 + $0x14c] sm:$0xf]
        %v603 = vld [vmem:[#allocation6 + $0x150] sm:$0xf]
        %v604 = vld [vmem:[#allocation6 + $0x154] sm:$0xf]
        %v605 = vld [vmem:[#allocation6 + $0x158] sm:$0xf]
        %v606 = vld [vmem:[#allocation6 + $0x15c] sm:$0xf]
        %v607 = vld [vmem:[#allocation6 + $0x160] sm:$0xf]
        %v608 = vld [vmem:[#allocation6 + $0x164] sm:$0xf]
        %v609 = vld [vmem:[#allocation6 + $0x168] sm:$0xf]
        %v610 = vld [vmem:[#allocation6 + $0x16c] sm:$0xf]
        %v611 = vld [vmem:[#allocation6 + $0x170] sm:$0xf]
        %v612 = vld [vmem:[#allocation6 + $0x174] sm:$0xf]
        %v613 = vld [vmem:[#allocation6 + $0x178] sm:$0xf]
        %v614 = vld [vmem:[#allocation6 + $0x17c] sm:$0xf]
        %v615 = vld [vmem:[#allocation6 + $0x180] sm:$0xf]
        %v616 = vld [vmem:[#allocation6 + $0x184] sm:$0xf]
        %v617 = vld [vmem:[#allocation6 + $0x188] sm:$0xf]
        %v618 = vld [vmem:[#allocation6 + $0x18c] sm:$0xf]
        %v619 = vld [vmem:[#allocation6 + $0x190] sm:$0xf]
        %v620 = vld [vmem:[#allocation6 + $0x194] sm:$0xf]
        %v621 = vld [vmem:[#allocation6 + $0x198] sm:$0xf]
        %v622 = vld [vmem:[#allocation6 + $0x19c] sm:$0xf]
        %v623 = vld [vmem:[#allocation6 + $0x1a0] sm:$0xf]
        %v624 = vld [vmem:[#allocation6 + $0x1a4] sm:$0xf]
        %v625 = vld [vmem:[#allocation6 + $0x1a8] sm:$0xf]
        %v626 = vld [vmem:[#allocation6 + $0x1ac] sm:$0xf]
        %v627 = vld [vmem:[#allocation6 + $0x1b0] sm:$0xf]
        %v628 = vld [vmem:[#allocation6 + $0x1b4] sm:$0xf]
        %v629 = vld [vmem:[#allocation6 + $0x1b8] sm:$0xf]
        %v630 = vld [vmem:[#allocation6 + $0x1bc] sm:$0xf]
        %v631 = vld [vmem:[#allocation6 + $0x1c0] sm:$0xf]
        %v632 = vld [vmem:[#allocation6 + $0x1c4] sm:$0xf]
        %v633 = vld [vmem:[#allocation6 + $0x1c8] sm:$0xf]
        %v634 = vld [vmem:[#allocation6 + $0x1cc] sm:$0xf]
        %v635 = vld [vmem:[#allocation6 + $0x1d0] sm:$0xf]
        %v636 = vld [vmem:[#allocation6 + $0x1d4] sm:$0xf]
        %v637 = vld [vmem:[#allocation6 + $0x1d8] sm:$0xf]
        %v638 = vld [vmem:[#allocation6 + $0x1dc] sm:$0xf]
        %v639 = vld [vmem:[#allocation6 + $0x1e0] sm:$0xf]
        %v640 = vld [vmem:[#allocation6 + $0x1e4] sm:$0xf]
        %v641 = vld [vmem:[#allocation6 + $0x1e8] sm:$0xf]
        %v642 = vld [vmem:[#allocation6 + $0x1ec] sm:$0xf]
        %v643 = vld [vmem:[#allocation6 + $0x1f0] sm:$0xf]
        %v644 = vld [vmem:[#allocation6 + $0x1f4] sm:$0xf]
        %v645 = vld [vmem:[#allocation6 + $0x1f8] sm:$0xf]
        %v646 = vld [vmem:[#allocation6 + $0x1fc] sm:$0xf]
        %v647 = vld [vmem:[#allocation6 + $0x200] sm:$0xf]
        %v648 = vld [vmem:[#allocation6 + $0x204] sm:$0xf]
        %v649 = vld [vmem:[#allocation6 + $0x208] sm:$0xf]
        %v650 = vld [vmem:[#allocation6 + $0x20c] sm:$0xf]
        %v651 = vld [vmem:[#allocation6 + $0x210] sm:$0xf]
        %v652 = vld [vmem:[#allocation6 + $0x214] sm:$0xf]
        %v653 = vld [vmem:[#allocation6 + $0x218] sm:$0xf]
        %v654 = vld [vmem:[#allocation6 + $0x21c] sm:$0xf]
        %v655 = vld [vmem:[#allocation6 + $0x220] sm:$0xf]
        %v656 = vld [vmem:[#allocation6 + $0x224] sm:$0xf]
        %v657 = vld [vmem:[#allocation6 + $0x228] sm:$0xf]
        %v658 = vld [vmem:[#allocation6 + $0x22c] sm:$0xf]
        %v659 = vld [vmem:[#allocation6 + $0x230] sm:$0xf]
        %v660 = vld [vmem:[#allocation6 + $0x234] sm:$0xf]
        %v661 = vld [vmem:[#allocation6 + $0x238] sm:$0xf]
        %v662 = vld [vmem:[#allocation6 + $0x23c] sm:$0xf]
        %s663 = smul.u32 0, 24
        %s664 = scalar_lea.vmem [#allocation2], %s663
        %v665 = vld [vmem:[%s664] sm:$0xff]
        %v666 = vld [vmem:[%s664 + $0x8] sm:$0xff]
        %v667 = vld [vmem:[%s664 + $0x10] sm:$0x3]
        %v668 = vld [vmem:[%s664 + $0x18] sm:$0xff]
        %v669 = vld [vmem:[%s664 + $0x20] sm:$0xff]
        %v670 = vld [vmem:[%s664 + $0x28] sm:$0x3]
        %v671 = vld [vmem:[%s664 + $0x30] sm:$0xff]
        %v672 = vld [vmem:[%s664 + $0x38] sm:$0xff]
        %v673 = vld [vmem:[%s664 + $0x40] sm:$0x3]
        %v674 = vld [vmem:[%s664 + $0x48] sm:$0xff]
        %v675 = vld [vmem:[%s664 + $0x50] sm:$0xff]
        %v676 = vld [vmem:[%s664 + $0x58] sm:$0x3]
        %v677 = vld [vmem:[%s664 + $0x60] sm:$0xff]
        %v678 = vld [vmem:[%s664 + $0x68] sm:$0xff]
        %v679 = vld [vmem:[%s664 + $0x70] sm:$0x3]
        %v680 = vld [vmem:[%s664 + $0x78] sm:$0xff]
        %v681 = vld [vmem:[%s664 + $0x80] sm:$0xff]
        %v682 = vld [vmem:[%s664 + $0x88] sm:$0x3]
        %v683 = vld [vmem:[%s664 + $0x90] sm:$0xff]
        %v684 = vld [vmem:[%s664 + $0x98] sm:$0xff]
        %v685 = vld [vmem:[%s664 + $0xa0] sm:$0x3]
        %v686 = vld [vmem:[%s664 + $0xa8] sm:$0xff]
        %v687 = vld [vmem:[%s664 + $0xb0] sm:$0xff]
        %v688 = vld [vmem:[%s664 + $0xb8] sm:$0x3]
        %v689 = vld [vmem:[%s664 + $0xc0] sm:$0xff]
        %v690 = vld [vmem:[%s664 + $0xc8] sm:$0xff]
        %v691 = vld [vmem:[%s664 + $0xd0] sm:$0x3]
        %v692 = vld [vmem:[%s664 + $0xd8] sm:$0xff]
        %v693 = vld [vmem:[%s664 + $0xe0] sm:$0xff]
        %v694 = vld [vmem:[%s664 + $0xe8] sm:$0x3]
        %v695 = vld [vmem:[%s664 + $0xf0] sm:$0xff]
        %v696 = vld [vmem:[%s664 + $0xf8] sm:$0xff]
        %v697 = vld [vmem:[%s664 + $0x100] sm:$0x3]
        %v698 = vld [vmem:[%s664 + $0x108] sm:$0xff]
        %v699 = vld [vmem:[%s664 + $0x110] sm:$0xff]
        %v700 = vld [vmem:[%s664 + $0x118] sm:$0x3]
        %v701 = vld [vmem:[%s664 + $0x120] sm:$0xff]
        %v702 = vld [vmem:[%s664 + $0x128] sm:$0xff]
        %v703 = vld [vmem:[%s664 + $0x130] sm:$0x3]
        %v704 = vld [vmem:[%s664 + $0x138] sm:$0xff]
        %v705 = vld [vmem:[%s664 + $0x140] sm:$0xff]
        %v706 = vld [vmem:[%s664 + $0x148] sm:$0x3]
        %v707 = vld [vmem:[%s664 + $0x150] sm:$0xff]
        %v708 = vld [vmem:[%s664 + $0x158] sm:$0xff]
        %v709 = vld [vmem:[%s664 + $0x160] sm:$0x3]
        %v710 = vld [vmem:[%s664 + $0x168] sm:$0xff]
        %v711 = vld [vmem:[%s664 + $0x170] sm:$0xff]
        %v712 = vld [vmem:[%s664 + $0x178] sm:$0x3]
        %v713 = vld [vmem:[%s664 + $0x180] sm:$0xff]
        %v714 = vld [vmem:[%s664 + $0x188] sm:$0xff]
        %v715 = vld [vmem:[%s664 + $0x190] sm:$0x3]
        %v716 = vld [vmem:[%s664 + $0x198] sm:$0xff]
        %v717 = vld [vmem:[%s664 + $0x1a0] sm:$0xff]
        %v718 = vld [vmem:[%s664 + $0x1a8] sm:$0x3]
        %v719 = vpack.c.bf16 %v666, %v665
        %v720 = vpack.c.bf16 %v667, %v667
        %v721 = vpack.c.bf16 %v669, %v668
        %v722 = vpack.c.bf16 %v670, %v670
        %v723 = vpack.c.bf16 %v672, %v671
        %v724 = vpack.c.bf16 %v673, %v673
        %v725 = vpack.c.bf16 %v675, %v674
        %v726 = vpack.c.bf16 %v676, %v676
        %v727 = vpack.c.bf16 %v678, %v677
        %v728 = vpack.c.bf16 %v679, %v679
        %v729 = vpack.c.bf16 %v681, %v680
        %v730 = vpack.c.bf16 %v682, %v682
        %v731 = vpack.c.bf16 %v684, %v683
        %v732 = vpack.c.bf16 %v685, %v685
        %v733 = vpack.c.bf16 %v687, %v686
        %v734 = vpack.c.bf16 %v688, %v688
        %v735 = vpack.c.bf16 %v690, %v689
        %v736 = vpack.c.bf16 %v691, %v691
        %v737 = vpack.c.bf16 %v693, %v692
        %v738 = vpack.c.bf16 %v694, %v694
        %v739 = vpack.c.bf16 %v696, %v695
        %v740 = vpack.c.bf16 %v697, %v697
        %v741 = vpack.c.bf16 %v699, %v698
        %v742 = vpack.c.bf16 %v700, %v700
        %v743 = vpack.c.bf16 %v702, %v701
        %v744 = vpack.c.bf16 %v703, %v703
        %v745 = vpack.c.bf16 %v705, %v704
        %v746 = vpack.c.bf16 %v706, %v706
        %v747 = vpack.c.bf16 %v708, %v707
        %v748 = vpack.c.bf16 %v709, %v709
        %v749 = vpack.c.bf16 %v711, %v710
        %v750 = vpack.c.bf16 %v712, %v712
        %v751 = vpack.c.bf16 %v714, %v713
        %v752 = vpack.c.bf16 %v715, %v715
        %v753 = vpack.c.bf16 %v717, %v716
        %v754 = vpack.c.bf16 %v718, %v718
        %vm755 = vsmask.f32 7424
        %v757 = vshrl.u32 %v719, 16
        %v759 = vshll.u32 %v719, 16
        %v761 = vrot.slane %v759, 1
        %v762 = vor.u32 %v757, %v761
        %v764 = vshll.u32 %v720, 16
        %v766 = vrot.slane %v764, 1
        %v767 = vsel %vm755, %v762, %v766
        %v769 = vshrl.u32 %v721, 16
        %v771 = vshll.u32 %v721, 16
        %v773 = vrot.slane %v771, 1
        %v774 = vor.u32 %v769, %v773
        %v776 = vshll.u32 %v722, 16
        %v778 = vrot.slane %v776, 1
        %v779 = vsel %vm755, %v774, %v778
        %v781 = vshrl.u32 %v723, 16
        %v783 = vshll.u32 %v723, 16
        %v785 = vrot.slane %v783, 1
        %v786 = vor.u32 %v781, %v785
        %v788 = vshll.u32 %v724, 16
        %v790 = vrot.slane %v788, 1
        %v791 = vsel %vm755, %v786, %v790
        %v793 = vshrl.u32 %v725, 16
        %v795 = vshll.u32 %v725, 16
        %v797 = vrot.slane %v795, 1
        %v798 = vor.u32 %v793, %v797
        %v800 = vshll.u32 %v726, 16
        %v802 = vrot.slane %v800, 1
        %v803 = vsel %vm755, %v798, %v802
        %v805 = vshrl.u32 %v727, 16
        %v807 = vshll.u32 %v727, 16
        %v809 = vrot.slane %v807, 1
        %v810 = vor.u32 %v805, %v809
        %v812 = vshll.u32 %v728, 16
        %v814 = vrot.slane %v812, 1
        %v815 = vsel %vm755, %v810, %v814
        %v817 = vshrl.u32 %v729, 16
        %v819 = vshll.u32 %v729, 16
        %v821 = vrot.slane %v819, 1
        %v822 = vor.u32 %v817, %v821
        %v824 = vshll.u32 %v730, 16
        %v826 = vrot.slane %v824, 1
        %v827 = vsel %vm755, %v822, %v826
        %v829 = vshrl.u32 %v731, 16
        %v831 = vshll.u32 %v731, 16
        %v833 = vrot.slane %v831, 1
        %v834 = vor.u32 %v829, %v833
        %v836 = vshll.u32 %v732, 16
        %v838 = vrot.slane %v836, 1
        %v839 = vsel %vm755, %v834, %v838
        %v841 = vshrl.u32 %v733, 16
        %v843 = vshll.u32 %v733, 16
        %v845 = vrot.slane %v843, 1
        %v846 = vor.u32 %v841, %v845
        %v848 = vshll.u32 %v734, 16
        %v850 = vrot.slane %v848, 1
        %v851 = vsel %vm755, %v846, %v850
        %v853 = vshrl.u32 %v735, 16
        %v855 = vshll.u32 %v735, 16
        %v857 = vrot.slane %v855, 1
        %v858 = vor.u32 %v853, %v857
        %v860 = vshll.u32 %v736, 16
        %v862 = vrot.slane %v860, 1
        %v863 = vsel %vm755, %v858, %v862
        %v865 = vshrl.u32 %v737, 16
        %v867 = vshll.u32 %v737, 16
        %v869 = vrot.slane %v867, 1
        %v870 = vor.u32 %v865, %v869
        %v872 = vshll.u32 %v738, 16
        %v874 = vrot.slane %v872, 1
        %v875 = vsel %vm755, %v870, %v874
        %v877 = vshrl.u32 %v739, 16
        %v879 = vshll.u32 %v739, 16
        %v881 = vrot.slane %v879, 1
        %v882 = vor.u32 %v877, %v881
        %v884 = vshll.u32 %v740, 16
        %v886 = vrot.slane %v884, 1
        %v887 = vsel %vm755, %v882, %v886
        %v889 = vshrl.u32 %v741, 16
        %v891 = vshll.u32 %v741, 16
        %v893 = vrot.slane %v891, 1
        %v894 = vor.u32 %v889, %v893
        %v896 = vshll.u32 %v742, 16
        %v898 = vrot.slane %v896, 1
        %v899 = vsel %vm755, %v894, %v898
        %v901 = vshrl.u32 %v743, 16
        %v903 = vshll.u32 %v743, 16
        %v905 = vrot.slane %v903, 1
        %v906 = vor.u32 %v901, %v905
        %v908 = vshll.u32 %v744, 16
        %v910 = vrot.slane %v908, 1
        %v911 = vsel %vm755, %v906, %v910
        %v913 = vshrl.u32 %v745, 16
        %v915 = vshll.u32 %v745, 16
        %v917 = vrot.slane %v915, 1
        %v918 = vor.u32 %v913, %v917
        %v920 = vshll.u32 %v746, 16
        %v922 = vrot.slane %v920, 1
        %v923 = vsel %vm755, %v918, %v922
        %v925 = vshrl.u32 %v747, 16
        %v927 = vshll.u32 %v747, 16
        %v929 = vrot.slane %v927, 1
        %v930 = vor.u32 %v925, %v929
        %v932 = vshll.u32 %v748, 16
        %v934 = vrot.slane %v932, 1
        %v935 = vsel %vm755, %v930, %v934
        %v937 = vshrl.u32 %v749, 16
        %v939 = vshll.u32 %v749, 16
        %v941 = vrot.slane %v939, 1
        %v942 = vor.u32 %v937, %v941
        %v944 = vshll.u32 %v750, 16
        %v946 = vrot.slane %v944, 1
        %v947 = vsel %vm755, %v942, %v946
        %vm996 = vcmask 1046528
        %v997 = vrot.slane %v719, 1
        %v998 = vrot.slane %v720, 1
        %v999 = vsel %vm996, %v997, %v998
        %v1000 = vrot.slane %v721, 1
        %v1001 = vrot.slane %v722, 1
        %v1002 = vsel %vm996, %v1000, %v1001
        %v1003 = vrot.slane %v723, 1
        %v1004 = vrot.slane %v724, 1
        %v1005 = vsel %vm996, %v1003, %v1004
        %v1006 = vrot.slane %v725, 1
        %v1007 = vrot.slane %v726, 1
        %v1008 = vsel %vm996, %v1006, %v1007
        %v1009 = vrot.slane %v727, 1
        %v1010 = vrot.slane %v728, 1
        %v1011 = vsel %vm996, %v1009, %v1010
        %v1012 = vrot.slane %v729, 1
        %v1013 = vrot.slane %v730, 1
        %v1014 = vsel %vm996, %v1012, %v1013
        %v1015 = vrot.slane %v731, 1
        %v1016 = vrot.slane %v732, 1
        %v1017 = vsel %vm996, %v1015, %v1016
        %v1018 = vrot.slane %v733, 1
        %v1019 = vrot.slane %v734, 1
        %v1020 = vsel %vm996, %v1018, %v1019
        %v1021 = vrot.slane %v735, 1
        %v1022 = vrot.slane %v736, 1
        %v1023 = vsel %vm996, %v1021, %v1022
        %v1024 = vrot.slane %v737, 1
        %v1025 = vrot.slane %v738, 1
        %v1026 = vsel %vm996, %v1024, %v1025
        %v1027 = vrot.slane %v739, 1
        %v1028 = vrot.slane %v740, 1
        %v1029 = vsel %vm996, %v1027, %v1028
        %v1030 = vrot.slane %v741, 1
        %v1031 = vrot.slane %v742, 1
        %v1032 = vsel %vm996, %v1030, %v1031
        %v1033 = vrot.slane %v743, 1
        %v1034 = vrot.slane %v744, 1
        %v1035 = vsel %vm996, %v1033, %v1034
        %v1036 = vrot.slane %v745, 1
        %v1037 = vrot.slane %v746, 1
        %v1038 = vsel %vm996, %v1036, %v1037
        %v1039 = vrot.slane %v747, 1
        %v1040 = vrot.slane %v748, 1
        %v1041 = vsel %vm996, %v1039, %v1040
        %v1042 = vrot.slane %v749, 1
        %v1043 = vrot.slane %v750, 1
        %v1044 = vsel %vm996, %v1042, %v1043
        %v1062 = vshrl.u32 %v751, 16
        %v1064 = vshll.u32 %v751, 16
        %v1066 = vrot.slane %v1064, 1
        %v1067 = vor.u32 %v1062, %v1066
        %v1069 = vshll.u32 %v752, 16
        %v1071 = vrot.slane %v1069, 1
        %v1072 = vsel %vm755, %v1067, %v1071
        %v1076 = vrot.slane %v751, 1
        %v1077 = vrot.slane %v752, 1
        %v1078 = vsel %vm996, %v1076, %v1077
        %v1081 = vshrl.u32 %v753, 16
        %v1083 = vshll.u32 %v753, 16
        %v1085 = vrot.slane %v1083, 1
        %v1086 = vor.u32 %v1081, %v1085
        %v1088 = vshll.u32 %v754, 16
        %v1090 = vrot.slane %v1088, 1
        %v1091 = vsel %vm755, %v1086, %v1090
        %v1095 = vrot.slane %v753, 1
        %v1096 = vrot.slane %v754, 1
        %v1097 = vsel %vm996, %v1095, %v1096
        %v1243 = vunpack.c.l.b16 %v519
        %v1244 = vunpack.c.l.b16 %v520
        %v1245 = vunpack.c.l.b16 %v521
        %v1246 = vunpack.c.l.b16 %v522
        %v1247 = vunpack.c.l.b16 %v523
        %v1248 = vunpack.c.l.b16 %v524
        %v1249 = vunpack.c.l.b16 %v525
        %v1250 = vunpack.c.l.b16 %v526
        %v1251 = vunpack.c.l.b16 %v527
        %v1252 = vunpack.c.l.b16 %v528
        %v1253 = vunpack.c.l.b16 %v529
        %v1254 = vunpack.c.l.b16 %v530
        %v1255 = vunpack.c.l.b16 %v531
        %v1256 = vunpack.c.l.b16 %v532
        %v1257 = vunpack.c.l.b16 %v533
        %v1258 = vunpack.c.l.b16 %v534
        %v1259 = vunpack.c.l.b16 %v535
        %v1260 = vunpack.c.l.b16 %v536
        %v1261 = vunpack.c.l.b16 %v537
        %v1262 = vunpack.c.l.b16 %v538
        %v1263 = vunpack.c.l.b16 %v539
        %v1264 = vunpack.c.l.b16 %v540
        %v1265 = vunpack.c.l.b16 %v541
        %v1266 = vunpack.c.l.b16 %v542
        %v1267 = vunpack.c.l.b16 %v543
        %v1268 = vunpack.c.l.b16 %v544
        %v1269 = vunpack.c.l.b16 %v545
        %v1270 = vunpack.c.l.b16 %v546
        %v1271 = vunpack.c.l.b16 %v547
        %v1272 = vunpack.c.l.b16 %v548
        %v1273 = vunpack.c.l.b16 %v549
        %v1274 = vunpack.c.l.b16 %v550
        %v1275 = vunpack.c.l.b16 %v551
        %v1276 = vunpack.c.l.b16 %v552
        %v1277 = vunpack.c.l.b16 %v553
        %v1278 = vunpack.c.l.b16 %v554
        %v1279 = vunpack.c.l.b16 %v555
        %v1280 = vunpack.c.l.b16 %v556
        %v1281 = vunpack.c.l.b16 %v557
        %v1282 = vunpack.c.l.b16 %v558
        %v1283 = vunpack.c.l.b16 %v559
        %v1284 = vunpack.c.l.b16 %v560
        %v1285 = vunpack.c.l.b16 %v561
        %v1286 = vunpack.c.l.b16 %v562
        %v1287 = vunpack.c.l.b16 %v563
        %v1288 = vunpack.c.l.b16 %v564
        %v1289 = vunpack.c.l.b16 %v565
        %v1290 = vunpack.c.l.b16 %v566
        %v1291 = vunpack.c.l.b16 %v567
        %v1292 = vunpack.c.l.b16 %v568
        %v1293 = vunpack.c.l.b16 %v569
        %v1294 = vunpack.c.l.b16 %v570
        %v1295 = vunpack.c.l.b16 %v571
        %v1296 = vunpack.c.l.b16 %v572
        %v1297 = vunpack.c.l.b16 %v573
        %v1298 = vunpack.c.l.b16 %v574
        %v1299 = vunpack.c.l.b16 %v575
        %v1300 = vunpack.c.l.b16 %v576
        %v1301 = vunpack.c.l.b16 %v577
        %v1302 = vunpack.c.l.b16 %v578
        %v1303 = vunpack.c.l.b16 %v579
        %v1304 = vunpack.c.l.b16 %v580
        %v1305 = vunpack.c.l.b16 %v581
        %v1306 = vunpack.c.l.b16 %v582
        %v1307 = vunpack.c.l.b16 %v583
        %v1308 = vunpack.c.l.b16 %v584
        %v1309 = vunpack.c.l.b16 %v585
        %v1310 = vunpack.c.l.b16 %v586
        %v1311 = vunpack.c.l.b16 %v587
        %v1312 = vunpack.c.l.b16 %v588
        %v1313 = vunpack.c.l.b16 %v589
        %v1314 = vunpack.c.l.b16 %v590
        %v1315 = vunpack.c.l.b16 %v591
        %v1316 = vunpack.c.l.b16 %v592
        %v1317 = vunpack.c.l.b16 %v593
        %v1318 = vunpack.c.l.b16 %v594
        %v1319 = vunpack.c.l.b16 %v595
        %v1320 = vunpack.c.l.b16 %v596
        %v1321 = vunpack.c.l.b16 %v597
        %v1322 = vunpack.c.l.b16 %v598
        %v1323 = vunpack.c.l.b16 %v599
        %v1324 = vunpack.c.l.b16 %v600
        %v1325 = vunpack.c.l.b16 %v601
        %v1326 = vunpack.c.l.b16 %v602
        %v1327 = vunpack.c.l.b16 %v603
        %v1328 = vunpack.c.l.b16 %v604
        %v1329 = vunpack.c.l.b16 %v605
        %v1330 = vunpack.c.l.b16 %v606
        %v1331 = vunpack.c.l.b16 %v607
        %v1332 = vunpack.c.l.b16 %v608
        %v1333 = vunpack.c.l.b16 %v609
        %v1334 = vunpack.c.l.b16 %v610
        %v1335 = vunpack.c.l.b16 %v611
        %v1336 = vunpack.c.l.b16 %v612
        %v1337 = vunpack.c.l.b16 %v613
        %v1338 = vunpack.c.l.b16 %v614
        %v1339 = vunpack.c.l.b16 %v615
        %v1340 = vunpack.c.l.b16 %v616
        %v1341 = vunpack.c.l.b16 %v617
        %v1342 = vunpack.c.l.b16 %v618
        %v1343 = vunpack.c.l.b16 %v619
        %v1344 = vunpack.c.l.b16 %v620
        %v1345 = vunpack.c.l.b16 %v621
        %v1346 = vunpack.c.l.b16 %v622
        %v1347 = vunpack.c.l.b16 %v623
        %v1348 = vunpack.c.l.b16 %v624
        %v1349 = vunpack.c.l.b16 %v625
        %v1350 = vunpack.c.l.b16 %v626
        %v1351 = vunpack.c.l.b16 %v627
        %v1352 = vunpack.c.l.b16 %v628
        %v1353 = vunpack.c.l.b16 %v629
        %v1354 = vunpack.c.l.b16 %v630
        %v1355 = vunpack.c.l.b16 %v631
        %v1356 = vunpack.c.l.b16 %v632
        %v1357 = vunpack.c.l.b16 %v633
        %v1358 = vunpack.c.l.b16 %v634
        %v1359 = vunpack.c.l.b16 %v635
        %v1360 = vunpack.c.l.b16 %v636
        %v1361 = vunpack.c.l.b16 %v637
        %v1362 = vunpack.c.l.b16 %v638
        %v1363 = vunpack.c.l.b16 %v639
        %v1364 = vunpack.c.l.b16 %v640
        %v1365 = vunpack.c.l.b16 %v641
        %v1366 = vunpack.c.l.b16 %v642
        %v1367 = vunpack.c.l.b16 %v643
        %v1368 = vunpack.c.l.b16 %v644
        %v1369 = vunpack.c.l.b16 %v645
        %v1370 = vunpack.c.l.b16 %v646
        %v1371 = vunpack.c.l.b16 %v647
        %v1372 = vunpack.c.l.b16 %v648
        %v1373 = vunpack.c.l.b16 %v649
        %v1374 = vunpack.c.l.b16 %v650
        %v1375 = vunpack.c.l.b16 %v651
        %v1376 = vunpack.c.l.b16 %v652
        %v1377 = vunpack.c.l.b16 %v653
        %v1378 = vunpack.c.l.b16 %v654
        %v1379 = vunpack.c.l.b16 %v655
        %v1380 = vunpack.c.l.b16 %v656
        %v1381 = vunpack.c.l.b16 %v657
        %v1382 = vunpack.c.l.b16 %v658
        %v1383 = vunpack.c.l.b16 %v659
        %v1384 = vunpack.c.l.b16 %v660
        %v1385 = vunpack.c.l.b16 %v661
        %v1386 = vunpack.c.l.b16 %v662
        %v1387 = vpack.c.b16 %v1244, %v1243
        %v1388 = vpack.c.b16 %v1246, %v1245
        %v1389 = vpack.c.b16 %v1248, %v1247
        %v1390 = vpack.c.b16 %v1250, %v1249
        %v1391 = vpack.c.b16 %v1252, %v1251
        %v1392 = vpack.c.b16 %v1254, %v1253
        %v1393 = vpack.c.b16 %v1256, %v1255
        %v1394 = vpack.c.b16 %v1258, %v1257
        %v1395 = vpack.c.b16 %v1260, %v1259
        %v1396 = vpack.c.b16 %v1262, %v1261
        %v1397 = vpack.c.b16 %v1264, %v1263
        %v1398 = vpack.c.b16 %v1266, %v1265
        %v1399 = vpack.c.b16 %v1268, %v1267
        %v1400 = vpack.c.b16 %v1270, %v1269
        %v1401 = vpack.c.b16 %v1272, %v1271
        %v1402 = vpack.c.b16 %v1274, %v1273
        %v1403 = vpack.c.b16 %v1276, %v1275
        %v1404 = vpack.c.b16 %v1278, %v1277
        %v1405 = vpack.c.b16 %v1280, %v1279
        %v1406 = vpack.c.b16 %v1282, %v1281
        %v1407 = vpack.c.b16 %v1284, %v1283
        %v1408 = vpack.c.b16 %v1286, %v1285
        %v1409 = vpack.c.b16 %v1288, %v1287
        %v1410 = vpack.c.b16 %v1290, %v1289
        %v1411 = vpack.c.b16 %v1292, %v1291
        %v1412 = vpack.c.b16 %v1294, %v1293
        %v1413 = vpack.c.b16 %v1296, %v1295
        %v1414 = vpack.c.b16 %v1298, %v1297
        %v1415 = vpack.c.b16 %v1300, %v1299
        %v1416 = vpack.c.b16 %v1302, %v1301
        %v1417 = vpack.c.b16 %v1304, %v1303
        %v1418 = vpack.c.b16 %v1306, %v1305
        %v1419 = vpack.c.b16 %v1308, %v1307
        %v1420 = vpack.c.b16 %v1310, %v1309
        %v1421 = vpack.c.b16 %v1312, %v1311
        %v1422 = vpack.c.b16 %v1314, %v1313
        %v1423 = vpack.c.b16 %v1316, %v1315
        %v1424 = vpack.c.b16 %v1318, %v1317
        %v1425 = vpack.c.b16 %v1320, %v1319
        %v1426 = vpack.c.b16 %v1322, %v1321
        %v1427 = vpack.c.b16 %v1324, %v1323
        %v1428 = vpack.c.b16 %v1326, %v1325
        %v1429 = vpack.c.b16 %v1328, %v1327
        %v1430 = vpack.c.b16 %v1330, %v1329
        %v1431 = vpack.c.b16 %v1332, %v1331
        %v1432 = vpack.c.b16 %v1334, %v1333
        %v1433 = vpack.c.b16 %v1336, %v1335
        %v1434 = vpack.c.b16 %v1338, %v1337
        %v1435 = vpack.c.b16 %v1340, %v1339
        %v1436 = vpack.c.b16 %v1342, %v1341
        %v1437 = vpack.c.b16 %v1344, %v1343
        %v1438 = vpack.c.b16 %v1346, %v1345
        %v1439 = vpack.c.b16 %v1348, %v1347
        %v1440 = vpack.c.b16 %v1350, %v1349
        %v1441 = vpack.c.b16 %v1352, %v1351
        %v1442 = vpack.c.b16 %v1354, %v1353
        %v1443 = vpack.c.b16 %v1356, %v1355
        %v1444 = vpack.c.b16 %v1358, %v1357
        %v1445 = vpack.c.b16 %v1360, %v1359
        %v1446 = vpack.c.b16 %v1362, %v1361
        %v1447 = vpack.c.b16 %v1364, %v1363
        %v1448 = vpack.c.b16 %v1366, %v1365
        %v1449 = vpack.c.b16 %v1368, %v1367
        %v1450 = vpack.c.b16 %v1370, %v1369
        %v1451 = vpack.c.b16 %v1372, %v1371
        %v1452 = vpack.c.b16 %v1374, %v1373
        %v1453 = vpack.c.b16 %v1376, %v1375
        %v1454 = vpack.c.b16 %v1378, %v1377
        %v1455 = vpack.c.b16 %v1380, %v1379
        %v1456 = vpack.c.b16 %v1382, %v1381
        %v1457 = vpack.c.b16 %v1384, %v1383
        %v1458 = vpack.c.b16 %v1386, %v1385
        %1531 = vmatprep.subr.bf16.mxu0 0
        %1532 = vmatpush1.bf16.msra.mxu0 %v1387
        %1533 = vmatprep.subr.bf16.mxu0 0
        %1534 = vmatpush1.bf16.msra.mxu0 %v1388
        %1535 = vmatprep.subr.bf16.mxu0 0
        %1536 = vmatpush1.bf16.msra.mxu0 %v1389
        %1537 = vmatprep.subr.bf16.mxu0 0
        %1538 = vmatpush1.bf16.msra.mxu0 %v1390
        %1539 = vmatprep.subr.bf16.mxu0 0
        %1540 = vmatpush1.bf16.msra.mxu0 %v1391
        %1541 = vmatprep.subr.bf16.mxu0 0
        %1542 = vmatpush1.bf16.msra.mxu0 %v1392
        %1543 = vmatprep.subr.bf16.mxu0 0
        %1544 = vmatpush1.bf16.msra.mxu0 %v1393
        %1545 = vmatprep.subr.bf16.mxu0 0
        %1546 = vmatpush1.bf16.msra.mxu0 %v1394
        %1547 = vmatprep.subr.bf16.mxu0 0
        %1548 = vmatpush1.bf16.msra.mxu0 %v1395
        %1549 = vmatprep.subr.bf16.mxu0 0
        %1550 = vmatpush1.bf16.msra.mxu0 %v1396
        %1551 = vmatprep.subr.bf16.mxu0 0
        %1552 = vmatpush1.bf16.msra.mxu0 %v1397
        %1553 = vmatprep.subr.bf16.mxu0 0
        %1554 = vmatpush1.bf16.msra.mxu0 %v1398
        %1555 = vmatprep.subr.bf16.mxu0 0
        %1556 = vmatpush1.bf16.msra.mxu0 %v1399
        %1557 = vmatprep.subr.bf16.mxu0 0
        %1558 = vmatpush1.bf16.msra.mxu0 %v1400
        %1559 = vmatprep.subr.bf16.mxu0 0
        %1560 = vmatpush1.bf16.msra.mxu0 %v1401
        %1561 = vmatprep.subr.bf16.mxu0 0
        %1562 = vmatpush1.bf16.msra.mxu0 %v1402
        %1563 = vmatprep.mubr.bf16.mxu0 %v767
        %1564 = vmatmul.mubr.bf16.gmra.mrb[0].mxu0 %v719
        %v1565 = vpop.f32.mrb[0].mxu0
        %v1566 = vadd.f32 0.0, %v1565
        %v1567 = vpop.f32.mrb[0].mxu0
        %v1568 = vpop.f32.mrb[0].mxu0
        %v1569 = vadd.f32 0.0, %v1568
        %v1570 = vpop.f32.mrb[0].mxu0
        %1571 = vmatprep.mubr.bf16.mxu0 %v779
        %1572 = vmatmul.mubr.bf16.gmra.mrb[0].mxu0 %v721
        %v1573 = vpop.f32.mrb[0].mxu0
        %v1574 = vadd.f32 0.0, %v1573
        %v1575 = vpop.f32.mrb[0].mxu0
        %v1576 = vpop.f32.mrb[0].mxu0
        %v1577 = vadd.f32 0.0, %v1576
        %v1578 = vpop.f32.mrb[0].mxu0
        %1579 = vmatprep.mubr.bf16.mxu0 %v791
        %1580 = vmatmul.mubr.bf16.gmra.mrb[0].mxu0 %v723
        %v1581 = vpop.f32.mrb[0].mxu0
        %v1582 = vadd.f32 0.0, %v1581
        %v1583 = vpop.f32.mrb[0].mxu0
        %v1584 = vpop.f32.mrb[0].mxu0
        %v1585 = vadd.f32 0.0, %v1584
        %v1586 = vpop.f32.mrb[0].mxu0
        %1587 = vmatprep.mubr.bf16.mxu0 %v803
        %1588 = vmatmul.mubr.bf16.gmra.mrb[0].mxu0 %v725
        %v1589 = vpop.f32.mrb[0].mxu0
        %v1590 = vadd.f32 0.0, %v1589
        %v1591 = vpop.f32.mrb[0].mxu0
        %v1592 = vpop.f32.mrb[0].mxu0
        %v1593 = vadd.f32 0.0, %v1592
        %v1594 = vpop.f32.mrb[0].mxu0
        %1595 = vmatprep.mubr.bf16.mxu0 %v815
        %1596 = vmatmul.mubr.bf16.gmra.mrb[0].mxu0 %v727
        %v1597 = vpop.f32.mrb[0].mxu0
        %v1598 = vadd.f32 0.0, %v1597
        %v1599 = vpop.f32.mrb[0].mxu0
        %v1600 = vpop.f32.mrb[0].mxu0
        %v1601 = vadd.f32 0.0, %v1600
        %v1602 = vpop.f32.mrb[0].mxu0
        %1603 = vmatprep.mubr.bf16.mxu0 %v827
        %1604 = vmatmul.mubr.bf16.gmra.mrb[0].mxu0 %v729
        %v1605 = vpop.f32.mrb[0].mxu0
        %v1606 = vadd.f32 0.0, %v1605
        %v1607 = vpop.f32.mrb[0].mxu0
        %v1608 = vpop.f32.mrb[0].mxu0
        %v1609 = vadd.f32 0.0, %v1608
        %v1610 = vpop.f32.mrb[0].mxu0
        %1611 = vmatprep.mubr.bf16.mxu0 %v839
        %1612 = vmatmul.mubr.bf16.gmra.mrb[0].mxu0 %v731
        %v1613 = vpop.f32.mrb[0].mxu0
        %v1614 = vadd.f32 0.0, %v1613
        %v1615 = vpop.f32.mrb[0].mxu0
        %v1616 = vpop.f32.mrb[0].mxu0
        %v1617 = vadd.f32 0.0, %v1616
        %v1618 = vpop.f32.mrb[0].mxu0
        %1619 = vmatprep.mubr.bf16.mxu0 %v851
        %1620 = vmatmul.mubr.bf16.gmra.mrb[0].mxu0 %v733
        %v1621 = vpop.f32.mrb[0].mxu0
        %v1622 = vadd.f32 0.0, %v1621
        %v1623 = vpop.f32.mrb[0].mxu0
        %v1624 = vpop.f32.mrb[0].mxu0
        %v1625 = vadd.f32 0.0, %v1624
        %v1626 = vpop.f32.mrb[0].mxu0
        %1627 = vmatprep.mubr.bf16.mxu0 %v863
        %1628 = vmatmul.mubr.bf16.gmra.mrb[0].mxu0 %v735
        %v1629 = vpop.f32.mrb[0].mxu0
        %v1630 = vadd.f32 0.0, %v1629
        %v1631 = vpop.f32.mrb[0].mxu0
        %v1632 = vpop.f32.mrb[0].mxu0
        %v1633 = vadd.f32 0.0, %v1632
        %v1634 = vpop.f32.mrb[0].mxu0
        %1635 = vmatprep.mubr.bf16.mxu0 %v875
        %1636 = vmatmul.mubr.bf16.gmra.mrb[0].mxu0 %v737
        %v1637 = vpop.f32.mrb[0].mxu0
        %v1638 = vadd.f32 0.0, %v1637
        %v1639 = vpop.f32.mrb[0].mxu0
        %v1640 = vpop.f32.mrb[0].mxu0
        %v1641 = vadd.f32 0.0, %v1640
        %v1642 = vpop.f32.mrb[0].mxu0
        %1643 = vmatprep.mubr.bf16.mxu0 %v887
        %1644 = vmatmul.mubr.bf16.gmra.mrb[0].mxu0 %v739
        %v1645 = vpop.f32.mrb[0].mxu0
        %v1646 = vadd.f32 0.0, %v1645
        %v1647 = vpop.f32.mrb[0].mxu0
        %v1648 = vpop.f32.mrb[0].mxu0
        %v1649 = vadd.f32 0.0, %v1648
        %v1650 = vpop.f32.mrb[0].mxu0
        %1651 = vmatprep.mubr.bf16.mxu0 %v899
        %1652 = vmatmul.mubr.bf16.gmra.mrb[0].mxu0 %v741
        %v1653 = vpop.f32.mrb[0].mxu0
        %v1654 = vadd.f32 0.0, %v1653
        %v1655 = vpop.f32.mrb[0].mxu0
        %v1656 = vpop.f32.mrb[0].mxu0
        %v1657 = vadd.f32 0.0, %v1656
        %v1658 = vpop.f32.mrb[0].mxu0
        %1659 = vmatprep.mubr.bf16.mxu0 %v911
        %1660 = vmatmul.mubr.bf16.gmra.mrb[0].mxu0 %v743
        %v1661 = vpop.f32.mrb[0].mxu0
        %v1662 = vadd.f32 0.0, %v1661
        %v1663 = vpop.f32.mrb[0].mxu0
        %v1664 = vpop.f32.mrb[0].mxu0
        %v1665 = vadd.f32 0.0, %v1664
        %v1666 = vpop.f32.mrb[0].mxu0
        %1667 = vmatprep.mubr.bf16.mxu0 %v923
        %1668 = vmatmul.mubr.bf16.gmra.mrb[0].mxu0 %v745
        %v1669 = vpop.f32.mrb[0].mxu0
        %v1670 = vadd.f32 0.0, %v1669
        %v1671 = vpop.f32.mrb[0].mxu0
        %v1672 = vpop.f32.mrb[0].mxu0
        %v1673 = vadd.f32 0.0, %v1672
        %v1674 = vpop.f32.mrb[0].mxu0
        %1675 = vmatprep.mubr.bf16.mxu0 %v935
        %1676 = vmatmul.mubr.bf16.gmra.mrb[0].mxu0 %v747
        %v1677 = vpop.f32.mrb[0].mxu0
        %v1678 = vadd.f32 0.0, %v1677
        %v1679 = vpop.f32.mrb[0].mxu0
        %v1680 = vpop.f32.mrb[0].mxu0
        %v1681 = vadd.f32 0.0, %v1680
        %v1682 = vpop.f32.mrb[0].mxu0
        %1683 = vmatprep.mubr.bf16.mxu0 %v947
        %1684 = vmatmul.mubr.bf16.gmra.mrb[0].mxu0 %v749
        %v1685 = vpop.f32.mrb[0].mxu0
        %v1686 = vadd.f32 0.0, %v1685
        %v1687 = vpop.f32.mrb[0].mxu0
        %v1688 = vpop.f32.mrb[0].mxu0
        %v1689 = vadd.f32 0.0, %v1688
        %v1690 = vpop.f32.mrb[0].mxu0
        %1691 = vdwg.mxu0
        %1692 = vmatprep.subr.bf16.mxu0 0
        %1693 = vmatpush1.bf16.msra.mxu0 %v1403
        %1694 = vmatprep.subr.bf16.mxu0 0
        %1695 = vmatpush1.bf16.msra.mxu0 %v1404
        %1696 = vmatprep.subr.bf16.mxu0 0
        %1697 = vmatpush1.bf16.msra.mxu0 %v1405
        %1698 = vmatprep.subr.bf16.mxu0 0
        %1699 = vmatpush1.bf16.msra.mxu0 %v1406
        %1700 = vmatprep.subr.bf16.mxu0 0
        %1701 = vmatpush1.bf16.msra.mxu0 %v1407
        %1702 = vmatprep.subr.bf16.mxu0 0
        %1703 = vmatpush1.bf16.msra.mxu0 %v1408
        %1704 = vmatprep.subr.bf16.mxu0 0
        %1705 = vmatpush1.bf16.msra.mxu0 %v1409
        %1706 = vmatprep.subr.bf16.mxu0 0
        %1707 = vmatpush1.bf16.msra.mxu0 %v1410
        %1708 = vmatprep.subr.bf16.mxu0 0
        %1709 = vmatpush1.bf16.msra.mxu0 %v1411
        %1710 = vmatprep.subr.bf16.mxu0 0
        %1711 = vmatpush1.bf16.msra.mxu0 %v1412
        %1712 = vmatprep.subr.bf16.mxu0 0
        %1713 = vmatpush1.bf16.msra.mxu0 %v1413
        %1714 = vmatprep.subr.bf16.mxu0 0
        %1715 = vmatpush1.bf16.msra.mxu0 %v1414
        %1716 = vmatprep.subr.bf16.mxu0 0
        %1717 = vmatpush1.bf16.msra.mxu0 %v1415
        %1718 = vmatprep.subr.bf16.mxu0 0
        %1719 = vmatpush1.bf16.msra.mxu0 %v1416
        %1720 = vmatprep.subr.bf16.mxu0 0
        %1721 = vmatpush1.bf16.msra.mxu0 %v1417
        %1722 = vmatprep.subr.bf16.mxu0 0
        %1723 = vmatpush1.bf16.msra.mxu0 %v1418
        %1724 = vmatprep.mubr.bf16.mxu0 %v721
        %1725 = vmatmul.mubr.bf16.gmra.mrb[0].mxu0 %v999
        %v1726 = vpop.f32.mrb[0].mxu0
        %v1727 = vadd.f32 %v1566, %v1726
        %v1728 = vpop.f32.mrb[0].mxu0
        %v1729 = vpop.f32.mrb[0].mxu0
        %v1730 = vadd.f32 %v1569, %v1729
        %v1731 = vpop.f32.mrb[0].mxu0
        %1732 = vmatprep.mubr.bf16.mxu0 %v723
        %1733 = vmatmul.mubr.bf16.gmra.mrb[0].mxu0 %v1002
        %v1734 = vpop.f32.mrb[0].mxu0
        %v1735 = vadd.f32 %v1574, %v1734
        %v1736 = vpop.f32.mrb[0].mxu0
        %v1737 = vpop.f32.mrb[0].mxu0
        %v1738 = vadd.f32 %v1577, %v1737
        %v1739 = vpop.f32.mrb[0].mxu0
        %1740 = vmatprep.mubr.bf16.mxu0 %v725
        %1741 = vmatmul.mubr.bf16.gmra.mrb[0].mxu0 %v1005
        %v1742 = vpop.f32.mrb[0].mxu0
        %v1743 = vadd.f32 %v1582, %v1742
        %v1744 = vpop.f32.mrb[0].mxu0
        %v1745 = vpop.f32.mrb[0].mxu0
        %v1746 = vadd.f32 %v1585, %v1745
        %v1747 = vpop.f32.mrb[0].mxu0
        %1748 = vmatprep.mubr.bf16.mxu0 %v727
        %1749 = vmatmul.mubr.bf16.gmra.mrb[0].mxu0 %v1008
        %v1750 = vpop.f32.mrb[0].mxu0
        %v1751 = vadd.f32 %v1590, %v1750
        %v1752 = vpop.f32.mrb[0].mxu0
        %v1753 = vpop.f32.mrb[0].mxu0
        %v1754 = vadd.f32 %v1593, %v1753
        %v1755 = vpop.f32.mrb[0].mxu0
        %1756 = vmatprep.mubr.bf16.mxu0 %v729
        %1757 = vmatmul.mubr.bf16.gmra.mrb[0].mxu0 %v1011
        %v1758 = vpop.f32.mrb[0].mxu0
        %v1759 = vadd.f32 %v1598, %v1758
        %v1760 = vpop.f32.mrb[0].mxu0
        %v1761 = vpop.f32.mrb[0].mxu0
        %v1762 = vadd.f32 %v1601, %v1761
        %v1763 = vpop.f32.mrb[0].mxu0
        %1764 = vmatprep.mubr.bf16.mxu0 %v731
        %1765 = vmatmul.mubr.bf16.gmra.mrb[0].mxu0 %v1014
        %v1766 = vpop.f32.mrb[0].mxu0
        %v1767 = vadd.f32 %v1606, %v1766
        %v1768 = vpop.f32.mrb[0].mxu0
        %v1769 = vpop.f32.mrb[0].mxu0
        %v1770 = vadd.f32 %v1609, %v1769
        %v1771 = vpop.f32.mrb[0].mxu0
        %1772 = vmatprep.mubr.bf16.mxu0 %v733
        %1773 = vmatmul.mubr.bf16.gmra.mrb[0].mxu0 %v1017
        %v1774 = vpop.f32.mrb[0].mxu0
        %v1775 = vadd.f32 %v1614, %v1774
        %v1776 = vpop.f32.mrb[0].mxu0
        %v1777 = vpop.f32.mrb[0].mxu0
        %v1778 = vadd.f32 %v1617, %v1777
        %v1779 = vpop.f32.mrb[0].mxu0
        %1780 = vmatprep.mubr.bf16.mxu0 %v735
        %1781 = vmatmul.mubr.bf16.gmra.mrb[0].mxu0 %v1020
        %v1782 = vpop.f32.mrb[0].mxu0
        %v1783 = vadd.f32 %v1622, %v1782
        %v1784 = vpop.f32.mrb[0].mxu0
        %v1785 = vpop.f32.mrb[0].mxu0
        %v1786 = vadd.f32 %v1625, %v1785
        %v1787 = vpop.f32.mrb[0].mxu0
        %1788 = vmatprep.mubr.bf16.mxu0 %v737
        %1789 = vmatmul.mubr.bf16.gmra.mrb[0].mxu0 %v1023
        %v1790 = vpop.f32.mrb[0].mxu0
        %v1791 = vadd.f32 %v1630, %v1790
        %v1792 = vpop.f32.mrb[0].mxu0
        %v1793 = vpop.f32.mrb[0].mxu0
        %v1794 = vadd.f32 %v1633, %v1793
        %v1795 = vpop.f32.mrb[0].mxu0
        %1796 = vmatprep.mubr.bf16.mxu0 %v739
        %1797 = vmatmul.mubr.bf16.gmra.mrb[0].mxu0 %v1026
        %v1798 = vpop.f32.mrb[0].mxu0
        %v1799 = vadd.f32 %v1638, %v1798
        %v1800 = vpop.f32.mrb[0].mxu0
        %v1801 = vpop.f32.mrb[0].mxu0
        %v1802 = vadd.f32 %v1641, %v1801
        %v1803 = vpop.f32.mrb[0].mxu0
        %1804 = vmatprep.mubr.bf16.mxu0 %v741
        %1805 = vmatmul.mubr.bf16.gmra.mrb[0].mxu0 %v1029
        %v1806 = vpop.f32.mrb[0].mxu0
        %v1807 = vadd.f32 %v1646, %v1806
        %v1808 = vpop.f32.mrb[0].mxu0
        %v1809 = vpop.f32.mrb[0].mxu0
        %v1810 = vadd.f32 %v1649, %v1809
        %v1811 = vpop.f32.mrb[0].mxu0
        %1812 = vmatprep.mubr.bf16.mxu0 %v743
        %1813 = vmatmul.mubr.bf16.gmra.mrb[0].mxu0 %v1032
        %v1814 = vpop.f32.mrb[0].mxu0
        %v1815 = vadd.f32 %v1654, %v1814
        %v1816 = vpop.f32.mrb[0].mxu0
        %v1817 = vpop.f32.mrb[0].mxu0
        %v1818 = vadd.f32 %v1657, %v1817
        %v1819 = vpop.f32.mrb[0].mxu0
        %1820 = vmatprep.mubr.bf16.mxu0 %v745
        %1821 = vmatmul.mubr.bf16.gmra.mrb[0].mxu0 %v1035
        %v1822 = vpop.f32.mrb[0].mxu0
        %v1823 = vadd.f32 %v1662, %v1822
        %v1824 = vpop.f32.mrb[0].mxu0
        %v1825 = vpop.f32.mrb[0].mxu0
        %v1826 = vadd.f32 %v1665, %v1825
        %v1827 = vpop.f32.mrb[0].mxu0
        %1828 = vmatprep.mubr.bf16.mxu0 %v747
        %1829 = vmatmul.mubr.bf16.gmra.mrb[0].mxu0 %v1038
        %v1830 = vpop.f32.mrb[0].mxu0
        %v1831 = vadd.f32 %v1670, %v1830
        %v1832 = vpop.f32.mrb[0].mxu0
        %v1833 = vpop.f32.mrb[0].mxu0
        %v1834 = vadd.f32 %v1673, %v1833
        %v1835 = vpop.f32.mrb[0].mxu0
        %1836 = vmatprep.mubr.bf16.mxu0 %v749
        %1837 = vmatmul.mubr.bf16.gmra.mrb[0].mxu0 %v1041
        %v1838 = vpop.f32.mrb[0].mxu0
        %v1839 = vadd.f32 %v1678, %v1838
        %v1840 = vpop.f32.mrb[0].mxu0
        %v1841 = vpop.f32.mrb[0].mxu0
        %v1842 = vadd.f32 %v1681, %v1841
        %v1843 = vpop.f32.mrb[0].mxu0
        %1844 = vmatprep.mubr.bf16.mxu0 %v751
        %1845 = vmatmul.mubr.bf16.gmra.mrb[0].mxu0 %v1044
        %v1846 = vpop.f32.mrb[0].mxu0
        %v1847 = vadd.f32 %v1686, %v1846
        %v1848 = vpop.f32.mrb[0].mxu0
        %v1849 = vpop.f32.mrb[0].mxu0
        %v1850 = vadd.f32 %v1689, %v1849
        %v1851 = vpop.f32.mrb[0].mxu0
        %1852 = vdwg.mxu0
        %1853 = vmatprep.subr.bf16.mxu0 0
        %1854 = vmatpush1.bf16.msra.mxu0 %v1419
        %1855 = vmatprep.subr.bf16.mxu0 0
        %1856 = vmatpush1.bf16.msra.mxu0 %v1420
        %1857 = vmatprep.subr.bf16.mxu0 0
        %1858 = vmatpush1.bf16.msra.mxu0 %v1421
        %1859 = vmatprep.subr.bf16.mxu0 0
        %1860 = vmatpush1.bf16.msra.mxu0 %v1422
        %1861 = vmatprep.subr.bf16.mxu0 0
        %1862 = vmatpush1.bf16.msra.mxu0 %v1423
        %1863 = vmatprep.subr.bf16.mxu0 0
        %1864 = vmatpush1.bf16.msra.mxu0 %v1424
        %1865 = vmatprep.subr.bf16.mxu0 0
        %1866 = vmatpush1.bf16.msra.mxu0 %v1425
        %1867 = vmatprep.subr.bf16.mxu0 0
        %1868 = vmatpush1.bf16.msra.mxu0 %v1426
        %1869 = vmatprep.subr.bf16.mxu0 0
        %1870 = vmatpush1.bf16.msra.mxu0 %v1427
        %1871 = vmatprep.subr.bf16.mxu0 0
        %1872 = vmatpush1.bf16.msra.mxu0 %v1428
        %1873 = vmatprep.subr.bf16.mxu0 0
        %1874 = vmatpush1.bf16.msra.mxu0 %v1429
        %1875 = vmatprep.subr.bf16.mxu0 0
        %1876 = vmatpush1.bf16.msra.mxu0 %v1430
        %1877 = vmatprep.subr.bf16.mxu0 0
        %1878 = vmatpush1.bf16.msra.mxu0 %v1431
        %1879 = vmatprep.subr.bf16.mxu0 0
        %1880 = vmatpush1.bf16.msra.mxu0 %v1432
        %1881 = vmatprep.subr.bf16.mxu0 0
        %1882 = vmatpush1.bf16.msra.mxu0 %v1433
        %1883 = vmatprep.subr.bf16.mxu0 0
        %1884 = vmatpush1.bf16.msra.mxu0 %v1434
        %1885 = vmatprep.mubr.bf16.mxu0 %v1002
        %1886 = vmatmul.mubr.bf16.gmra.mrb[0].mxu0 %v779
        %v1887 = vpop.f32.mrb[0].mxu0
        %v1888 = vadd.f32 %v1727, %v1887
        %v1889 = vpop.f32.mrb[0].mxu0
        %v1890 = vpop.f32.mrb[0].mxu0
        %v1891 = vadd.f32 %v1730, %v1890
        %v1892 = vpop.f32.mrb[0].mxu0
        %1893 = vmatprep.mubr.bf16.mxu0 %v1005
        %1894 = vmatmul.mubr.bf16.gmra.mrb[0].mxu0 %v791
        %v1895 = vpop.f32.mrb[0].mxu0
        %v1896 = vadd.f32 %v1735, %v1895
        %v1897 = vpop.f32.mrb[0].mxu0
        %v1898 = vpop.f32.mrb[0].mxu0
        %v1899 = vadd.f32 %v1738, %v1898
        %v1900 = vpop.f32.mrb[0].mxu0
        %1901 = vmatprep.mubr.bf16.mxu0 %v1008
        %1902 = vmatmul.mubr.bf16.gmra.mrb[0].mxu0 %v803
        %v1903 = vpop.f32.mrb[0].mxu0
        %v1904 = vadd.f32 %v1743, %v1903
        %v1905 = vpop.f32.mrb[0].mxu0
        %v1906 = vpop.f32.mrb[0].mxu0
        %v1907 = vadd.f32 %v1746, %v1906
        %v1908 = vpop.f32.mrb[0].mxu0
        %1909 = vmatprep.mubr.bf16.mxu0 %v1011
        %1910 = vmatmul.mubr.bf16.gmra.mrb[0].mxu0 %v815
        %v1911 = vpop.f32.mrb[0].mxu0
        %v1912 = vadd.f32 %v1751, %v1911
        %v1913 = vpop.f32.mrb[0].mxu0
        %v1914 = vpop.f32.mrb[0].mxu0
        %v1915 = vadd.f32 %v1754, %v1914
        %v1916 = vpop.f32.mrb[0].mxu0
        %1917 = vmatprep.mubr.bf16.mxu0 %v1014
        %1918 = vmatmul.mubr.bf16.gmra.mrb[0].mxu0 %v827
        %v1919 = vpop.f32.mrb[0].mxu0
        %v1920 = vadd.f32 %v1759, %v1919
        %v1921 = vpop.f32.mrb[0].mxu0
        %v1922 = vpop.f32.mrb[0].mxu0
        %v1923 = vadd.f32 %v1762, %v1922
        %v1924 = vpop.f32.mrb[0].mxu0
        %1925 = vmatprep.mubr.bf16.mxu0 %v1017
        %1926 = vmatmul.mubr.bf16.gmra.mrb[0].mxu0 %v839
        %v1927 = vpop.f32.mrb[0].mxu0
        %v1928 = vadd.f32 %v1767, %v1927
        %v1929 = vpop.f32.mrb[0].mxu0
        %v1930 = vpop.f32.mrb[0].mxu0
        %v1931 = vadd.f32 %v1770, %v1930
        %v1932 = vpop.f32.mrb[0].mxu0
        %1933 = vmatprep.mubr.bf16.mxu0 %v1020
        %1934 = vmatmul.mubr.bf16.gmra.mrb[0].mxu0 %v851
        %v1935 = vpop.f32.mrb[0].mxu0
        %v1936 = vadd.f32 %v1775, %v1935
        %v1937 = vpop.f32.mrb[0].mxu0
        %v1938 = vpop.f32.mrb[0].mxu0
        %v1939 = vadd.f32 %v1778, %v1938
        %v1940 = vpop.f32.mrb[0].mxu0
        %1941 = vmatprep.mubr.bf16.mxu0 %v1023
        %1942 = vmatmul.mubr.bf16.gmra.mrb[0].mxu0 %v863
        %v1943 = vpop.f32.mrb[0].mxu0
        %v1944 = vadd.f32 %v1783, %v1943
        %v1945 = vpop.f32.mrb[0].mxu0
        %v1946 = vpop.f32.mrb[0].mxu0
        %v1947 = vadd.f32 %v1786, %v1946
        %v1948 = vpop.f32.mrb[0].mxu0
        %1949 = vmatprep.mubr.bf16.mxu0 %v1026
        %1950 = vmatmul.mubr.bf16.gmra.mrb[0].mxu0 %v875
        %v1951 = vpop.f32.mrb[0].mxu0
        %v1952 = vadd.f32 %v1791, %v1951
        %v1953 = vpop.f32.mrb[0].mxu0
        %v1954 = vpop.f32.mrb[0].mxu0
        %v1955 = vadd.f32 %v1794, %v1954
        %v1956 = vpop.f32.mrb[0].mxu0
        %1957 = vmatprep.mubr.bf16.mxu0 %v1029
        %1958 = vmatmul.mubr.bf16.gmra.mrb[0].mxu0 %v887
        %v1959 = vpop.f32.mrb[0].mxu0
        %v1960 = vadd.f32 %v1799, %v1959
        %v1961 = vpop.f32.mrb[0].mxu0
        %v1962 = vpop.f32.mrb[0].mxu0
        %v1963 = vadd.f32 %v1802, %v1962
        %v1964 = vpop.f32.mrb[0].mxu0
        %1965 = vmatprep.mubr.bf16.mxu0 %v1032
        %1966 = vmatmul.mubr.bf16.gmra.mrb[0].mxu0 %v899
        %v1967 = vpop.f32.mrb[0].mxu0
        %v1968 = vadd.f32 %v1807, %v1967
        %v1969 = vpop.f32.mrb[0].mxu0
        %v1970 = vpop.f32.mrb[0].mxu0
        %v1971 = vadd.f32 %v1810, %v1970
        %v1972 = vpop.f32.mrb[0].mxu0
        %1973 = vmatprep.mubr.bf16.mxu0 %v1035
        %1974 = vmatmul.mubr.bf16.gmra.mrb[0].mxu0 %v911
        %v1975 = vpop.f32.mrb[0].mxu0
        %v1976 = vadd.f32 %v1815, %v1975
        %v1977 = vpop.f32.mrb[0].mxu0
        %v1978 = vpop.f32.mrb[0].mxu0
        %v1979 = vadd.f32 %v1818, %v1978
        %v1980 = vpop.f32.mrb[0].mxu0
        %1981 = vmatprep.mubr.bf16.mxu0 %v1038
        %1982 = vmatmul.mubr.bf16.gmra.mrb[0].mxu0 %v923
        %v1983 = vpop.f32.mrb[0].mxu0
        %v1984 = vadd.f32 %v1823, %v1983
        %v1985 = vpop.f32.mrb[0].mxu0
        %v1986 = vpop.f32.mrb[0].mxu0
        %v1987 = vadd.f32 %v1826, %v1986
        %v1988 = vpop.f32.mrb[0].mxu0
        %1989 = vmatprep.mubr.bf16.mxu0 %v1041
        %1990 = vmatmul.mubr.bf16.gmra.mrb[0].mxu0 %v935
        %v1991 = vpop.f32.mrb[0].mxu0
        %v1992 = vadd.f32 %v1831, %v1991
        %v1993 = vpop.f32.mrb[0].mxu0
        %v1994 = vpop.f32.mrb[0].mxu0
        %v1995 = vadd.f32 %v1834, %v1994
        %v1996 = vpop.f32.mrb[0].mxu0
        %1997 = vmatprep.mubr.bf16.mxu0 %v1044
        %1998 = vmatmul.mubr.bf16.gmra.mrb[0].mxu0 %v947
        %v1999 = vpop.f32.mrb[0].mxu0
        %v2000 = vadd.f32 %v1839, %v1999
        %v2001 = vpop.f32.mrb[0].mxu0
        %v2002 = vpop.f32.mrb[0].mxu0
        %v2003 = vadd.f32 %v1842, %v2002
        %v2004 = vpop.f32.mrb[0].mxu0
        %2005 = vmatprep.mubr.bf16.mxu0 %v1078
        %2006 = vmatmul.mubr.bf16.gmra.mrb[0].mxu0 %v1072
        %v2007 = vpop.f32.mrb[0].mxu0
        %v2008 = vadd.f32 %v1847, %v2007
        %v2009 = vpop.f32.mrb[0].mxu0
        %v2010 = vpop.f32.mrb[0].mxu0
        %v2011 = vadd.f32 %v1850, %v2010
        %v2012 = vpop.f32.mrb[0].mxu0
        %2013 = vdwg.mxu0
        %2014 = vmatprep.subr.bf16.mxu0 0
        %2015 = vmatpush1.bf16.msra.mxu0 %v1435
        %2016 = vmatprep.subr.bf16.mxu0 0
        %2017 = vmatpush1.bf16.msra.mxu0 %v1436
        %2018 = vmatprep.subr.bf16.mxu0 0
        %2019 = vmatpush1.bf16.msra.mxu0 %v1437
        %2020 = vmatprep.subr.bf16.mxu0 0
        %2021 = vmatpush1.bf16.msra.mxu0 %v1438
        %2022 = vmatprep.subr.bf16.mxu0 0
        %2023 = vmatpush1.bf16.msra.mxu0 %v1439
        %2024 = vmatprep.subr.bf16.mxu0 0
        %2025 = vmatpush1.bf16.msra.mxu0 %v1440
        %2026 = vmatprep.subr.bf16.mxu0 0
        %2027 = vmatpush1.bf16.msra.mxu0 %v1441
        %2028 = vmatprep.subr.bf16.mxu0 0
        %2029 = vmatpush1.bf16.msra.mxu0 %v1442
        %2030 = vmatprep.subr.bf16.mxu0 0
        %2031 = vmatpush1.bf16.msra.mxu0 %v1443
        %2032 = vmatprep.subr.bf16.mxu0 0
        %2033 = vmatpush1.bf16.msra.mxu0 %v1444
        %2034 = vmatprep.subr.bf16.mxu0 0
        %2035 = vmatpush1.bf16.msra.mxu0 %v1445
        %2036 = vmatprep.subr.bf16.mxu0 0
        %2037 = vmatpush1.bf16.msra.mxu0 %v1446
        %2038 = vmatprep.subr.bf16.mxu0 0
        %2039 = vmatpush1.bf16.msra.mxu0 %v1447
        %2040 = vmatprep.subr.bf16.mxu0 0
        %2041 = vmatpush1.bf16.msra.mxu0 %v1448
        %2042 = vmatprep.subr.bf16.mxu0 0
        %2043 = vmatpush1.bf16.msra.mxu0 %v1449
        %2044 = vmatprep.subr.bf16.mxu0 0
        %2045 = vmatpush1.bf16.msra.mxu0 %v1450
        %2046 = vmatprep.mubr.bf16.mxu0 %v791
        %2047 = vmatmul.mubr.bf16.gmra.mrb[0].mxu0 %v723
        %v2048 = vpop.f32.mrb[0].mxu0
        %v2049 = vadd.f32 %v1888, %v2048
        %v2050 = vpop.f32.mrb[0].mxu0
        %v2051 = vpop.f32.mrb[0].mxu0
        %v2052 = vadd.f32 %v1891, %v2051
        %v2053 = vpop.f32.mrb[0].mxu0
        %2054 = vmatprep.mubr.bf16.mxu0 %v803
        %2055 = vmatmul.mubr.bf16.gmra.mrb[0].mxu0 %v725
        %v2056 = vpop.f32.mrb[0].mxu0
        %v2057 = vadd.f32 %v1896, %v2056
        %v2058 = vpop.f32.mrb[0].mxu0
        %v2059 = vpop.f32.mrb[0].mxu0
        %v2060 = vadd.f32 %v1899, %v2059
        %v2061 = vpop.f32.mrb[0].mxu0
        %2062 = vmatprep.mubr.bf16.mxu0 %v815
        %2063 = vmatmul.mubr.bf16.gmra.mrb[0].mxu0 %v727
        %v2064 = vpop.f32.mrb[0].mxu0
        %v2065 = vadd.f32 %v1904, %v2064
        %v2066 = vpop.f32.mrb[0].mxu0
        %v2067 = vpop.f32.mrb[0].mxu0
        %v2068 = vadd.f32 %v1907, %v2067
        %v2069 = vpop.f32.mrb[0].mxu0
        %2070 = vmatprep.mubr.bf16.mxu0 %v827
        %2071 = vmatmul.mubr.bf16.gmra.mrb[0].mxu0 %v729
        %v2072 = vpop.f32.mrb[0].mxu0
        %v2073 = vadd.f32 %v1912, %v2072
        %v2074 = vpop.f32.mrb[0].mxu0
        %v2075 = vpop.f32.mrb[0].mxu0
        %v2076 = vadd.f32 %v1915, %v2075
        %v2077 = vpop.f32.mrb[0].mxu0
        %2078 = vmatprep.mubr.bf16.mxu0 %v839
        %2079 = vmatmul.mubr.bf16.gmra.mrb[0].mxu0 %v731
        %v2080 = vpop.f32.mrb[0].mxu0
        %v2081 = vadd.f32 %v1920, %v2080
        %v2082 = vpop.f32.mrb[0].mxu0
        %v2083 = vpop.f32.mrb[0].mxu0
        %v2084 = vadd.f32 %v1923, %v2083
        %v2085 = vpop.f32.mrb[0].mxu0
        %2086 = vmatprep.mubr.bf16.mxu0 %v851
        %2087 = vmatmul.mubr.bf16.gmra.mrb[0].mxu0 %v733
        %v2088 = vpop.f32.mrb[0].mxu0
        %v2089 = vadd.f32 %v1928, %v2088
        %v2090 = vpop.f32.mrb[0].mxu0
        %v2091 = vpop.f32.mrb[0].mxu0
        %v2092 = vadd.f32 %v1931, %v2091
        %v2093 = vpop.f32.mrb[0].mxu0
        %2094 = vmatprep.mubr.bf16.mxu0 %v863
        %2095 = vmatmul.mubr.bf16.gmra.mrb[0].mxu0 %v735
        %v2096 = vpop.f32.mrb[0].mxu0
        %v2097 = vadd.f32 %v1936, %v2096
        %v2098 = vpop.f32.mrb[0].mxu0
        %v2099 = vpop.f32.mrb[0].mxu0
        %v2100 = vadd.f32 %v1939, %v2099
        %v2101 = vpop.f32.mrb[0].mxu0
        %2102 = vmatprep.mubr.bf16.mxu0 %v875
        %2103 = vmatmul.mubr.bf16.gmra.mrb[0].mxu0 %v737
        %v2104 = vpop.f32.mrb[0].mxu0
        %v2105 = vadd.f32 %v1944, %v2104
        %v2106 = vpop.f32.mrb[0].mxu0
        %v2107 = vpop.f32.mrb[0].mxu0
        %v2108 = vadd.f32 %v1947, %v2107
        %v2109 = vpop.f32.mrb[0].mxu0
        %2110 = vmatprep.mubr.bf16.mxu0 %v887
        %2111 = vmatmul.mubr.bf16.gmra.mrb[0].mxu0 %v739
        %v2112 = vpop.f32.mrb[0].mxu0
        %v2113 = vadd.f32 %v1952, %v2112
        %v2114 = vpop.f32.mrb[0].mxu0
        %v2115 = vpop.f32.mrb[0].mxu0
        %v2116 = vadd.f32 %v1955, %v2115
        %v2117 = vpop.f32.mrb[0].mxu0
        %2118 = vmatprep.mubr.bf16.mxu0 %v899
        %2119 = vmatmul.mubr.bf16.gmra.mrb[0].mxu0 %v741
        %v2120 = vpop.f32.mrb[0].mxu0
        %v2121 = vadd.f32 %v1960, %v2120
        %v2122 = vpop.f32.mrb[0].mxu0
        %v2123 = vpop.f32.mrb[0].mxu0
        %v2124 = vadd.f32 %v1963, %v2123
        %v2125 = vpop.f32.mrb[0].mxu0
        %2126 = vmatprep.mubr.bf16.mxu0 %v911
        %2127 = vmatmul.mubr.bf16.gmra.mrb[0].mxu0 %v743
        %v2128 = vpop.f32.mrb[0].mxu0
        %v2129 = vadd.f32 %v1968, %v2128
        %v2130 = vpop.f32.mrb[0].mxu0
        %v2131 = vpop.f32.mrb[0].mxu0
        %v2132 = vadd.f32 %v1971, %v2131
        %v2133 = vpop.f32.mrb[0].mxu0
        %2134 = vmatprep.mubr.bf16.mxu0 %v923
        %2135 = vmatmul.mubr.bf16.gmra.mrb[0].mxu0 %v745
        %v2136 = vpop.f32.mrb[0].mxu0
        %v2137 = vadd.f32 %v1976, %v2136
        %v2138 = vpop.f32.mrb[0].mxu0
        %v2139 = vpop.f32.mrb[0].mxu0
        %v2140 = vadd.f32 %v1979, %v2139
        %v2141 = vpop.f32.mrb[0].mxu0
        %2142 = vmatprep.mubr.bf16.mxu0 %v935
        %2143 = vmatmul.mubr.bf16.gmra.mrb[0].mxu0 %v747
        %v2144 = vpop.f32.mrb[0].mxu0
        %v2145 = vadd.f32 %v1984, %v2144
        %v2146 = vpop.f32.mrb[0].mxu0
        %v2147 = vpop.f32.mrb[0].mxu0
        %v2148 = vadd.f32 %v1987, %v2147
        %v2149 = vpop.f32.mrb[0].mxu0
        %2150 = vmatprep.mubr.bf16.mxu0 %v947
        %2151 = vmatmul.mubr.bf16.gmra.mrb[0].mxu0 %v749
        %v2152 = vpop.f32.mrb[0].mxu0
        %v2153 = vadd.f32 %v1992, %v2152
        %v2154 = vpop.f32.mrb[0].mxu0
        %v2155 = vpop.f32.mrb[0].mxu0
        %v2156 = vadd.f32 %v1995, %v2155
        %v2157 = vpop.f32.mrb[0].mxu0
        %2158 = vmatprep.mubr.bf16.mxu0 %v1072
        %2159 = vmatmul.mubr.bf16.gmra.mrb[0].mxu0 %v751
        %v2160 = vpop.f32.mrb[0].mxu0
        %v2161 = vadd.f32 %v2000, %v2160
        %v2162 = vpop.f32.mrb[0].mxu0
        %v2163 = vpop.f32.mrb[0].mxu0
        %v2164 = vadd.f32 %v2003, %v2163
        %v2165 = vpop.f32.mrb[0].mxu0
        %2166 = vmatprep.mubr.bf16.mxu0 %v1091
        %2167 = vmatmul.mubr.bf16.gmra.mrb[0].mxu0 %v753
        %v2168 = vpop.f32.mrb[0].mxu0
        %v2169 = vadd.f32 %v2008, %v2168
        %v2170 = vpop.f32.mrb[0].mxu0
        %v2171 = vpop.f32.mrb[0].mxu0
        %v2172 = vadd.f32 %v2011, %v2171
        %v2173 = vpop.f32.mrb[0].mxu0
        %2174 = vdwg.mxu0
        %2175 = vmatprep.subr.bf16.mxu0 0
        %2176 = vmatpush1.bf16.msra.mxu0 %v1451
        %2177 = vmatprep.subr.bf16.mxu0 0
        %2178 = vmatpush1.bf16.msra.mxu0 %v1452
        %2179 = vmatprep.subr.bf16.mxu0 0
        %2180 = vmatpush1.bf16.msra.mxu0 %v1453
        %2181 = vmatprep.subr.bf16.mxu0 0
        %2182 = vmatpush1.bf16.msra.mxu0 %v1454
        %2183 = vmatprep.subr.bf16.mxu0 0
        %2184 = vmatpush1.bf16.msra.mxu0 %v1455
        %2185 = vmatprep.subr.bf16.mxu0 0
        %2186 = vmatpush1.bf16.msra.mxu0 %v1456
        %2187 = vmatprep.subr.bf16.mxu0 0
        %2188 = vmatpush1.bf16.msra.mxu0 %v1457
        %2189 = vmatprep.subr.bf16.mxu0 0
        %2190 = vmatpush1.bf16.msra.mxu0 %v1458
        %2191 = vmatprep.subr.bf16.mxu0 0
        %2192 = vmatpush1.bf16.msra.mxu0 0
        %2193 = vmatprep.subr.bf16.mxu0 0
        %2194 = vmatpush1.bf16.msra.mxu0 0
        %2195 = vmatprep.subr.bf16.mxu0 0
        %2196 = vmatpush1.bf16.msra.mxu0 0
        %2197 = vmatprep.subr.bf16.mxu0 0
        %2198 = vmatpush1.bf16.msra.mxu0 0
        %2199 = vmatprep.subr.bf16.mxu0 0
        %2200 = vmatpush1.bf16.msra.mxu0 0
        %2201 = vmatprep.subr.bf16.mxu0 0
        %2202 = vmatpush1.bf16.msra.mxu0 0
        %2203 = vmatprep.subr.bf16.mxu0 0
        %2204 = vmatpush1.bf16.msra.mxu0 0
        %2205 = vmatprep.subr.bf16.mxu0 0
        %2206 = vmatpush1.bf16.msra.mxu0 0
        %2207 = vmatprep.mubr.bf16.mxu0 0
        %2208 = vmatmul.mubr.bf16.gmra.mrb[0].mxu0 %v1005
        %v2209 = vpop.f32.mrb[0].mxu0
        %v2210 = vadd.f32 %v2049, %v2209
        %v2211 = vpop.f32.mrb[0].mxu0
        %v2212 = vpop.f32.mrb[0].mxu0
        %v2213 = vadd.f32 %v2052, %v2212
        %v2214 = vpop.f32.mrb[0].mxu0
        %2215 = vmatprep.mubr.bf16.mxu0 0
        %2216 = vmatmul.mubr.bf16.gmra.mrb[0].mxu0 %v1008
        %v2217 = vpop.f32.mrb[0].mxu0
        %v2218 = vadd.f32 %v2057, %v2217
        %v2219 = vpop.f32.mrb[0].mxu0
        %v2220 = vpop.f32.mrb[0].mxu0
        %v2221 = vadd.f32 %v2060, %v2220
        %v2222 = vpop.f32.mrb[0].mxu0
        %2223 = vmatprep.mubr.bf16.mxu0 0
        %2224 = vmatmul.mubr.bf16.gmra.mrb[0].mxu0 %v1011
        %v2225 = vpop.f32.mrb[0].mxu0
        %v2226 = vadd.f32 %v2065, %v2225
        %v2227 = vpop.f32.mrb[0].mxu0
        %v2228 = vpop.f32.mrb[0].mxu0
        %v2229 = vadd.f32 %v2068, %v2228
        %v2230 = vpop.f32.mrb[0].mxu0
        %2231 = vmatprep.mubr.bf16.mxu0 0
        %2232 = vmatmul.mubr.bf16.gmra.mrb[0].mxu0 %v1014
        %v2233 = vpop.f32.mrb[0].mxu0
        %v2234 = vadd.f32 %v2073, %v2233
        %v2235 = vpop.f32.mrb[0].mxu0
        %v2236 = vpop.f32.mrb[0].mxu0
        %v2237 = vadd.f32 %v2076, %v2236
        %v2238 = vpop.f32.mrb[0].mxu0
        %2239 = vmatprep.mubr.bf16.mxu0 0
        %2240 = vmatmul.mubr.bf16.gmra.mrb[0].mxu0 %v1017
        %v2241 = vpop.f32.mrb[0].mxu0
        %v2242 = vadd.f32 %v2081, %v2241
        %v2243 = vpop.f32.mrb[0].mxu0
        %v2244 = vpop.f32.mrb[0].mxu0
        %v2245 = vadd.f32 %v2084, %v2244
        %v2246 = vpop.f32.mrb[0].mxu0
        %2247 = vmatprep.mubr.bf16.mxu0 0
        %2248 = vmatmul.mubr.bf16.gmra.mrb[0].mxu0 %v1020
        %v2249 = vpop.f32.mrb[0].mxu0
        %v2250 = vadd.f32 %v2089, %v2249
        %v2251 = vpop.f32.mrb[0].mxu0
        %v2252 = vpop.f32.mrb[0].mxu0
        %v2253 = vadd.f32 %v2092, %v2252
        %v2254 = vpop.f32.mrb[0].mxu0
        %2255 = vmatprep.mubr.bf16.mxu0 0
        %2256 = vmatmul.mubr.bf16.gmra.mrb[0].mxu0 %v1023
        %v2257 = vpop.f32.mrb[0].mxu0
        %v2258 = vadd.f32 %v2097, %v2257
        %v2259 = vpop.f32.mrb[0].mxu0
        %v2260 = vpop.f32.mrb[0].mxu0
        %v2261 = vadd.f32 %v2100, %v2260
        %v2262 = vpop.f32.mrb[0].mxu0
        %2263 = vmatprep.mubr.bf16.mxu0 0
        %2264 = vmatmul.mubr.bf16.gmra.mrb[0].mxu0 %v1026
        %v2265 = vpop.f32.mrb[0].mxu0
        %v2266 = vadd.f32 %v2105, %v2265
        %v2267 = vpop.f32.mrb[0].mxu0
        %v2268 = vpop.f32.mrb[0].mxu0
        %v2269 = vadd.f32 %v2108, %v2268
        %v2270 = vpop.f32.mrb[0].mxu0
        %2271 = vmatprep.mubr.bf16.mxu0 0
        %2272 = vmatmul.mubr.bf16.gmra.mrb[0].mxu0 %v1029
        %v2273 = vpop.f32.mrb[0].mxu0
        %v2274 = vadd.f32 %v2113, %v2273
        %v2275 = vpop.f32.mrb[0].mxu0
        %v2276 = vpop.f32.mrb[0].mxu0
        %v2277 = vadd.f32 %v2116, %v2276
        %v2278 = vpop.f32.mrb[0].mxu0
        %2279 = vmatprep.mubr.bf16.mxu0 0
        %2280 = vmatmul.mubr.bf16.gmra.mrb[0].mxu0 %v1032
        %v2281 = vpop.f32.mrb[0].mxu0
        %v2282 = vadd.f32 %v2121, %v2281
        %v2283 = vpop.f32.mrb[0].mxu0
        %v2284 = vpop.f32.mrb[0].mxu0
        %v2285 = vadd.f32 %v2124, %v2284
        %v2286 = vpop.f32.mrb[0].mxu0
        %2287 = vmatprep.mubr.bf16.mxu0 0
        %2288 = vmatmul.mubr.bf16.gmra.mrb[0].mxu0 %v1035
        %v2289 = vpop.f32.mrb[0].mxu0
        %v2290 = vadd.f32 %v2129, %v2289
        %v2291 = vpop.f32.mrb[0].mxu0
        %v2292 = vpop.f32.mrb[0].mxu0
        %v2293 = vadd.f32 %v2132, %v2292
        %v2294 = vpop.f32.mrb[0].mxu0
        %2295 = vmatprep.mubr.bf16.mxu0 0
        %2296 = vmatmul.mubr.bf16.gmra.mrb[0].mxu0 %v1038
        %v2297 = vpop.f32.mrb[0].mxu0
        %v2298 = vadd.f32 %v2137, %v2297
        %v2299 = vpop.f32.mrb[0].mxu0
        %v2300 = vpop.f32.mrb[0].mxu0
        %v2301 = vadd.f32 %v2140, %v2300
        %v2302 = vpop.f32.mrb[0].mxu0
        %2303 = vmatprep.mubr.bf16.mxu0 0
        %2304 = vmatmul.mubr.bf16.gmra.mrb[0].mxu0 %v1041
        %v2305 = vpop.f32.mrb[0].mxu0
        %v2306 = vadd.f32 %v2145, %v2305
        %v2307 = vpop.f32.mrb[0].mxu0
        %v2308 = vpop.f32.mrb[0].mxu0
        %v2309 = vadd.f32 %v2148, %v2308
        %v2310 = vpop.f32.mrb[0].mxu0
        %2311 = vmatprep.mubr.bf16.mxu0 0
        %2312 = vmatmul.mubr.bf16.gmra.mrb[0].mxu0 %v1044
        %v2313 = vpop.f32.mrb[0].mxu0
        %v2314 = vadd.f32 %v2153, %v2313
        %v2315 = vpop.f32.mrb[0].mxu0
        %v2316 = vpop.f32.mrb[0].mxu0
        %v2317 = vadd.f32 %v2156, %v2316
        %v2318 = vpop.f32.mrb[0].mxu0
        %2319 = vmatprep.mubr.bf16.mxu0 0
        %2320 = vmatmul.mubr.bf16.gmra.mrb[0].mxu0 %v1078
        %v2321 = vpop.f32.mrb[0].mxu0
        %v2322 = vadd.f32 %v2161, %v2321
        %v2323 = vpop.f32.mrb[0].mxu0
        %v2324 = vpop.f32.mrb[0].mxu0
        %v2325 = vadd.f32 %v2164, %v2324
        %v2326 = vpop.f32.mrb[0].mxu0
        %2327 = vmatprep.mubr.bf16.mxu0 0
        %2328 = vmatmul.mubr.bf16.gmra.mrb[0].mxu0 %v1097
        %v2329 = vpop.f32.mrb[0].mxu0
        %v2330 = vadd.f32 %v2169, %v2329
        %v2331 = vpop.f32.mrb[0].mxu0
        %v2332 = vpop.f32.mrb[0].mxu0
        %v2333 = vadd.f32 %v2172, %v2332
        %v2334 = vpop.f32.mrb[0].mxu0
        %2335 = vdwg.mxu0
        %s2336 = smul.u32 0, 16
        %s2337 = scalar_lea.vmem %s375, %s2336 [#allocation15]
        %2338 = vst [vmem:[%s2337] sm:$0xff] %v2210
        %2339 = vst [vmem:[%s2337 + $0x8] sm:$0xff] %v2213
        %2340 = vst [vmem:[%s2337 + $0x10] sm:$0xff] %v2218
        %2341 = vst [vmem:[%s2337 + $0x18] sm:$0xff] %v2221
        %2342 = vst [vmem:[%s2337 + $0x20] sm:$0xff] %v2226
        %2343 = vst [vmem:[%s2337 + $0x28] sm:$0xff] %v2229
        %2344 = vst [vmem:[%s2337 + $0x30] sm:$0xff] %v2234
        %2345 = vst [vmem:[%s2337 + $0x38] sm:$0xff] %v2237
        %2346 = vst [vmem:[%s2337 + $0x40] sm:$0xff] %v2242
        %2347 = vst [vmem:[%s2337 + $0x48] sm:$0xff] %v2245
        %2348 = vst [vmem:[%s2337 + $0x50] sm:$0xff] %v2250
        %2349 = vst [vmem:[%s2337 + $0x58] sm:$0xff] %v2253
        %2350 = vst [vmem:[%s2337 + $0x60] sm:$0xff] %v2258
        %2351 = vst [vmem:[%s2337 + $0x68] sm:$0xff] %v2261
        %2352 = vst [vmem:[%s2337 + $0x70] sm:$0xff] %v2266
        %2353 = vst [vmem:[%s2337 + $0x78] sm:$0xff] %v2269
        %2354 = vst [vmem:[%s2337 + $0x80] sm:$0xff] %v2274
        %2355 = vst [vmem:[%s2337 + $0x88] sm:$0xff] %v2277
        %2356 = vst [vmem:[%s2337 + $0x90] sm:$0xff] %v2282
        %2357 = vst [vmem:[%s2337 + $0x98] sm:$0xff] %v2285
        %2358 = vst [vmem:[%s2337 + $0xa0] sm:$0xff] %v2290
        %2359 = vst [vmem:[%s2337 + $0xa8] sm:$0xff] %v2293
        %2360 = vst [vmem:[%s2337 + $0xb0] sm:$0xff] %v2298
        %2361 = vst [vmem:[%s2337 + $0xb8] sm:$0xff] %v2301
        %2362 = vst [vmem:[%s2337 + $0xc0] sm:$0xff] %v2306
        %2363 = vst [vmem:[%s2337 + $0xc8] sm:$0xff] %v2309
        %2364 = vst [vmem:[%s2337 + $0xd0] sm:$0xff] %v2314
        %2365 = vst [vmem:[%s2337 + $0xd8] sm:$0xff] %v2317
        %2366 = vst [vmem:[%s2337 + $0xe0] sm:$0xff] %v2322
        %2367 = vst [vmem:[%s2337 + $0xe8] sm:$0xff] %v2325
        %2368 = vst [vmem:[%s2337 + $0xf0] sm:$0xff] %v2330
        %2369 = vst [vmem:[%s2337 + $0xf8] sm:$0xff] %v2333
        %v2370 = vld [vmem:[%s375] sm:$0xff]
        %v2371 = vld [vmem:[%s375 + $0x8] sm:$0xff]
        %v2372 = vld [vmem:[%s375 + $0x10] sm:$0xff]
        %v2373 = vld [vmem:[%s375 + $0x18] sm:$0xff]
        %v2374 = vld [vmem:[%s375 + $0x20] sm:$0xff]
        %v2375 = vld [vmem:[%s375 + $0x28] sm:$0xff]
        %v2376 = vld [vmem:[%s375 + $0x30] sm:$0xff]
        %v2377 = vld [vmem:[%s375 + $0x38] sm:$0xff]
        %v2378 = vld [vmem:[%s375 + $0x40] sm:$0xff]
        %v2379 = vld [vmem:[%s375 + $0x48] sm:$0xff]
        %v2380 = vld [vmem:[%s375 + $0x50] sm:$0xff]
        %v2381 = vld [vmem:[%s375 + $0x58] sm:$0xff]
        %v2382 = vld [vmem:[%s375 + $0x60] sm:$0xff]
        %v2383 = vld [vmem:[%s375 + $0x68] sm:$0xff]
        %v2384 = vld [vmem:[%s375 + $0x70] sm:$0xff]
        %v2385 = vld [vmem:[%s375 + $0x78] sm:$0xff]
        %v2386 = vld [vmem:[%s375 + $0x80] sm:$0xff]
        %v2387 = vld [vmem:[%s375 + $0x88] sm:$0xff]
        %v2388 = vld [vmem:[%s375 + $0x90] sm:$0xff]
        %v2389 = vld [vmem:[%s375 + $0x98] sm:$0xff]
        %v2390 = vld [vmem:[%s375 + $0xa0] sm:$0xff]
        %v2391 = vld [vmem:[%s375 + $0xa8] sm:$0xff]
        %v2392 = vld [vmem:[%s375 + $0xb0] sm:$0xff]
        %v2393 = vld [vmem:[%s375 + $0xb8] sm:$0xff]
        %v2394 = vld [vmem:[%s375 + $0xc0] sm:$0xff]
        %v2395 = vld [vmem:[%s375 + $0xc8] sm:$0xff]
        %v2396 = vld [vmem:[%s375 + $0xd0] sm:$0xff]
        %v2397 = vld [vmem:[%s375 + $0xd8] sm:$0xff]
        %v2398 = vld [vmem:[%s375 + $0xe0] sm:$0xff]
        %v2399 = vld [vmem:[%s375 + $0xe8] sm:$0xff]
        %v2400 = vld [vmem:[%s375 + $0xf0] sm:$0xff]
        %v2401 = vld [vmem:[%s375 + $0xf8] sm:$0xff]
        %v2402 = vadd.f32 %v2370, %v2371
        %v2403 = vadd.f32 %v2402, %v2372
        %v2404 = vadd.f32 %v2403, %v2373
        %v2405 = vadd.f32 %v2404, %v2374
        %v2406 = vadd.f32 %v2405, %v2375
        %v2407 = vadd.f32 %v2406, %v2376
        %v2408 = vadd.f32 %v2407, %v2377
        %v2409 = vadd.f32 %v2408, %v2378
        %v2410 = vadd.f32 %v2409, %v2379
        %v2411 = vadd.f32 %v2410, %v2380
        %v2412 = vadd.f32 %v2411, %v2381
        %v2413 = vadd.f32 %v2412, %v2382
        %v2414 = vadd.f32 %v2413, %v2383
        %v2415 = vadd.f32 %v2414, %v2384
        %v2416 = vadd.f32 %v2415, %v2385
        %v2417 = vadd.f32 %v2416, %v2386
        %v2418 = vadd.f32 %v2417, %v2387
        %v2419 = vadd.f32 %v2418, %v2388
        %v2420 = vadd.f32 %v2419, %v2389
        %v2421 = vadd.f32 %v2420, %v2390
        %v2422 = vadd.f32 %v2421, %v2391
        %v2423 = vadd.f32 %v2422, %v2392
        %v2424 = vadd.f32 %v2423, %v2393
        %v2425 = vadd.f32 %v2424, %v2394
        %v2426 = vadd.f32 %v2425, %v2395
        %v2427 = vadd.f32 %v2426, %v2396
        %v2428 = vadd.f32 %v2427, %v2397
        %v2429 = vadd.f32 %v2428, %v2398
        %v2430 = vadd.f32 %v2429, %v2399
        %v2431 = vadd.f32 %v2430, %v2400
        %v2432 = vadd.f32 %v2431, %v2401
        %v2433 = vrot.slane %v2432, 4
        %v2434 = vadd.f32 %v2432, %v2433
        %v2435 = vrot.slane %v2434, 2
        %v2436 = vadd.f32 %v2434, %v2435
        %v2437 = vrot.slane %v2436, 1
        %v2438 = vadd.f32 %v2436, %v2437
        %v2439 = vmul.f32 %v2438, 0.00390625
        %v2440 = vsub.f32 %v2370, %v2439
        %v2441 = vsub.f32 %v2371, %v2439
        %v2442 = vsub.f32 %v2372, %v2439
        %v2443 = vsub.f32 %v2373, %v2439
        %v2444 = vsub.f32 %v2374, %v2439
        %v2445 = vsub.f32 %v2375, %v2439
        %v2446 = vsub.f32 %v2376, %v2439
        %v2447 = vsub.f32 %v2377, %v2439
        %v2448 = vsub.f32 %v2378, %v2439
        %v2449 = vsub.f32 %v2379, %v2439
        %v2450 = vsub.f32 %v2380, %v2439
        %v2451 = vsub.f32 %v2381, %v2439
        %v2452 = vsub.f32 %v2382, %v2439
        %v2453 = vsub.f32 %v2383, %v2439
        %v2454 = vsub.f32 %v2384, %v2439
        %v2455 = vsub.f32 %v2385, %v2439
        %v2456 = vsub.f32 %v2386, %v2439
        %v2457 = vsub.f32 %v2387, %v2439
        %v2458 = vsub.f32 %v2388, %v2439
        %v2459 = vsub.f32 %v2389, %v2439
        %v2460 = vsub.f32 %v2390, %v2439
        %v2461 = vsub.f32 %v2391, %v2439
        %v2462 = vsub.f32 %v2392, %v2439
        %v2463 = vsub.f32 %v2393, %v2439
        %v2464 = vsub.f32 %v2394, %v2439
        %v2465 = vsub.f32 %v2395, %v2439
        %v2466 = vsub.f32 %v2396, %v2439
        %v2467 = vsub.f32 %v2397, %v2439
        %v2468 = vsub.f32 %v2398, %v2439
        %v2469 = vsub.f32 %v2399, %v2439
        %v2470 = vsub.f32 %v2400, %v2439
        %v2471 = vsub.f32 %v2401, %v2439
        %v2472 = vmul.f32 %v2440, %v2440
        %v2473 = vmul.f32 %v2441, %v2441
        %v2474 = vmul.f32 %v2442, %v2442
        %v2475 = vmul.f32 %v2443, %v2443
        %v2476 = vmul.f32 %v2444, %v2444
        %v2477 = vmul.f32 %v2445, %v2445
        %v2478 = vmul.f32 %v2446, %v2446
        %v2479 = vmul.f32 %v2447, %v2447
        %v2480 = vmul.f32 %v2448, %v2448
        %v2481 = vmul.f32 %v2449, %v2449
        %v2482 = vmul.f32 %v2450, %v2450
        %v2483 = vmul.f32 %v2451, %v2451
        %v2484 = vmul.f32 %v2452, %v2452
        %v2485 = vmul.f32 %v2453, %v2453
        %v2486 = vmul.f32 %v2454, %v2454
        %v2487 = vmul.f32 %v2455, %v2455
        %v2488 = vmul.f32 %v2456, %v2456
        %v2489 = vmul.f32 %v2457, %v2457
        %v2490 = vmul.f32 %v2458, %v2458
        %v2491 = vmul.f32 %v2459, %v2459
        %v2492 = vmul.f32 %v2460, %v2460
        %v2493 = vmul.f32 %v2461, %v2461
        %v2494 = vmul.f32 %v2462, %v2462
        %v2495 = vmul.f32 %v2463, %v2463
        %v2496 = vmul.f32 %v2464, %v2464
        %v2497 = vmul.f32 %v2465, %v2465
        %v2498 = vmul.f32 %v2466, %v2466
        %v2499 = vmul.f32 %v2467, %v2467
        %v2500 = vmul.f32 %v2468, %v2468
        %v2501 = vmul.f32 %v2469, %v2469
        %v2502 = vmul.f32 %v2470, %v2470
        %v2503 = vmul.f32 %v2471, %v2471
        %v2504 = vadd.f32 %v2472, %v2473
        %v2505 = vadd.f32 %v2504, %v2474
        %v2506 = vadd.f32 %v2505, %v2475
        %v2507 = vadd.f32 %v2506, %v2476
        %v2508 = vadd.f32 %v2507, %v2477
        %v2509 = vadd.f32 %v2508, %v2478
        %v2510 = vadd.f32 %v2509, %v2479
        %v2511 = vadd.f32 %v2510, %v2480
        %v2512 = vadd.f32 %v2511, %v2481
        %v2513 = vadd.f32 %v2512, %v2482
        %v2514 = vadd.f32 %v2513, %v2483
        %v2515 = vadd.f32 %v2514, %v2484
        %v2516 = vadd.f32 %v2515, %v2485
        %v2517 = vadd.f32 %v2516, %v2486
        %v2518 = vadd.f32 %v2517, %v2487
        %v2519 = vadd.f32 %v2518, %v2488
        %v2520 = vadd.f32 %v2519, %v2489
        %v2521 = vadd.f32 %v2520, %v2490
        %v2522 = vadd.f32 %v2521, %v2491
        %v2523 = vadd.f32 %v2522, %v2492
        %v2524 = vadd.f32 %v2523, %v2493
        %v2525 = vadd.f32 %v2524, %v2494
        %v2526 = vadd.f32 %v2525, %v2495
        %v2527 = vadd.f32 %v2526, %v2496
        %v2528 = vadd.f32 %v2527, %v2497
        %v2529 = vadd.f32 %v2528, %v2498
        %v2530 = vadd.f32 %v2529, %v2499
        %v2531 = vadd.f32 %v2530, %v2500
        %v2532 = vadd.f32 %v2531, %v2501
        %v2533 = vadd.f32 %v2532, %v2502
        %v2534 = vadd.f32 %v2533, %v2503
        %v2535 = vrot.slane %v2534, 4
        %v2536 = vadd.f32 %v2534, %v2535
        %v2537 = vrot.slane %v2536, 2
        %v2538 = vadd.f32 %v2536, %v2537
        %v2539 = vrot.slane %v2538, 1
        %v2540 = vadd.f32 %v2538, %v2539
        %v2541 = vmul.f32 %v2540, 0.00390625
        %v2542 = vld [vmem:[#allocation8] sm:$0x1]
        %v2543 = vadd.f32 %v2541, 1e-05
        %v2544 = vrsqrt.pop %v2543
        %v2545 = vmul.f32 %v2542, %v2544
        %v2547 = vlaneseq
        %v2548 = vshrl.u32 %v2547, 7
        %v2549 = vsub.s32 0, %v2548
        %v2550 = vrot.slane %v2545, %v2549
        %v2552 = vmul.f32 %v2440, %v2550
        %v2553 = vmul.f32 %v2441, %v2550
        %v2554 = vmul.f32 %v2442, %v2550
        %v2555 = vmul.f32 %v2443, %v2550
        %v2556 = vmul.f32 %v2444, %v2550
        %v2557 = vmul.f32 %v2445, %v2550
        %v2558 = vmul.f32 %v2446, %v2550
        %v2559 = vmul.f32 %v2447, %v2550
        %v2560 = vmul.f32 %v2448, %v2550
        %v2561 = vmul.f32 %v2449, %v2550
        %v2562 = vmul.f32 %v2450, %v2550
        %v2563 = vmul.f32 %v2451, %v2550
        %v2564 = vmul.f32 %v2452, %v2550
        %v2565 = vmul.f32 %v2453, %v2550
        %v2566 = vmul.f32 %v2454, %v2550
        %v2567 = vmul.f32 %v2455, %v2550
        %v2568 = vmul.f32 %v2456, %v2550
        %v2569 = vmul.f32 %v2457, %v2550
        %v2570 = vmul.f32 %v2458, %v2550
        %v2571 = vmul.f32 %v2459, %v2550
        %v2572 = vmul.f32 %v2460, %v2550
        %v2573 = vmul.f32 %v2461, %v2550
        %v2574 = vmul.f32 %v2462, %v2550
        %v2575 = vmul.f32 %v2463, %v2550
        %v2576 = vmul.f32 %v2464, %v2550
        %v2577 = vmul.f32 %v2465, %v2550
        %v2578 = vmul.f32 %v2466, %v2550
        %v2579 = vmul.f32 %v2467, %v2550
        %v2580 = vmul.f32 %v2468, %v2550
        %v2581 = vmul.f32 %v2469, %v2550
        %v2582 = vmul.f32 %v2470, %v2550
        %v2583 = vmul.f32 %v2471, %v2550
        %v2584 = vld [vmem:[#allocation9] sm:$0x1]
        %v2586 = vlaneseq
        %v2587 = vshrl.u32 %v2586, 7
        %v2588 = vsub.s32 0, %v2587
        %v2589 = vrot.slane %v2584, %v2588
        %v2591 = vadd.f32 %v2552, %v2589
        %v2592 = vadd.f32 %v2553, %v2589
        %v2593 = vadd.f32 %v2554, %v2589
        %v2594 = vadd.f32 %v2555, %v2589
        %v2595 = vadd.f32 %v2556, %v2589
        %v2596 = vadd.f32 %v2557, %v2589
        %v2597 = vadd.f32 %v2558, %v2589
        %v2598 = vadd.f32 %v2559, %v2589
        %v2599 = vadd.f32 %v2560, %v2589
        %v2600 = vadd.f32 %v2561, %v2589
        %v2601 = vadd.f32 %v2562, %v2589
        %v2602 = vadd.f32 %v2563, %v2589
        %v2603 = vadd.f32 %v2564, %v2589
        %v2604 = vadd.f32 %v2565, %v2589
        %v2605 = vadd.f32 %v2566, %v2589
        %v2606 = vadd.f32 %v2567, %v2589
        %v2607 = vadd.f32 %v2568, %v2589
        %v2608 = vadd.f32 %v2569, %v2589
        %v2609 = vadd.f32 %v2570, %v2589
        %v2610 = vadd.f32 %v2571, %v2589
        %v2611 = vadd.f32 %v2572, %v2589
        %v2612 = vadd.f32 %v2573, %v2589
        %v2613 = vadd.f32 %v2574, %v2589
        %v2614 = vadd.f32 %v2575, %v2589
        %v2615 = vadd.f32 %v2576, %v2589
        %v2616 = vadd.f32 %v2577, %v2589
        %v2617 = vadd.f32 %v2578, %v2589
        %v2618 = vadd.f32 %v2579, %v2589
        %v2619 = vadd.f32 %v2580, %v2589
        %v2620 = vadd.f32 %v2581, %v2589
        %v2621 = vadd.f32 %v2582, %v2589
        %v2622 = vadd.f32 %v2583, %v2589
        %v2623 = vmax.f32 %v2591, 0.0
        %v2624 = vmax.f32 %v2592, 0.0
        %v2625 = vmax.f32 %v2593, 0.0
        %v2626 = vmax.f32 %v2594, 0.0
        %v2627 = vmax.f32 %v2595, 0.0
        %v2628 = vmax.f32 %v2596, 0.0
        %v2629 = vmax.f32 %v2597, 0.0
        %v2630 = vmax.f32 %v2598, 0.0
        %v2631 = vmax.f32 %v2599, 0.0
        %v2632 = vmax.f32 %v2600, 0.0
        %v2633 = vmax.f32 %v2601, 0.0
        %v2634 = vmax.f32 %v2602, 0.0
        %v2635 = vmax.f32 %v2603, 0.0
        %v2636 = vmax.f32 %v2604, 0.0
        %v2637 = vmax.f32 %v2605, 0.0
        %v2638 = vmax.f32 %v2606, 0.0
        %v2639 = vmax.f32 %v2607, 0.0
        %v2640 = vmax.f32 %v2608, 0.0
        %v2641 = vmax.f32 %v2609, 0.0
        %v2642 = vmax.f32 %v2610, 0.0
        %v2643 = vmax.f32 %v2611, 0.0
        %v2644 = vmax.f32 %v2612, 0.0
        %v2645 = vmax.f32 %v2613, 0.0
        %v2646 = vmax.f32 %v2614, 0.0
        %v2647 = vmax.f32 %v2615, 0.0
        %v2648 = vmax.f32 %v2616, 0.0
        %v2649 = vmax.f32 %v2617, 0.0
        %v2650 = vmax.f32 %v2618, 0.0
        %v2651 = vmax.f32 %v2619, 0.0
        %v2652 = vmax.f32 %v2620, 0.0
        %v2653 = vmax.f32 %v2621, 0.0
        %v2654 = vmax.f32 %v2622, 0.0
        %2655 = vst [vmem:[%s409 + $0x1] sm:$0xff] %v2623
        %2656 = vst [vmem:[%s409 + $0x9] sm:$0xff] %v2624
        %2657 = vst [vmem:[%s409 + $0x19] sm:$0xff] %v2625
        %2658 = vst [vmem:[%s409 + $0x21] sm:$0xff] %v2626
        %2659 = vst [vmem:[%s409 + $0x31] sm:$0xff] %v2627
        %2660 = vst [vmem:[%s409 + $0x39] sm:$0xff] %v2628
        %2661 = vst [vmem:[%s409 + $0x49] sm:$0xff] %v2629
        %2662 = vst [vmem:[%s409 + $0x51] sm:$0xff] %v2630
        %2663 = vst [vmem:[%s409 + $0x61] sm:$0xff] %v2631
        %2664 = vst [vmem:[%s409 + $0x69] sm:$0xff] %v2632
        %2665 = vst [vmem:[%s409 + $0x79] sm:$0xff] %v2633
        %2666 = vst [vmem:[%s409 + $0x81] sm:$0xff] %v2634
        %2667 = vst [vmem:[%s409 + $0x91] sm:$0xff] %v2635
        %2668 = vst [vmem:[%s409 + $0x99] sm:$0xff] %v2636
        %2669 = vst [vmem:[%s409 + $0xa9] sm:$0xff] %v2637
        %2670 = vst [vmem:[%s409 + $0xb1] sm:$0xff] %v2638
        %2671 = vst [vmem:[%s409 + $0xc1] sm:$0xff] %v2639
        %2672 = vst [vmem:[%s409 + $0xc9] sm:$0xff] %v2640
        %2673 = vst [vmem:[%s409 + $0xd9] sm:$0xff] %v2641
        %2674 = vst [vmem:[%s409 + $0xe1] sm:$0xff] %v2642
        %2675 = vst [vmem:[%s409 + $0xf1] sm:$0xff] %v2643
        %2676 = vst [vmem:[%s409 + $0xf9] sm:$0xff] %v2644
        %2677 = vst [vmem:[%s409 + $0x109] sm:$0xff] %v2645
        %2678 = vst [vmem:[%s409 + $0x111] sm:$0xff] %v2646
        %2679 = vst [vmem:[%s409 + $0x121] sm:$0xff] %v2647
        %2680 = vst [vmem:[%s409 + $0x129] sm:$0xff] %v2648
        %2681 = vst [vmem:[%s409 + $0x139] sm:$0xff] %v2649
        %2682 = vst [vmem:[%s409 + $0x141] sm:$0xff] %v2650
        %2683 = vst [vmem:[%s409 + $0x151] sm:$0xff] %v2651
        %2684 = vst [vmem:[%s409 + $0x159] sm:$0xff] %v2652
        %2685 = vst [vmem:[%s409 + $0x169] sm:$0xff] %v2653
        %2686 = vst [vmem:[%s409 + $0x171] sm:$0xff] %v2654
        %2687 = vst [vmem:[#allocation2 + $0x1] sm:$0xff] %v2625
        %2688 = vst [vmem:[#allocation2 + $0x9] sm:$0xff] %v2626
        %2689 = vst [vmem:[%s444 + $0x1] sm:$0xff] %v2651
        %2690 = vst [vmem:[%s444 + $0x9] sm:$0xff] %v2652
        %v2691 = vld [vmem:[#allocation2 + $0x2] sm:$0x1]
        %v2692 = vld [vmem:[#allocation2 + $0x1a] sm:$0x1]
        %v2693 = vld [vmem:[#allocation2 + $0x32] sm:$0x1]
        %v2694 = vld [vmem:[#allocation2 + $0x4a] sm:$0x1]
        %v2695 = vld [vmem:[#allocation2 + $0x62] sm:$0x1]
        %v2696 = vld [vmem:[#allocation2 + $0x7a] sm:$0x1]
        %v2697 = vld [vmem:[#allocation2 + $0x92] sm:$0x1]
        %v2698 = vld [vmem:[#allocation2 + $0xaa] sm:$0x1]
        %v2699 = vld [vmem:[#allocation2 + $0xc2] sm:$0x1]
        %v2700 = vld [vmem:[#allocation2 + $0xda] sm:$0x1]
        %v2701 = vld [vmem:[#allocation2 + $0xf2] sm:$0x1]
        %v2702 = vld [vmem:[#allocation2 + $0x10a] sm:$0x1]
        %v2703 = vld [vmem:[#allocation2 + $0x122] sm:$0x1]
        %v2704 = vld [vmem:[#allocation2 + $0x13a] sm:$0x1]
        %v2705 = vld [vmem:[#allocation2 + $0x152] sm:$0x1]
        %v2706 = vld [vmem:[#allocation2 + $0x16a] sm:$0x1]
        %v2707 = vld [vmem:[#allocation2 + $0x182] sm:$0x1]
        %v2708 = vld [vmem:[#allocation2 + $0x19a] sm:$0x1]
        %2709 = vst [vmem:[#allocation2] sm:$0x1] %v2691
        %2710 = vst [vmem:[#allocation2 + $0x18] sm:$0x1] %v2692
        %2711 = vst [vmem:[#allocation2 + $0x30] sm:$0x1] %v2693
        %2712 = vst [vmem:[#allocation2 + $0x48] sm:$0x1] %v2694
        %2713 = vst [vmem:[#allocation2 + $0x60] sm:$0x1] %v2695
        %2714 = vst [vmem:[#allocation2 + $0x78] sm:$0x1] %v2696
        %2715 = vst [vmem:[#allocation2 + $0x90] sm:$0x1] %v2697
        %2716 = vst [vmem:[#allocation2 + $0xa8] sm:$0x1] %v2698
        %2717 = vst [vmem:[#allocation2 + $0xc0] sm:$0x1] %v2699
        %2718 = vst [vmem:[#allocation2 + $0xd8] sm:$0x1] %v2700
        %2719 = vst [vmem:[#allocation2 + $0xf0] sm:$0x1] %v2701
        %2720 = vst [vmem:[#allocation2 + $0x108] sm:$0x1] %v2702
        %2721 = vst [vmem:[#allocation2 + $0x120] sm:$0x1] %v2703
        %2722 = vst [vmem:[#allocation2 + $0x138] sm:$0x1] %v2704
        %2723 = vst [vmem:[#allocation2 + $0x150] sm:$0x1] %v2705
        %2724 = vst [vmem:[#allocation2 + $0x168] sm:$0x1] %v2706
        %2725 = vst [vmem:[#allocation2 + $0x180] sm:$0x1] %v2707
        %2726 = vst [vmem:[#allocation2 + $0x198] sm:$0x1] %v2708
        %v2727 = vld [vmem:[#allocation2 + $0xf] sm:$0x1]
        %v2728 = vld [vmem:[#allocation2 + $0x27] sm:$0x1]
        %v2729 = vld [vmem:[#allocation2 + $0x3f] sm:$0x1]
        %v2730 = vld [vmem:[#allocation2 + $0x57] sm:$0x1]
        %v2731 = vld [vmem:[#allocation2 + $0x6f] sm:$0x1]
        %v2732 = vld [vmem:[#allocation2 + $0x87] sm:$0x1]
        %v2733 = vld [vmem:[#allocation2 + $0x9f] sm:$0x1]
        %v2734 = vld [vmem:[#allocation2 + $0xb7] sm:$0x1]
        %v2735 = vld [vmem:[#allocation2 + $0xcf] sm:$0x1]
        %v2736 = vld [vmem:[#allocation2 + $0xe7] sm:$0x1]
        %v2737 = vld [vmem:[#allocation2 + $0xff] sm:$0x1]
        %v2738 = vld [vmem:[#allocation2 + $0x117] sm:$0x1]
        %v2739 = vld [vmem:[#allocation2 + $0x12f] sm:$0x1]
        %v2740 = vld [vmem:[#allocation2 + $0x147] sm:$0x1]
        %v2741 = vld [vmem:[#allocation2 + $0x15f] sm:$0x1]
        %v2742 = vld [vmem:[#allocation2 + $0x177] sm:$0x1]
        %v2743 = vld [vmem:[#allocation2 + $0x18f] sm:$0x1]
        %v2744 = vld [vmem:[#allocation2 + $0x1a7] sm:$0x1]
        %2745 = vst [vmem:[#allocation2 + $0x11] sm:$0x1] %v2727
        %2746 = vst [vmem:[#allocation2 + $0x29] sm:$0x1] %v2728
        %2747 = vst [vmem:[#allocation2 + $0x41] sm:$0x1] %v2729
        %2748 = vst [vmem:[#allocation2 + $0x59] sm:$0x1] %v2730
        %2749 = vst [vmem:[#allocation2 + $0x71] sm:$0x1] %v2731
        %2750 = vst [vmem:[#allocation2 + $0x89] sm:$0x1] %v2732
        %2751 = vst [vmem:[#allocation2 + $0xa1] sm:$0x1] %v2733
        %2752 = vst [vmem:[#allocation2 + $0xb9] sm:$0x1] %v2734
        %2753 = vst [vmem:[#allocation2 + $0xd1] sm:$0x1] %v2735
        %2754 = vst [vmem:[#allocation2 + $0xe9] sm:$0x1] %v2736
        %2755 = vst [vmem:[#allocation2 + $0x101] sm:$0x1] %v2737
        %2756 = vst [vmem:[#allocation2 + $0x119] sm:$0x1] %v2738
        %2757 = vst [vmem:[#allocation2 + $0x131] sm:$0x1] %v2739
        %2758 = vst [vmem:[#allocation2 + $0x149] sm:$0x1] %v2740
        %2759 = vst [vmem:[#allocation2 + $0x161] sm:$0x1] %v2741
        %2760 = vst [vmem:[#allocation2 + $0x179] sm:$0x1] %v2742
        %2761 = vst [vmem:[#allocation2 + $0x191] sm:$0x1] %v2743
        %2762 = vst [vmem:[#allocation2 + $0x1a9] sm:$0x1] %v2744
        %v2763 = vld [vmem:[#allocation11] sm:$0xf]
        %v2764 = vld [vmem:[#allocation11 + $0x4] sm:$0xf]
        %v2765 = vld [vmem:[#allocation11 + $0x8] sm:$0xf]
        %v2766 = vld [vmem:[#allocation11 + $0xc] sm:$0xf]
        %v2767 = vld [vmem:[#allocation11 + $0x10] sm:$0xf]
        %v2768 = vld [vmem:[#allocation11 + $0x14] sm:$0xf]
        %v2769 = vld [vmem:[#allocation11 + $0x18] sm:$0xf]
        %v2770 = vld [vmem:[#allocation11 + $0x1c] sm:$0xf]
        %v2771 = vld [vmem:[#allocation11 + $0x20] sm:$0xf]
        %v2772 = vld [vmem:[#allocation11 + $0x24] sm:$0xf]
        %v2773 = vld [vmem:[#allocation11 + $0x28] sm:$0xf]
        %v2774 = vld [vmem:[#allocation11 + $0x2c] sm:$0xf]
        %v2775 = vld [vmem:[#allocation11 + $0x30] sm:$0xf]
        %v2776 = vld [vmem:[#allocation11 + $0x34] sm:$0xf]
        %v2777 = vld [vmem:[#allocation11 + $0x38] sm:$0xf]
        %v2778 = vld [vmem:[#allocation11 + $0x3c] sm:$0xf]
        %v2779 = vld [vmem:[#allocation11 + $0x40] sm:$0xf]
        %v2780 = vld [vmem:[#allocation11 + $0x44] sm:$0xf]
        %v2781 = vld [vmem:[#allocation11 + $0x48] sm:$0xf]
        %v2782 = vld [vmem:[#allocation11 + $0x4c] sm:$0xf]
        %v2783 = vld [vmem:[#allocation11 + $0x50] sm:$0xf]
        %v2784 = vld [vmem:[#allocation11 + $0x54] sm:$0xf]
        %v2785 = vld [vmem:[#allocation11 + $0x58] sm:$0xf]
        %v2786 = vld [vmem:[#allocation11 + $0x5c] sm:$0xf]
        %v2787 = vld [vmem:[#allocation11 + $0x60] sm:$0xf]
        %v2788 = vld [vmem:[#allocation11 + $0x64] sm:$0xf]
        %v2789 = vld [vmem:[#allocation11 + $0x68] sm:$0xf]
        %v2790 = vld [vmem:[#allocation11 + $0x6c] sm:$0xf]
        %v2791 = vld [vmem:[#allocation11 + $0x70] sm:$0xf]
        %v2792 = vld [vmem:[#allocation11 + $0x74] sm:$0xf]
        %v2793 = vld [vmem:[#allocation11 + $0x78] sm:$0xf]
        %v2794 = vld [vmem:[#allocation11 + $0x7c] sm:$0xf]
        %v2795 = vld [vmem:[#allocation11 + $0x80] sm:$0xf]
        %v2796 = vld [vmem:[#allocation11 + $0x84] sm:$0xf]
        %v2797 = vld [vmem:[#allocation11 + $0x88] sm:$0xf]
        %v2798 = vld [vmem:[#allocation11 + $0x8c] sm:$0xf]
        %v2799 = vld [vmem:[#allocation11 + $0x90] sm:$0xf]
        %v2800 = vld [vmem:[#allocation11 + $0x94] sm:$0xf]
        %v2801 = vld [vmem:[#allocation11 + $0x98] sm:$0xf]
        %v2802 = vld [vmem:[#allocation11 + $0x9c] sm:$0xf]
        %v2803 = vld [vmem:[#allocation11 + $0xa0] sm:$0xf]
        %v2804 = vld [vmem:[#allocation11 + $0xa4] sm:$0xf]
        %v2805 = vld [vmem:[#allocation11 + $0xa8] sm:$0xf]
        %v2806 = vld [vmem:[#allocation11 + $0xac] sm:$0xf]
        %v2807 = vld [vmem:[#allocation11 + $0xb0] sm:$0xf]
        %v2808 = vld [vmem:[#allocation11 + $0xb4] sm:$0xf]
        %v2809 = vld [vmem:[#allocation11 + $0xb8] sm:$0xf]
        %v2810 = vld [vmem:[#allocation11 + $0xbc] sm:$0xf]
        %v2811 = vld [vmem:[#allocation11 + $0xc0] sm:$0xf]
        %v2812 = vld [vmem:[#allocation11 + $0xc4] sm:$0xf]
        %v2813 = vld [vmem:[#allocation11 + $0xc8] sm:$0xf]
        %v2814 = vld [vmem:[#allocation11 + $0xcc] sm:$0xf]
        %v2815 = vld [vmem:[#allocation11 + $0xd0] sm:$0xf]
        %v2816 = vld [vmem:[#allocation11 + $0xd4] sm:$0xf]
        %v2817 = vld [vmem:[#allocation11 + $0xd8] sm:$0xf]
        %v2818 = vld [vmem:[#allocation11 + $0xdc] sm:$0xf]
        %v2819 = vld [vmem:[#allocation11 + $0xe0] sm:$0xf]
        %v2820 = vld [vmem:[#allocation11 + $0xe4] sm:$0xf]
        %v2821 = vld [vmem:[#allocation11 + $0xe8] sm:$0xf]
        %v2822 = vld [vmem:[#allocation11 + $0xec] sm:$0xf]
        %v2823 = vld [vmem:[#allocation11 + $0xf0] sm:$0xf]
        %v2824 = vld [vmem:[#allocation11 + $0xf4] sm:$0xf]
        %v2825 = vld [vmem:[#allocation11 + $0xf8] sm:$0xf]
        %v2826 = vld [vmem:[#allocation11 + $0xfc] sm:$0xf]
        %v2827 = vld [vmem:[#allocation11 + $0x100] sm:$0xf]
        %v2828 = vld [vmem:[#allocation11 + $0x104] sm:$0xf]
        %v2829 = vld [vmem:[#allocation11 + $0x108] sm:$0xf]
        %v2830 = vld [vmem:[#allocation11 + $0x10c] sm:$0xf]
        %v2831 = vld [vmem:[#allocation11 + $0x110] sm:$0xf]
        %v2832 = vld [vmem:[#allocation11 + $0x114] sm:$0xf]
        %v2833 = vld [vmem:[#allocation11 + $0x118] sm:$0xf]
        %v2834 = vld [vmem:[#allocation11 + $0x11c] sm:$0xf]
        %v2835 = vld [vmem:[#allocation11 + $0x120] sm:$0xf]
        %v2836 = vld [vmem:[#allocation11 + $0x124] sm:$0xf]
        %v2837 = vld [vmem:[#allocation11 + $0x128] sm:$0xf]
        %v2838 = vld [vmem:[#allocation11 + $0x12c] sm:$0xf]
        %v2839 = vld [vmem:[#allocation11 + $0x130] sm:$0xf]
        %v2840 = vld [vmem:[#allocation11 + $0x134] sm:$0xf]
        %v2841 = vld [vmem:[#allocation11 + $0x138] sm:$0xf]
        %v2842 = vld [vmem:[#allocation11 + $0x13c] sm:$0xf]
        %v2843 = vld [vmem:[#allocation11 + $0x140] sm:$0xf]
        %v2844 = vld [vmem:[#allocation11 + $0x144] sm:$0xf]
        %v2845 = vld [vmem:[#allocation11 + $0x148] sm:$0xf]
        %v2846 = vld [vmem:[#allocation11 + $0x14c] sm:$0xf]
        %v2847 = vld [vmem:[#allocation11 + $0x150] sm:$0xf]
        %v2848 = vld [vmem:[#allocation11 + $0x154] sm:$0xf]
        %v2849 = vld [vmem:[#allocation11 + $0x158] sm:$0xf]
        %v2850 = vld [vmem:[#allocation11 + $0x15c] sm:$0xf]
        %v2851 = vld [vmem:[#allocation11 + $0x160] sm:$0xf]
        %v2852 = vld [vmem:[#allocation11 + $0x164] sm:$0xf]
        %v2853 = vld [vmem:[#allocation11 + $0x168] sm:$0xf]
        %v2854 = vld [vmem:[#allocation11 + $0x16c] sm:$0xf]
        %v2855 = vld [vmem:[#allocation11 + $0x170] sm:$0xf]
        %v2856 = vld [vmem:[#allocation11 + $0x174] sm:$0xf]
        %v2857 = vld [vmem:[#allocation11 + $0x178] sm:$0xf]
        %v2858 = vld [vmem:[#allocation11 + $0x17c] sm:$0xf]
        %v2859 = vld [vmem:[#allocation11 + $0x180] sm:$0xf]
        %v2860 = vld [vmem:[#allocation11 + $0x184] sm:$0xf]
        %v2861 = vld [vmem:[#allocation11 + $0x188] sm:$0xf]
        %v2862 = vld [vmem:[#allocation11 + $0x18c] sm:$0xf]
        %v2863 = vld [vmem:[#allocation11 + $0x190] sm:$0xf]
        %v2864 = vld [vmem:[#allocation11 + $0x194] sm:$0xf]
        %v2865 = vld [vmem:[#allocation11 + $0x198] sm:$0xf]
        %v2866 = vld [vmem:[#allocation11 + $0x19c] sm:$0xf]
        %v2867 = vld [vmem:[#allocation11 + $0x1a0] sm:$0xf]
        %v2868 = vld [vmem:[#allocation11 + $0x1a4] sm:$0xf]
        %v2869 = vld [vmem:[#allocation11 + $0x1a8] sm:$0xf]
        %v2870 = vld [vmem:[#allocation11 + $0x1ac] sm:$0xf]
        %v2871 = vld [vmem:[#allocation11 + $0x1b0] sm:$0xf]
        %v2872 = vld [vmem:[#allocation11 + $0x1b4] sm:$0xf]
        %v2873 = vld [vmem:[#allocation11 + $0x1b8] sm:$0xf]
        %v2874 = vld [vmem:[#allocation11 + $0x1bc] sm:$0xf]
        %v2875 = vld [vmem:[#allocation11 + $0x1c0] sm:$0xf]
        %v2876 = vld [vmem:[#allocation11 + $0x1c4] sm:$0xf]
        %v2877 = vld [vmem:[#allocation11 + $0x1c8] sm:$0xf]
        %v2878 = vld [vmem:[#allocation11 + $0x1cc] sm:$0xf]
        %v2879 = vld [vmem:[#allocation11 + $0x1d0] sm:$0xf]
        %v2880 = vld [vmem:[#allocation11 + $0x1d4] sm:$0xf]
        %v2881 = vld [vmem:[#allocation11 + $0x1d8] sm:$0xf]
        %v2882 = vld [vmem:[#allocation11 + $0x1dc] sm:$0xf]
        %v2883 = vld [vmem:[#allocation11 + $0x1e0] sm:$0xf]
        %v2884 = vld [vmem:[#allocation11 + $0x1e4] sm:$0xf]
        %v2885 = vld [vmem:[#allocation11 + $0x1e8] sm:$0xf]
        %v2886 = vld [vmem:[#allocation11 + $0x1ec] sm:$0xf]
        %v2887 = vld [vmem:[#allocation11 + $0x1f0] sm:$0xf]
        %v2888 = vld [vmem:[#allocation11 + $0x1f4] sm:$0xf]
        %v2889 = vld [vmem:[#allocation11 + $0x1f8] sm:$0xf]
        %v2890 = vld [vmem:[#allocation11 + $0x1fc] sm:$0xf]
        %v2891 = vld [vmem:[#allocation11 + $0x200] sm:$0xf]
        %v2892 = vld [vmem:[#allocation11 + $0x204] sm:$0xf]
        %v2893 = vld [vmem:[#allocation11 + $0x208] sm:$0xf]
        %v2894 = vld [vmem:[#allocation11 + $0x20c] sm:$0xf]
        %v2895 = vld [vmem:[#allocation11 + $0x210] sm:$0xf]
        %v2896 = vld [vmem:[#allocation11 + $0x214] sm:$0xf]
        %v2897 = vld [vmem:[#allocation11 + $0x218] sm:$0xf]
        %v2898 = vld [vmem:[#allocation11 + $0x21c] sm:$0xf]
        %v2899 = vld [vmem:[#allocation11 + $0x220] sm:$0xf]
        %v2900 = vld [vmem:[#allocation11 + $0x224] sm:$0xf]
        %v2901 = vld [vmem:[#allocation11 + $0x228] sm:$0xf]
        %v2902 = vld [vmem:[#allocation11 + $0x22c] sm:$0xf]
        %v2903 = vld [vmem:[#allocation11 + $0x230] sm:$0xf]
        %v2904 = vld [vmem:[#allocation11 + $0x234] sm:$0xf]
        %v2905 = vld [vmem:[#allocation11 + $0x238] sm:$0xf]
        %v2906 = vld [vmem:[#allocation11 + $0x23c] sm:$0xf]
        %v2907 = vld [vmem:[%s664] sm:$0xff]
        %v2908 = vld [vmem:[%s664 + $0x8] sm:$0xff]
        %v2909 = vld [vmem:[%s664 + $0x10] sm:$0x3]
        %v2910 = vld [vmem:[%s664 + $0x18] sm:$0xff]
        %v2911 = vld [vmem:[%s664 + $0x20] sm:$0xff]
        %v2912 = vld [vmem:[%s664 + $0x28] sm:$0x3]
        %v2913 = vld [vmem:[%s664 + $0x30] sm:$0xff]
        %v2914 = vld [vmem:[%s664 + $0x38] sm:$0xff]
        %v2915 = vld [vmem:[%s664 + $0x40] sm:$0x3]
        %v2916 = vld [vmem:[%s664 + $0x48] sm:$0xff]
        %v2917 = vld [vmem:[%s664 + $0x50] sm:$0xff]
        %v2918 = vld [vmem:[%s664 + $0x58] sm:$0x3]
        %v2919 = vld [vmem:[%s664 + $0x60] sm:$0xff]
        %v2920 = vld [vmem:[%s664 + $0x68] sm:$0xff]
        %v2921 = vld [vmem:[%s664 + $0x70] sm:$0x3]
        %v2922 = vld [vmem:[%s664 + $0x78] sm:$0xff]
        %v2923 = vld [vmem:[%s664 + $0x80] sm:$0xff]
        %v2924 = vld [vmem:[%s664 + $0x88] sm:$0x3]
        %v2925 = vld [vmem:[%s664 + $0x90] sm:$0xff]
        %v2926 = vld [vmem:[%s664 + $0x98] sm:$0xff]
        %v2927 = vld [vmem:[%s664 + $0xa0] sm:$0x3]
        %v2928 = vld [vmem:[%s664 + $0xa8] sm:$0xff]
        %v2929 = vld [vmem:[%s664 + $0xb0] sm:$0xff]
        %v2930 = vld [vmem:[%s664 + $0xb8] sm:$0x3]
        %v2931 = vld [vmem:[%s664 + $0xc0] sm:$0xff]
        %v2932 = vld [vmem:[%s664 + $0xc8] sm:$0xff]
        %v2933 = vld [vmem:[%s664 + $0xd0] sm:$0x3]
        %v2934 = vld [vmem:[%s664 + $0xd8] sm:$0xff]
        %v2935 = vld [vmem:[%s664 + $0xe0] sm:$0xff]
        %v2936 = vld [vmem:[%s664 + $0xe8] sm:$0x3]
        %v2937 = vld [vmem:[%s664 + $0xf0] sm:$0xff]
        %v2938 = vld [vmem:[%s664 + $0xf8] sm:$0xff]
        %v2939 = vld [vmem:[%s664 + $0x100] sm:$0x3]
        %v2940 = vld [vmem:[%s664 + $0x108] sm:$0xff]
        %v2941 = vld [vmem:[%s664 + $0x110] sm:$0xff]
        %v2942 = vld [vmem:[%s664 + $0x118] sm:$0x3]
        %v2943 = vld [vmem:[%s664 + $0x120] sm:$0xff]
        %v2944 = vld [vmem:[%s664 + $0x128] sm:$0xff]
        %v2945 = vld [vmem:[%s664 + $0x130] sm:$0x3]
        %v2946 = vld [vmem:[%s664 + $0x138] sm:$0xff]
        %v2947 = vld [vmem:[%s664 + $0x140] sm:$0xff]
        %v2948 = vld [vmem:[%s664 + $0x148] sm:$0x3]
        %v2949 = vld [vmem:[%s664 + $0x150] sm:$0xff]
        %v2950 = vld [vmem:[%s664 + $0x158] sm:$0xff]
        %v2951 = vld [vmem:[%s664 + $0x160] sm:$0x3]
        %v2952 = vld [vmem:[%s664 + $0x168] sm:$0xff]
        %v2953 = vld [vmem:[%s664 + $0x170] sm:$0xff]
        %v2954 = vld [vmem:[%s664 + $0x178] sm:$0x3]
        %v2955 = vld [vmem:[%s664 + $0x180] sm:$0xff]
        %v2956 = vld [vmem:[%s664 + $0x188] sm:$0xff]
        %v2957 = vld [vmem:[%s664 + $0x190] sm:$0x3]
        %v2958 = vld [vmem:[%s664 + $0x198] sm:$0xff]
        %v2959 = vld [vmem:[%s664 + $0x1a0] sm:$0xff]
        %v2960 = vld [vmem:[%s664 + $0x1a8] sm:$0x3]
        %v2961 = vpack.c.bf16 %v2908, %v2907
        %v2962 = vpack.c.bf16 %v2909, %v2909
        %v2963 = vpack.c.bf16 %v2911, %v2910
        %v2964 = vpack.c.bf16 %v2912, %v2912
        %v2965 = vpack.c.bf16 %v2914, %v2913
        %v2966 = vpack.c.bf16 %v2915, %v2915
        %v2967 = vpack.c.bf16 %v2917, %v2916
        %v2968 = vpack.c.bf16 %v2918, %v2918
        %v2969 = vpack.c.bf16 %v2920, %v2919
        %v2970 = vpack.c.bf16 %v2921, %v2921
        %v2971 = vpack.c.bf16 %v2923, %v2922
        %v2972 = vpack.c.bf16 %v2924, %v2924
        %v2973 = vpack.c.bf16 %v2926, %v2925
        %v2974 = vpack.c.bf16 %v2927, %v2927
        %v2975 = vpack.c.bf16 %v2929, %v2928
        %v2976 = vpack.c.bf16 %v2930, %v2930
        %v2977 = vpack.c.bf16 %v2932, %v2931
        %v2978 = vpack.c.bf16 %v2933, %v2933
        %v2979 = vpack.c.bf16 %v2935, %v2934
        %v2980 = vpack.c.bf16 %v2936, %v2936
        %v2981 = vpack.c.bf16 %v2938, %v2937
        %v2982 = vpack.c.bf16 %v2939, %v2939
        %v2983 = vpack.c.bf16 %v2941, %v2940
        %v2984 = vpack.c.bf16 %v2942, %v2942
        %v2985 = vpack.c.bf16 %v2944, %v2943
        %v2986 = vpack.c.bf16 %v2945, %v2945
        %v2987 = vpack.c.bf16 %v2947, %v2946
        %v2988 = vpack.c.bf16 %v2948, %v2948
        %v2989 = vpack.c.bf16 %v2950, %v2949
        %v2990 = vpack.c.bf16 %v2951, %v2951
        %v2991 = vpack.c.bf16 %v2953, %v2952
        %v2992 = vpack.c.bf16 %v2954, %v2954
        %v2993 = vpack.c.bf16 %v2956, %v2955
        %v2994 = vpack.c.bf16 %v2957, %v2957
        %v2995 = vpack.c.bf16 %v2959, %v2958
        %v2996 = vpack.c.bf16 %v2960, %v2960
        %v2998 = vshrl.u32 %v2961, 16
        %v3000 = vshll.u32 %v2961, 16
        %v3002 = vrot.slane %v3000, 1
        %v3003 = vor.u32 %v2998, %v3002
        %v3005 = vshll.u32 %v2962, 16
        %v3007 = vrot.slane %v3005, 1
        %v3008 = vsel %vm755, %v3003, %v3007
        %v3010 = vshrl.u32 %v2963, 16
        %v3012 = vshll.u32 %v2963, 16
        %v3014 = vrot.slane %v3012, 1
        %v3015 = vor.u32 %v3010, %v3014
        %v3017 = vshll.u32 %v2964, 16
        %v3019 = vrot.slane %v3017, 1
        %v3020 = vsel %vm755, %v3015, %v3019
        %v3022 = vshrl.u32 %v2965, 16
        %v3024 = vshll.u32 %v2965, 16
        %v3026 = vrot.slane %v3024, 1
        %v3027 = vor.u32 %v3022, %v3026
        %v3029 = vshll.u32 %v2966, 16
        %v3031 = vrot.slane %v3029, 1
        %v3032 = vsel %vm755, %v3027, %v3031
        %v3034 = vshrl.u32 %v2967, 16
        %v3036 = vshll.u32 %v2967, 16
        %v3038 = vrot.slane %v3036, 1
        %v3039 = vor.u32 %v3034, %v3038
        %v3041 = vshll.u32 %v2968, 16
        %v3043 = vrot.slane %v3041, 1
        %v3044 = vsel %vm755, %v3039, %v3043
        %v3046 = vshrl.u32 %v2969, 16
        %v3048 = vshll.u32 %v2969, 16
        %v3050 = vrot.slane %v3048, 1
        %v3051 = vor.u32 %v3046, %v3050
        %v3053 = vshll.u32 %v2970, 16
        %v3055 = vrot.slane %v3053, 1
        %v3056 = vsel %vm755, %v3051, %v3055
        %v3058 = vshrl.u32 %v2971, 16
        %v3060 = vshll.u32 %v2971, 16
        %v3062 = vrot.slane %v3060, 1
        %v3063 = vor.u32 %v3058, %v3062
        %v3065 = vshll.u32 %v2972, 16
        %v3067 = vrot.slane %v3065, 1
        %v3068 = vsel %vm755, %v3063, %v3067
        %v3070 = vshrl.u32 %v2973, 16
        %v3072 = vshll.u32 %v2973, 16
        %v3074 = vrot.slane %v3072, 1
        %v3075 = vor.u32 %v3070, %v3074
        %v3077 = vshll.u32 %v2974, 16
        %v3079 = vrot.slane %v3077, 1
        %v3080 = vsel %vm755, %v3075, %v3079
        %v3082 = vshrl.u32 %v2975, 16
        %v3084 = vshll.u32 %v2975, 16
        %v3086 = vrot.slane %v3084, 1
        %v3087 = vor.u32 %v3082, %v3086
        %v3089 = vshll.u32 %v2976, 16
        %v3091 = vrot.slane %v3089, 1
        %v3092 = vsel %vm755, %v3087, %v3091
        %v3094 = vshrl.u32 %v2977, 16
        %v3096 = vshll.u32 %v2977, 16
        %v3098 = vrot.slane %v3096, 1
        %v3099 = vor.u32 %v3094, %v3098
        %v3101 = vshll.u32 %v2978, 16
        %v3103 = vrot.slane %v3101, 1
        %v3104 = vsel %vm755, %v3099, %v3103
        %v3106 = vshrl.u32 %v2979, 16
        %v3108 = vshll.u32 %v2979, 16
        %v3110 = vrot.slane %v3108, 1
        %v3111 = vor.u32 %v3106, %v3110
        %v3113 = vshll.u32 %v2980, 16
        %v3115 = vrot.slane %v3113, 1
        %v3116 = vsel %vm755, %v3111, %v3115
        %v3118 = vshrl.u32 %v2981, 16
        %v3120 = vshll.u32 %v2981, 16
        %v3122 = vrot.slane %v3120, 1
        %v3123 = vor.u32 %v3118, %v3122
        %v3125 = vshll.u32 %v2982, 16
        %v3127 = vrot.slane %v3125, 1
        %v3128 = vsel %vm755, %v3123, %v3127
        %v3130 = vshrl.u32 %v2983, 16
        %v3132 = vshll.u32 %v2983, 16
        %v3134 = vrot.slane %v3132, 1
        %v3135 = vor.u32 %v3130, %v3134
        %v3137 = vshll.u32 %v2984, 16
        %v3139 = vrot.slane %v3137, 1
        %v3140 = vsel %vm755, %v3135, %v3139
        %v3142 = vshrl.u32 %v2985, 16
        %v3144 = vshll.u32 %v2985, 16
        %v3146 = vrot.slane %v3144, 1
        %v3147 = vor.u32 %v3142, %v3146
        %v3149 = vshll.u32 %v2986, 16
        %v3151 = vrot.slane %v3149, 1
        %v3152 = vsel %vm755, %v3147, %v3151
        %v3154 = vshrl.u32 %v2987, 16
        %v3156 = vshll.u32 %v2987, 16
        %v3158 = vrot.slane %v3156, 1
        %v3159 = vor.u32 %v3154, %v3158
        %v3161 = vshll.u32 %v2988, 16
        %v3163 = vrot.slane %v3161, 1
        %v3164 = vsel %vm755, %v3159, %v3163
        %v3166 = vshrl.u32 %v2989, 16
        %v3168 = vshll.u32 %v2989, 16
        %v3170 = vrot.slane %v3168, 1
        %v3171 = vor.u32 %v3166, %v3170
        %v3173 = vshll.u32 %v2990, 16
        %v3175 = vrot.slane %v3173, 1
        %v3176 = vsel %vm755, %v3171, %v3175
        %v3178 = vshrl.u32 %v2991, 16
        %v3180 = vshll.u32 %v2991, 16
        %v3182 = vrot.slane %v3180, 1
        %v3183 = vor.u32 %v3178, %v3182
        %v3185 = vshll.u32 %v2992, 16
        %v3187 = vrot.slane %v3185, 1
        %v3188 = vsel %vm755, %v3183, %v3187
        %v3237 = vrot.slane %v2961, 1
        %v3238 = vrot.slane %v2962, 1
        %v3239 = vsel %vm996, %v3237, %v3238
        %v3240 = vrot.slane %v2963, 1
        %v3241 = vrot.slane %v2964, 1
        %v3242 = vsel %vm996, %v3240, %v3241
        %v3243 = vrot.slane %v2965, 1
        %v3244 = vrot.slane %v2966, 1
        %v3245 = vsel %vm996, %v3243, %v3244
        %v3246 = vrot.slane %v2967, 1
        %v3247 = vrot.slane %v2968, 1
        %v3248 = vsel %vm996, %v3246, %v3247
        %v3249 = vrot.slane %v2969, 1
        %v3250 = vrot.slane %v2970, 1
        %v3251 = vsel %vm996, %v3249, %v3250
        %v3252 = vrot.slane %v2971, 1
        %v3253 = vrot.slane %v2972, 1
        %v3254 = vsel %vm996, %v3252, %v3253
        %v3255 = vrot.slane %v2973, 1
        %v3256 = vrot.slane %v2974, 1
        %v3257 = vsel %vm996, %v3255, %v3256
        %v3258 = vrot.slane %v2975, 1
        %v3259 = vrot.slane %v2976, 1
        %v3260 = vsel %vm996, %v3258, %v3259
        %v3261 = vrot.slane %v2977, 1
        %v3262 = vrot.slane %v2978, 1
        %v3263 = vsel %vm996, %v3261, %v3262
        %v3264 = vrot.slane %v2979, 1
        %v3265 = vrot.slane %v2980, 1
        %v3266 = vsel %vm996, %v3264, %v3265
        %v3267 = vrot.slane %v2981, 1
        %v3268 = vrot.slane %v2982, 1
        %v3269 = vsel %vm996, %v3267, %v3268
        %v3270 = vrot.slane %v2983, 1
        %v3271 = vrot.slane %v2984, 1
        %v3272 = vsel %vm996, %v3270, %v3271
        %v3273 = vrot.slane %v2985, 1
        %v3274 = vrot.slane %v2986, 1
        %v3275 = vsel %vm996, %v3273, %v3274
        %v3276 = vrot.slane %v2987, 1
        %v3277 = vrot.slane %v2988, 1
        %v3278 = vsel %vm996, %v3276, %v3277
        %v3279 = vrot.slane %v2989, 1
        %v3280 = vrot.slane %v2990, 1
        %v3281 = vsel %vm996, %v3279, %v3280
        %v3282 = vrot.slane %v2991, 1
        %v3283 = vrot.slane %v2992, 1
        %v3284 = vsel %vm996, %v3282, %v3283
        %v3302 = vshrl.u32 %v2993, 16
        %v3304 = vshll.u32 %v2993, 16
        %v3306 = vrot.slane %v3304, 1
        %v3307 = vor.u32 %v3302, %v3306
        %v3309 = vshll.u32 %v2994, 16
        %v3311 = vrot.slane %v3309, 1
        %v3312 = vsel %vm755, %v3307, %v3311
        %v3316 = vrot.slane %v2993, 1
        %v3317 = vrot.slane %v2994, 1
        %v3318 = vsel %vm996, %v3316, %v3317
        %v3321 = vshrl.u32 %v2995, 16
        %v3323 = vshll.u32 %v2995, 16
        %v3325 = vrot.slane %v3323, 1
        %v3326 = vor.u32 %v3321, %v3325
        %v3328 = vshll.u32 %v2996, 16
        %v3330 = vrot.slane %v3328, 1
        %v3331 = vsel %vm755, %v3326, %v3330
        %v3335 = vrot.slane %v2995, 1
        %v3336 = vrot.slane %v2996, 1
        %v3337 = vsel %vm996, %v3335, %v3336
        %v3483 = vunpack.c.l.b16 %v2763
        %v3484 = vunpack.c.l.b16 %v2764
        %v3485 = vunpack.c.l.b16 %v2765
        %v3486 = vunpack.c.l.b16 %v2766
        %v3487 = vunpack.c.l.b16 %v2767
        %v3488 = vunpack.c.l.b16 %v2768
        %v3489 = vunpack.c.l.b16 %v2769
        %v3490 = vunpack.c.l.b16 %v2770
        %v3491 = vunpack.c.l.b16 %v2771
        %v3492 = vunpack.c.l.b16 %v2772
        %v3493 = vunpack.c.l.b16 %v2773
        %v3494 = vunpack.c.l.b16 %v2774
        %v3495 = vunpack.c.l.b16 %v2775
        %v3496 = vunpack.c.l.b16 %v2776
        %v3497 = vunpack.c.l.b16 %v2777
        %v3498 = vunpack.c.l.b16 %v2778
        %v3499 = vunpack.c.l.b16 %v2779
        %v3500 = vunpack.c.l.b16 %v2780
        %v3501 = vunpack.c.l.b16 %v2781
        %v3502 = vunpack.c.l.b16 %v2782
        %v3503 = vunpack.c.l.b16 %v2783
        %v3504 = vunpack.c.l.b16 %v2784
        %v3505 = vunpack.c.l.b16 %v2785
        %v3506 = vunpack.c.l.b16 %v2786
        %v3507 = vunpack.c.l.b16 %v2787
        %v3508 = vunpack.c.l.b16 %v2788
        %v3509 = vunpack.c.l.b16 %v2789
        %v3510 = vunpack.c.l.b16 %v2790
        %v3511 = vunpack.c.l.b16 %v2791
        %v3512 = vunpack.c.l.b16 %v2792
        %v3513 = vunpack.c.l.b16 %v2793
        %v3514 = vunpack.c.l.b16 %v2794
        %v3515 = vunpack.c.l.b16 %v2795
        %v3516 = vunpack.c.l.b16 %v2796
        %v3517 = vunpack.c.l.b16 %v2797
        %v3518 = vunpack.c.l.b16 %v2798
        %v3519 = vunpack.c.l.b16 %v2799
        %v3520 = vunpack.c.l.b16 %v2800
        %v3521 = vunpack.c.l.b16 %v2801
        %v3522 = vunpack.c.l.b16 %v2802
        %v3523 = vunpack.c.l.b16 %v2803
        %v3524 = vunpack.c.l.b16 %v2804
        %v3525 = vunpack.c.l.b16 %v2805
        %v3526 = vunpack.c.l.b16 %v2806
        %v3527 = vunpack.c.l.b16 %v2807
        %v3528 = vunpack.c.l.b16 %v2808
        %v3529 = vunpack.c.l.b16 %v2809
        %v3530 = vunpack.c.l.b16 %v2810
        %v3531 = vunpack.c.l.b16 %v2811
        %v3532 = vunpack.c.l.b16 %v2812
        %v3533 = vunpack.c.l.b16 %v2813
        %v3534 = vunpack.c.l.b16 %v2814
        %v3535 = vunpack.c.l.b16 %v2815
        %v3536 = vunpack.c.l.b16 %v2816
        %v3537 = vunpack.c.l.b16 %v2817
        %v3538 = vunpack.c.l.b16 %v2818
        %v3539 = vunpack.c.l.b16 %v2819
        %v3540 = vunpack.c.l.b16 %v2820
        %v3541 = vunpack.c.l.b16 %v2821
        %v3542 = vunpack.c.l.b16 %v2822
        %v3543 = vunpack.c.l.b16 %v2823
        %v3544 = vunpack.c.l.b16 %v2824
        %v3545 = vunpack.c.l.b16 %v2825
        %v3546 = vunpack.c.l.b16 %v2826
        %v3547 = vunpack.c.l.b16 %v2827
        %v3548 = vunpack.c.l.b16 %v2828
        %v3549 = vunpack.c.l.b16 %v2829
        %v3550 = vunpack.c.l.b16 %v2830
        %v3551 = vunpack.c.l.b16 %v2831
        %v3552 = vunpack.c.l.b16 %v2832
        %v3553 = vunpack.c.l.b16 %v2833
        %v3554 = vunpack.c.l.b16 %v2834
        %v3555 = vunpack.c.l.b16 %v2835
        %v3556 = vunpack.c.l.b16 %v2836
        %v3557 = vunpack.c.l.b16 %v2837
        %v3558 = vunpack.c.l.b16 %v2838
        %v3559 = vunpack.c.l.b16 %v2839
        %v3560 = vunpack.c.l.b16 %v2840
        %v3561 = vunpack.c.l.b16 %v2841
        %v3562 = vunpack.c.l.b16 %v2842
        %v3563 = vunpack.c.l.b16 %v2843
        %v3564 = vunpack.c.l.b16 %v2844
        %v3565 = vunpack.c.l.b16 %v2845
        %v3566 = vunpack.c.l.b16 %v2846
        %v3567 = vunpack.c.l.b16 %v2847
        %v3568 = vunpack.c.l.b16 %v2848
        %v3569 = vunpack.c.l.b16 %v2849
        %v3570 = vunpack.c.l.b16 %v2850
        %v3571 = vunpack.c.l.b16 %v2851
        %v3572 = vunpack.c.l.b16 %v2852
        %v3573 = vunpack.c.l.b16 %v2853
        %v3574 = vunpack.c.l.b16 %v2854
        %v3575 = vunpack.c.l.b16 %v2855
        %v3576 = vunpack.c.l.b16 %v2856
        %v3577 = vunpack.c.l.b16 %v2857
        %v3578 = vunpack.c.l.b16 %v2858
        %v3579 = vunpack.c.l.b16 %v2859
        %v3580 = vunpack.c.l.b16 %v2860
        %v3581 = vunpack.c.l.b16 %v2861
        %v3582 = vunpack.c.l.b16 %v2862
        %v3583 = vunpack.c.l.b16 %v2863
        %v3584 = vunpack.c.l.b16 %v2864
        %v3585 = vunpack.c.l.b16 %v2865
        %v3586 = vunpack.c.l.b16 %v2866
        %v3587 = vunpack.c.l.b16 %v2867
        %v3588 = vunpack.c.l.b16 %v2868
        %v3589 = vunpack.c.l.b16 %v2869
        %v3590 = vunpack.c.l.b16 %v2870
        %v3591 = vunpack.c.l.b16 %v2871
        %v3592 = vunpack.c.l.b16 %v2872
        %v3593 = vunpack.c.l.b16 %v2873
        %v3594 = vunpack.c.l.b16 %v2874
        %v3595 = vunpack.c.l.b16 %v2875
        %v3596 = vunpack.c.l.b16 %v2876
        %v3597 = vunpack.c.l.b16 %v2877
        %v3598 = vunpack.c.l.b16 %v2878
        %v3599 = vunpack.c.l.b16 %v2879
        %v3600 = vunpack.c.l.b16 %v2880
        %v3601 = vunpack.c.l.b16 %v2881
        %v3602 = vunpack.c.l.b16 %v2882
        %v3603 = vunpack.c.l.b16 %v2883
        %v3604 = vunpack.c.l.b16 %v2884
        %v3605 = vunpack.c.l.b16 %v2885
        %v3606 = vunpack.c.l.b16 %v2886
        %v3607 = vunpack.c.l.b16 %v2887
        %v3608 = vunpack.c.l.b16 %v2888
        %v3609 = vunpack.c.l.b16 %v2889
        %v3610 = vunpack.c.l.b16 %v2890
        %v3611 = vunpack.c.l.b16 %v2891
        %v3612 = vunpack.c.l.b16 %v2892
        %v3613 = vunpack.c.l.b16 %v2893
        %v3614 = vunpack.c.l.b16 %v2894
        %v3615 = vunpack.c.l.b16 %v2895
        %v3616 = vunpack.c.l.b16 %v2896
        %v3617 = vunpack.c.l.b16 %v2897
        %v3618 = vunpack.c.l.b16 %v2898
        %v3619 = vunpack.c.l.b16 %v2899
        %v3620 = vunpack.c.l.b16 %v2900
        %v3621 = vunpack.c.l.b16 %v2901
        %v3622 = vunpack.c.l.b16 %v2902
        %v3623 = vunpack.c.l.b16 %v2903
        %v3624 = vunpack.c.l.b16 %v2904
        %v3625 = vunpack.c.l.b16 %v2905
        %v3626 = vunpack.c.l.b16 %v2906
        %v3627 = vpack.c.b16 %v3484, %v3483
        %v3628 = vpack.c.b16 %v3486, %v3485
        %v3629 = vpack.c.b16 %v3488, %v3487
        %v3630 = vpack.c.b16 %v3490, %v3489
        %v3631 = vpack.c.b16 %v3492, %v3491
        %v3632 = vpack.c.b16 %v3494, %v3493
        %v3633 = vpack.c.b16 %v3496, %v3495
        %v3634 = vpack.c.b16 %v3498, %v3497
        %v3635 = vpack.c.b16 %v3500, %v3499
        %v3636 = vpack.c.b16 %v3502, %v3501
        %v3637 = vpack.c.b16 %v3504, %v3503
        %v3638 = vpack.c.b16 %v3506, %v3505
        %v3639 = vpack.c.b16 %v3508, %v3507
        %v3640 = vpack.c.b16 %v3510, %v3509
        %v3641 = vpack.c.b16 %v3512, %v3511
        %v3642 = vpack.c.b16 %v3514, %v3513
        %v3643 = vpack.c.b16 %v3516, %v3515
        %v3644 = vpack.c.b16 %v3518, %v3517
        %v3645 = vpack.c.b16 %v3520, %v3519
        %v3646 = vpack.c.b16 %v3522, %v3521
        %v3647 = vpack.c.b16 %v3524, %v3523
        %v3648 = vpack.c.b16 %v3526, %v3525
        %v3649 = vpack.c.b16 %v3528, %v3527
        %v3650 = vpack.c.b16 %v3530, %v3529
        %v3651 = vpack.c.b16 %v3532, %v3531
        %v3652 = vpack.c.b16 %v3534, %v3533
        %v3653 = vpack.c.b16 %v3536, %v3535
        %v3654 = vpack.c.b16 %v3538, %v3537
        %v3655 = vpack.c.b16 %v3540, %v3539
        %v3656 = vpack.c.b16 %v3542, %v3541
        %v3657 = vpack.c.b16 %v3544, %v3543
        %v3658 = vpack.c.b16 %v3546, %v3545
        %v3659 = vpack.c.b16 %v3548, %v3547
        %v3660 = vpack.c.b16 %v3550, %v3549
        %v3661 = vpack.c.b16 %v3552, %v3551
        %v3662 = vpack.c.b16 %v3554, %v3553
        %v3663 = vpack.c.b16 %v3556, %v3555
        %v3664 = vpack.c.b16 %v3558, %v3557
        %v3665 = vpack.c.b16 %v3560, %v3559
        %v3666 = vpack.c.b16 %v3562, %v3561
        %v3667 = vpack.c.b16 %v3564, %v3563
        %v3668 = vpack.c.b16 %v3566, %v3565
        %v3669 = vpack.c.b16 %v3568, %v3567
        %v3670 = vpack.c.b16 %v3570, %v3569
        %v3671 = vpack.c.b16 %v3572, %v3571
        %v3672 = vpack.c.b16 %v3574, %v3573
        %v3673 = vpack.c.b16 %v3576, %v3575
        %v3674 = vpack.c.b16 %v3578, %v3577
        %v3675 = vpack.c.b16 %v3580, %v3579
        %v3676 = vpack.c.b16 %v3582, %v3581
        %v3677 = vpack.c.b16 %v3584, %v3583
        %v3678 = vpack.c.b16 %v3586, %v3585
        %v3679 = vpack.c.b16 %v3588, %v3587
        %v3680 = vpack.c.b16 %v3590, %v3589
        %v3681 = vpack.c.b16 %v3592, %v3591
        %v3682 = vpack.c.b16 %v3594, %v3593
        %v3683 = vpack.c.b16 %v3596, %v3595
        %v3684 = vpack.c.b16 %v3598, %v3597
        %v3685 = vpack.c.b16 %v3600, %v3599
        %v3686 = vpack.c.b16 %v3602, %v3601
        %v3687 = vpack.c.b16 %v3604, %v3603
        %v3688 = vpack.c.b16 %v3606, %v3605
        %v3689 = vpack.c.b16 %v3608, %v3607
        %v3690 = vpack.c.b16 %v3610, %v3609
        %v3691 = vpack.c.b16 %v3612, %v3611
        %v3692 = vpack.c.b16 %v3614, %v3613
        %v3693 = vpack.c.b16 %v3616, %v3615
        %v3694 = vpack.c.b16 %v3618, %v3617
        %v3695 = vpack.c.b16 %v3620, %v3619
        %v3696 = vpack.c.b16 %v3622, %v3621
        %v3697 = vpack.c.b16 %v3624, %v3623
        %v3698 = vpack.c.b16 %v3626, %v3625
        %3771 = vmatprep.subr.bf16.mxu0 0
        %3772 = vmatpush1.bf16.msra.mxu0 %v3627
        %3773 = vmatprep.subr.bf16.mxu0 0
        %3774 = vmatpush1.bf16.msra.mxu0 %v3628
        %3775 = vmatprep.subr.bf16.mxu0 0
        %3776 = vmatpush1.bf16.msra.mxu0 %v3629
        %3777 = vmatprep.subr.bf16.mxu0 0
        %3778 = vmatpush1.bf16.msra.mxu0 %v3630
        %3779 = vmatprep.subr.bf16.mxu0 0
        %3780 = vmatpush1.bf16.msra.mxu0 %v3631
        %3781 = vmatprep.subr.bf16.mxu0 0
        %3782 = vmatpush1.bf16.msra.mxu0 %v3632
        %3783 = vmatprep.subr.bf16.mxu0 0
        %3784 = vmatpush1.bf16.msra.mxu0 %v3633
        %3785 = vmatprep.subr.bf16.mxu0 0
        %3786 = vmatpush1.bf16.msra.mxu0 %v3634
        %3787 = vmatprep.subr.bf16.mxu0 0
        %3788 = vmatpush1.bf16.msra.mxu0 %v3635
        %3789 = vmatprep.subr.bf16.mxu0 0
        %3790 = vmatpush1.bf16.msra.mxu0 %v3636
        %3791 = vmatprep.subr.bf16.mxu0 0
        %3792 = vmatpush1.bf16.msra.mxu0 %v3637
        %3793 = vmatprep.subr.bf16.mxu0 0
        %3794 = vmatpush1.bf16.msra.mxu0 %v3638
        %3795 = vmatprep.subr.bf16.mxu0 0
        %3796 = vmatpush1.bf16.msra.mxu0 %v3639
        %3797 = vmatprep.subr.bf16.mxu0 0
        %3798 = vmatpush1.bf16.msra.mxu0 %v3640
        %3799 = vmatprep.subr.bf16.mxu0 0
        %3800 = vmatpush1.bf16.msra.mxu0 %v3641
        %3801 = vmatprep.subr.bf16.mxu0 0
        %3802 = vmatpush1.bf16.msra.mxu0 %v3642
        %3803 = vmatprep.mubr.bf16.mxu0 %v3008
        %3804 = vmatmul.mubr.bf16.gmra.mrb[0].mxu0 %v2961
        %v3805 = vpop.f32.mrb[0].mxu0
        %v3806 = vadd.f32 0.0, %v3805
        %v3807 = vpop.f32.mrb[0].mxu0
        %v3808 = vpop.f32.mrb[0].mxu0
        %v3809 = vadd.f32 0.0, %v3808
        %v3810 = vpop.f32.mrb[0].mxu0
        %3811 = vmatprep.mubr.bf16.mxu0 %v3020
        %3812 = vmatmul.mubr.bf16.gmra.mrb[0].mxu0 %v2963
        %v3813 = vpop.f32.mrb[0].mxu0
        %v3814 = vadd.f32 0.0, %v3813
        %v3815 = vpop.f32.mrb[0].mxu0
        %v3816 = vpop.f32.mrb[0].mxu0
        %v3817 = vadd.f32 0.0, %v3816
        %v3818 = vpop.f32.mrb[0].mxu0
        %3819 = vmatprep.mubr.bf16.mxu0 %v3032
        %3820 = vmatmul.mubr.bf16.gmra.mrb[0].mxu0 %v2965
        %v3821 = vpop.f32.mrb[0].mxu0
        %v3822 = vadd.f32 0.0, %v3821
        %v3823 = vpop.f32.mrb[0].mxu0
        %v3824 = vpop.f32.mrb[0].mxu0
        %v3825 = vadd.f32 0.0, %v3824
        %v3826 = vpop.f32.mrb[0].mxu0
        %3827 = vmatprep.mubr.bf16.mxu0 %v3044
        %3828 = vmatmul.mubr.bf16.gmra.mrb[0].mxu0 %v2967
        %v3829 = vpop.f32.mrb[0].mxu0
        %v3830 = vadd.f32 0.0, %v3829
        %v3831 = vpop.f32.mrb[0].mxu0
        %v3832 = vpop.f32.mrb[0].mxu0
        %v3833 = vadd.f32 0.0, %v3832
        %v3834 = vpop.f32.mrb[0].mxu0
        %3835 = vmatprep.mubr.bf16.mxu0 %v3056
        %3836 = vmatmul.mubr.bf16.gmra.mrb[0].mxu0 %v2969
        %v3837 = vpop.f32.mrb[0].mxu0
        %v3838 = vadd.f32 0.0, %v3837
        %v3839 = vpop.f32.mrb[0].mxu0
        %v3840 = vpop.f32.mrb[0].mxu0
        %v3841 = vadd.f32 0.0, %v3840
        %v3842 = vpop.f32.mrb[0].mxu0
        %3843 = vmatprep.mubr.bf16.mxu0 %v3068
        %3844 = vmatmul.mubr.bf16.gmra.mrb[0].mxu0 %v2971
        %v3845 = vpop.f32.mrb[0].mxu0
        %v3846 = vadd.f32 0.0, %v3845
        %v3847 = vpop.f32.mrb[0].mxu0
        %v3848 = vpop.f32.mrb[0].mxu0
        %v3849 = vadd.f32 0.0, %v3848
        %v3850 = vpop.f32.mrb[0].mxu0
        %3851 = vmatprep.mubr.bf16.mxu0 %v3080
        %3852 = vmatmul.mubr.bf16.gmra.mrb[0].mxu0 %v2973
        %v3853 = vpop.f32.mrb[0].mxu0
        %v3854 = vadd.f32 0.0, %v3853
        %v3855 = vpop.f32.mrb[0].mxu0
        %v3856 = vpop.f32.mrb[0].mxu0
        %v3857 = vadd.f32 0.0, %v3856
        %v3858 = vpop.f32.mrb[0].mxu0
        %3859 = vmatprep.mubr.bf16.mxu0 %v3092
        %3860 = vmatmul.mubr.bf16.gmra.mrb[0].mxu0 %v2975
        %v3861 = vpop.f32.mrb[0].mxu0
        %v3862 = vadd.f32 0.0, %v3861
        %v3863 = vpop.f32.mrb[0].mxu0
        %v3864 = vpop.f32.mrb[0].mxu0
        %v3865 = vadd.f32 0.0, %v3864
        %v3866 = vpop.f32.mrb[0].mxu0
        %3867 = vmatprep.mubr.bf16.mxu0 %v3104
        %3868 = vmatmul.mubr.bf16.gmra.mrb[0].mxu0 %v2977
        %v3869 = vpop.f32.mrb[0].mxu0
        %v3870 = vadd.f32 0.0, %v3869
        %v3871 = vpop.f32.mrb[0].mxu0
        %v3872 = vpop.f32.mrb[0].mxu0
        %v3873 = vadd.f32 0.0, %v3872
        %v3874 = vpop.f32.mrb[0].mxu0
        %3875 = vmatprep.mubr.bf16.mxu0 %v3116
        %3876 = vmatmul.mubr.bf16.gmra.mrb[0].mxu0 %v2979
        %v3877 = vpop.f32.mrb[0].mxu0
        %v3878 = vadd.f32 0.0, %v3877
        %v3879 = vpop.f32.mrb[0].mxu0
        %v3880 = vpop.f32.mrb[0].mxu0
        %v3881 = vadd.f32 0.0, %v3880
        %v3882 = vpop.f32.mrb[0].mxu0
        %3883 = vmatprep.mubr.bf16.mxu0 %v3128
        %3884 = vmatmul.mubr.bf16.gmra.mrb[0].mxu0 %v2981
        %v3885 = vpop.f32.mrb[0].mxu0
        %v3886 = vadd.f32 0.0, %v3885
        %v3887 = vpop.f32.mrb[0].mxu0
        %v3888 = vpop.f32.mrb[0].mxu0
        %v3889 = vadd.f32 0.0, %v3888
        %v3890 = vpop.f32.mrb[0].mxu0
        %3891 = vmatprep.mubr.bf16.mxu0 %v3140
        %3892 = vmatmul.mubr.bf16.gmra.mrb[0].mxu0 %v2983
        %v3893 = vpop.f32.mrb[0].mxu0
        %v3894 = vadd.f32 0.0, %v3893
        %v3895 = vpop.f32.mrb[0].mxu0
        %v3896 = vpop.f32.mrb[0].mxu0
        %v3897 = vadd.f32 0.0, %v3896
        %v3898 = vpop.f32.mrb[0].mxu0
        %3899 = vmatprep.mubr.bf16.mxu0 %v3152
        %3900 = vmatmul.mubr.bf16.gmra.mrb[0].mxu0 %v2985
        %v3901 = vpop.f32.mrb[0].mxu0
        %v3902 = vadd.f32 0.0, %v3901
        %v3903 = vpop.f32.mrb[0].mxu0
        %v3904 = vpop.f32.mrb[0].mxu0
        %v3905 = vadd.f32 0.0, %v3904
        %v3906 = vpop.f32.mrb[0].mxu0
        %3907 = vmatprep.mubr.bf16.mxu0 %v3164
        %3908 = vmatmul.mubr.bf16.gmra.mrb[0].mxu0 %v2987
        %v3909 = vpop.f32.mrb[0].mxu0
        %v3910 = vadd.f32 0.0, %v3909
        %v3911 = vpop.f32.mrb[0].mxu0
        %v3912 = vpop.f32.mrb[0].mxu0
        %v3913 = vadd.f32 0.0, %v3912
        %v3914 = vpop.f32.mrb[0].mxu0
        %3915 = vmatprep.mubr.bf16.mxu0 %v3176
        %3916 = vmatmul.mubr.bf16.gmra.mrb[0].mxu0 %v2989
        %v3917 = vpop.f32.mrb[0].mxu0
        %v3918 = vadd.f32 0.0, %v3917
        %v3919 = vpop.f32.mrb[0].mxu0
        %v3920 = vpop.f32.mrb[0].mxu0
        %v3921 = vadd.f32 0.0, %v3920
        %v3922 = vpop.f32.mrb[0].mxu0
        %3923 = vmatprep.mubr.bf16.mxu0 %v3188
        %3924 = vmatmul.mubr.bf16.gmra.mrb[0].mxu0 %v2991
        %v3925 = vpop.f32.mrb[0].mxu0
        %v3926 = vadd.f32 0.0, %v3925
        %v3927 = vpop.f32.mrb[0].mxu0
        %v3928 = vpop.f32.mrb[0].mxu0
        %v3929 = vadd.f32 0.0, %v3928
        %v3930 = vpop.f32.mrb[0].mxu0
        %3931 = vdwg.mxu0
        %3932 = vmatprep.subr.bf16.mxu0 0
        %3933 = vmatpush1.bf16.msra.mxu0 %v3643
        %3934 = vmatprep.subr.bf16.mxu0 0
        %3935 = vmatpush1.bf16.msra.mxu0 %v3644
        %3936 = vmatprep.subr.bf16.mxu0 0
        %3937 = vmatpush1.bf16.msra.mxu0 %v3645
        %3938 = vmatprep.subr.bf16.mxu0 0
        %3939 = vmatpush1.bf16.msra.mxu0 %v3646
        %3940 = vmatprep.subr.bf16.mxu0 0
        %3941 = vmatpush1.bf16.msra.mxu0 %v3647
        %3942 = vmatprep.subr.bf16.mxu0 0
        %3943 = vmatpush1.bf16.msra.mxu0 %v3648
        %3944 = vmatprep.subr.bf16.mxu0 0
        %3945 = vmatpush1.bf16.msra.mxu0 %v3649
        %3946 = vmatprep.subr.bf16.mxu0 0
        %3947 = vmatpush1.bf16.msra.mxu0 %v3650
        %3948 = vmatprep.subr.bf16.mxu0 0
        %3949 = vmatpush1.bf16.msra.mxu0 %v3651
        %3950 = vmatprep.subr.bf16.mxu0 0
        %3951 = vmatpush1.bf16.msra.mxu0 %v3652
        %3952 = vmatprep.subr.bf16.mxu0 0
        %3953 = vmatpush1.bf16.msra.mxu0 %v3653
        %3954 = vmatprep.subr.bf16.mxu0 0
        %3955 = vmatpush1.bf16.msra.mxu0 %v3654
        %3956 = vmatprep.subr.bf16.mxu0 0
        %3957 = vmatpush1.bf16.msra.mxu0 %v3655
        %3958 = vmatprep.subr.bf16.mxu0 0
        %3959 = vmatpush1.bf16.msra.mxu0 %v3656
        %3960 = vmatprep.subr.bf16.mxu0 0
        %3961 = vmatpush1.bf16.msra.mxu0 %v3657
        %3962 = vmatprep.subr.bf16.mxu0 0
        %3963 = vmatpush1.bf16.msra.mxu0 %v3658
        %3964 = vmatprep.mubr.bf16.mxu0 %v2963
        %3965 = vmatmul.mubr.bf16.gmra.mrb[0].mxu0 %v3239
        %v3966 = vpop.f32.mrb[0].mxu0
        %v3967 = vadd.f32 %v3806, %v3966
        %v3968 = vpop.f32.mrb[0].mxu0
        %v3969 = vpop.f32.mrb[0].mxu0
        %v3970 = vadd.f32 %v3809, %v3969
        %v3971 = vpop.f32.mrb[0].mxu0
        %3972 = vmatprep.mubr.bf16.mxu0 %v2965
        %3973 = vmatmul.mubr.bf16.gmra.mrb[0].mxu0 %v3242
        %v3974 = vpop.f32.mrb[0].mxu0
        %v3975 = vadd.f32 %v3814, %v3974
        %v3976 = vpop.f32.mrb[0].mxu0
        %v3977 = vpop.f32.mrb[0].mxu0
        %v3978 = vadd.f32 %v3817, %v3977
        %v3979 = vpop.f32.mrb[0].mxu0
        %3980 = vmatprep.mubr.bf16.mxu0 %v2967
        %3981 = vmatmul.mubr.bf16.gmra.mrb[0].mxu0 %v3245
        %v3982 = vpop.f32.mrb[0].mxu0
        %v3983 = vadd.f32 %v3822, %v3982
        %v3984 = vpop.f32.mrb[0].mxu0
        %v3985 = vpop.f32.mrb[0].mxu0
        %v3986 = vadd.f32 %v3825, %v3985
        %v3987 = vpop.f32.mrb[0].mxu0
        %3988 = vmatprep.mubr.bf16.mxu0 %v2969
        %3989 = vmatmul.mubr.bf16.gmra.mrb[0].mxu0 %v3248
        %v3990 = vpop.f32.mrb[0].mxu0
        %v3991 = vadd.f32 %v3830, %v3990
        %v3992 = vpop.f32.mrb[0].mxu0
        %v3993 = vpop.f32.mrb[0].mxu0
        %v3994 = vadd.f32 %v3833, %v3993
        %v3995 = vpop.f32.mrb[0].mxu0
        %3996 = vmatprep.mubr.bf16.mxu0 %v2971
        %3997 = vmatmul.mubr.bf16.gmra.mrb[0].mxu0 %v3251
        %v3998 = vpop.f32.mrb[0].mxu0
        %v3999 = vadd.f32 %v3838, %v3998
        %v4000 = vpop.f32.mrb[0].mxu0
        %v4001 = vpop.f32.mrb[0].mxu0
        %v4002 = vadd.f32 %v3841, %v4001
        %v4003 = vpop.f32.mrb[0].mxu0
        %4004 = vmatprep.mubr.bf16.mxu0 %v2973
        %4005 = vmatmul.mubr.bf16.gmra.mrb[0].mxu0 %v3254
        %v4006 = vpop.f32.mrb[0].mxu0
        %v4007 = vadd.f32 %v3846, %v4006
        %v4008 = vpop.f32.mrb[0].mxu0
        %v4009 = vpop.f32.mrb[0].mxu0
        %v4010 = vadd.f32 %v3849, %v4009
        %v4011 = vpop.f32.mrb[0].mxu0
        %4012 = vmatprep.mubr.bf16.mxu0 %v2975
        %4013 = vmatmul.mubr.bf16.gmra.mrb[0].mxu0 %v3257
        %v4014 = vpop.f32.mrb[0].mxu0
        %v4015 = vadd.f32 %v3854, %v4014
        %v4016 = vpop.f32.mrb[0].mxu0
        %v4017 = vpop.f32.mrb[0].mxu0
        %v4018 = vadd.f32 %v3857, %v4017
        %v4019 = vpop.f32.mrb[0].mxu0
        %4020 = vmatprep.mubr.bf16.mxu0 %v2977
        %4021 = vmatmul.mubr.bf16.gmra.mrb[0].mxu0 %v3260
        %v4022 = vpop.f32.mrb[0].mxu0
        %v4023 = vadd.f32 %v3862, %v4022
        %v4024 = vpop.f32.mrb[0].mxu0
        %v4025 = vpop.f32.mrb[0].mxu0
        %v4026 = vadd.f32 %v3865, %v4025
        %v4027 = vpop.f32.mrb[0].mxu0
        %4028 = vmatprep.mubr.bf16.mxu0 %v2979
        %4029 = vmatmul.mubr.bf16.gmra.mrb[0].mxu0 %v3263
        %v4030 = vpop.f32.mrb[0].mxu0
        %v4031 = vadd.f32 %v3870, %v4030
        %v4032 = vpop.f32.mrb[0].mxu0
        %v4033 = vpop.f32.mrb[0].mxu0
        %v4034 = vadd.f32 %v3873, %v4033
        %v4035 = vpop.f32.mrb[0].mxu0
        %4036 = vmatprep.mubr.bf16.mxu0 %v2981
        %4037 = vmatmul.mubr.bf16.gmra.mrb[0].mxu0 %v3266
        %v4038 = vpop.f32.mrb[0].mxu0
        %v4039 = vadd.f32 %v3878, %v4038
        %v4040 = vpop.f32.mrb[0].mxu0
        %v4041 = vpop.f32.mrb[0].mxu0
        %v4042 = vadd.f32 %v3881, %v4041
        %v4043 = vpop.f32.mrb[0].mxu0
        %4044 = vmatprep.mubr.bf16.mxu0 %v2983
        %4045 = vmatmul.mubr.bf16.gmra.mrb[0].mxu0 %v3269
        %v4046 = vpop.f32.mrb[0].mxu0
        %v4047 = vadd.f32 %v3886, %v4046
        %v4048 = vpop.f32.mrb[0].mxu0
        %v4049 = vpop.f32.mrb[0].mxu0
        %v4050 = vadd.f32 %v3889, %v4049
        %v4051 = vpop.f32.mrb[0].mxu0
        %4052 = vmatprep.mubr.bf16.mxu0 %v2985
        %4053 = vmatmul.mubr.bf16.gmra.mrb[0].mxu0 %v3272
        %v4054 = vpop.f32.mrb[0].mxu0
        %v4055 = vadd.f32 %v3894, %v4054
        %v4056 = vpop.f32.mrb[0].mxu0
        %v4057 = vpop.f32.mrb[0].mxu0
        %v4058 = vadd.f32 %v3897, %v4057
        %v4059 = vpop.f32.mrb[0].mxu0
        %4060 = vmatprep.mubr.bf16.mxu0 %v2987
        %4061 = vmatmul.mubr.bf16.gmra.mrb[0].mxu0 %v3275
        %v4062 = vpop.f32.mrb[0].mxu0
        %v4063 = vadd.f32 %v3902, %v4062
        %v4064 = vpop.f32.mrb[0].mxu0
        %v4065 = vpop.f32.mrb[0].mxu0
        %v4066 = vadd.f32 %v3905, %v4065
        %v4067 = vpop.f32.mrb[0].mxu0
        %4068 = vmatprep.mubr.bf16.mxu0 %v2989
        %4069 = vmatmul.mubr.bf16.gmra.mrb[0].mxu0 %v3278
        %v4070 = vpop.f32.mrb[0].mxu0
        %v4071 = vadd.f32 %v3910, %v4070
        %v4072 = vpop.f32.mrb[0].mxu0
        %v4073 = vpop.f32.mrb[0].mxu0
        %v4074 = vadd.f32 %v3913, %v4073
        %v4075 = vpop.f32.mrb[0].mxu0
        %4076 = vmatprep.mubr.bf16.mxu0 %v2991
        %4077 = vmatmul.mubr.bf16.gmra.mrb[0].mxu0 %v3281
        %v4078 = vpop.f32.mrb[0].mxu0
        %v4079 = vadd.f32 %v3918, %v4078
        %v4080 = vpop.f32.mrb[0].mxu0
        %v4081 = vpop.f32.mrb[0].mxu0
        %v4082 = vadd.f32 %v3921, %v4081
        %v4083 = vpop.f32.mrb[0].mxu0
        %4084 = vmatprep.mubr.bf16.mxu0 %v2993
        %4085 = vmatmul.mubr.bf16.gmra.mrb[0].mxu0 %v3284
        %v4086 = vpop.f32.mrb[0].mxu0
        %v4087 = vadd.f32 %v3926, %v4086
        %v4088 = vpop.f32.mrb[0].mxu0
        %v4089 = vpop.f32.mrb[0].mxu0
        %v4090 = vadd.f32 %v3929, %v4089
        %v4091 = vpop.f32.mrb[0].mxu0
        %4092 = vdwg.mxu0
        %4093 = vmatprep.subr.bf16.mxu0 0
        %4094 = vmatpush1.bf16.msra.mxu0 %v3659
        %4095 = vmatprep.subr.bf16.mxu0 0
        %4096 = vmatpush1.bf16.msra.mxu0 %v3660
        %4097 = vmatprep.subr.bf16.mxu0 0
        %4098 = vmatpush1.bf16.msra.mxu0 %v3661
        %4099 = vmatprep.subr.bf16.mxu0 0
        %4100 = vmatpush1.bf16.msra.mxu0 %v3662
        %4101 = vmatprep.subr.bf16.mxu0 0
        %4102 = vmatpush1.bf16.msra.mxu0 %v3663
        %4103 = vmatprep.subr.bf16.mxu0 0
        %4104 = vmatpush1.bf16.msra.mxu0 %v3664
        %4105 = vmatprep.subr.bf16.mxu0 0
        %4106 = vmatpush1.bf16.msra.mxu0 %v3665
        %4107 = vmatprep.subr.bf16.mxu0 0
        %4108 = vmatpush1.bf16.msra.mxu0 %v3666
        %4109 = vmatprep.subr.bf16.mxu0 0
        %4110 = vmatpush1.bf16.msra.mxu0 %v3667
        %4111 = vmatprep.subr.bf16.mxu0 0
        %4112 = vmatpush1.bf16.msra.mxu0 %v3668
        %4113 = vmatprep.subr.bf16.mxu0 0
        %4114 = vmatpush1.bf16.msra.mxu0 %v3669
        %4115 = vmatprep.subr.bf16.mxu0 0
        %4116 = vmatpush1.bf16.msra.mxu0 %v3670
        %4117 = vmatprep.subr.bf16.mxu0 0
        %4118 = vmatpush1.bf16.msra.mxu0 %v3671
        %4119 = vmatprep.subr.bf16.mxu0 0
        %4120 = vmatpush1.bf16.msra.mxu0 %v3672
        %4121 = vmatprep.subr.bf16.mxu0 0
        %4122 = vmatpush1.bf16.msra.mxu0 %v3673
        %4123 = vmatprep.subr.bf16.mxu0 0
        %4124 = vmatpush1.bf16.msra.mxu0 %v3674
        %4125 = vmatprep.mubr.bf16.mxu0 %v3242
        %4126 = vmatmul.mubr.bf16.gmra.mrb[0].mxu0 %v3020
        %v4127 = vpop.f32.mrb[0].mxu0
        %v4128 = vadd.f32 %v3967, %v4127
        %v4129 = vpop.f32.mrb[0].mxu0
        %v4130 = vpop.f32.mrb[0].mxu0
        %v4131 = vadd.f32 %v3970, %v4130
        %v4132 = vpop.f32.mrb[0].mxu0
        %4133 = vmatprep.mubr.bf16.mxu0 %v3245
        %4134 = vmatmul.mubr.bf16.gmra.mrb[0].mxu0 %v3032
        %v4135 = vpop.f32.mrb[0].mxu0
        %v4136 = vadd.f32 %v3975, %v4135
        %v4137 = vpop.f32.mrb[0].mxu0
        %v4138 = vpop.f32.mrb[0].mxu0
        %v4139 = vadd.f32 %v3978, %v4138
        %v4140 = vpop.f32.mrb[0].mxu0
        %4141 = vmatprep.mubr.bf16.mxu0 %v3248
        %4142 = vmatmul.mubr.bf16.gmra.mrb[0].mxu0 %v3044
        %v4143 = vpop.f32.mrb[0].mxu0
        %v4144 = vadd.f32 %v3983, %v4143
        %v4145 = vpop.f32.mrb[0].mxu0
        %v4146 = vpop.f32.mrb[0].mxu0
        %v4147 = vadd.f32 %v3986, %v4146
        %v4148 = vpop.f32.mrb[0].mxu0
        %4149 = vmatprep.mubr.bf16.mxu0 %v3251
        %4150 = vmatmul.mubr.bf16.gmra.mrb[0].mxu0 %v3056
        %v4151 = vpop.f32.mrb[0].mxu0
        %v4152 = vadd.f32 %v3991, %v4151
        %v4153 = vpop.f32.mrb[0].mxu0
        %v4154 = vpop.f32.mrb[0].mxu0
        %v4155 = vadd.f32 %v3994, %v4154
        %v4156 = vpop.f32.mrb[0].mxu0
        %4157 = vmatprep.mubr.bf16.mxu0 %v3254
        %4158 = vmatmul.mubr.bf16.gmra.mrb[0].mxu0 %v3068
        %v4159 = vpop.f32.mrb[0].mxu0
        %v4160 = vadd.f32 %v3999, %v4159
        %v4161 = vpop.f32.mrb[0].mxu0
        %v4162 = vpop.f32.mrb[0].mxu0
        %v4163 = vadd.f32 %v4002, %v4162
        %v4164 = vpop.f32.mrb[0].mxu0
        %4165 = vmatprep.mubr.bf16.mxu0 %v3257
        %4166 = vmatmul.mubr.bf16.gmra.mrb[0].mxu0 %v3080
        %v4167 = vpop.f32.mrb[0].mxu0
        %v4168 = vadd.f32 %v4007, %v4167
        %v4169 = vpop.f32.mrb[0].mxu0
        %v4170 = vpop.f32.mrb[0].mxu0
        %v4171 = vadd.f32 %v4010, %v4170
        %v4172 = vpop.f32.mrb[0].mxu0
        %4173 = vmatprep.mubr.bf16.mxu0 %v3260
        %4174 = vmatmul.mubr.bf16.gmra.mrb[0].mxu0 %v3092
        %v4175 = vpop.f32.mrb[0].mxu0
        %v4176 = vadd.f32 %v4015, %v4175
        %v4177 = vpop.f32.mrb[0].mxu0
        %v4178 = vpop.f32.mrb[0].mxu0
        %v4179 = vadd.f32 %v4018, %v4178
        %v4180 = vpop.f32.mrb[0].mxu0
        %4181 = vmatprep.mubr.bf16.mxu0 %v3263
        %4182 = vmatmul.mubr.bf16.gmra.mrb[0].mxu0 %v3104
        %v4183 = vpop.f32.mrb[0].mxu0
        %v4184 = vadd.f32 %v4023, %v4183
        %v4185 = vpop.f32.mrb[0].mxu0
        %v4186 = vpop.f32.mrb[0].mxu0
        %v4187 = vadd.f32 %v4026, %v4186
        %v4188 = vpop.f32.mrb[0].mxu0
        %4189 = vmatprep.mubr.bf16.mxu0 %v3266
        %4190 = vmatmul.mubr.bf16.gmra.mrb[0].mxu0 %v3116
        %v4191 = vpop.f32.mrb[0].mxu0
        %v4192 = vadd.f32 %v4031, %v4191
        %v4193 = vpop.f32.mrb[0].mxu0
        %v4194 = vpop.f32.mrb[0].mxu0
        %v4195 = vadd.f32 %v4034, %v4194
        %v4196 = vpop.f32.mrb[0].mxu0
        %4197 = vmatprep.mubr.bf16.mxu0 %v3269
        %4198 = vmatmul.mubr.bf16.gmra.mrb[0].mxu0 %v3128
        %v4199 = vpop.f32.mrb[0].mxu0
        %v4200 = vadd.f32 %v4039, %v4199
        %v4201 = vpop.f32.mrb[0].mxu0
        %v4202 = vpop.f32.mrb[0].mxu0
        %v4203 = vadd.f32 %v4042, %v4202
        %v4204 = vpop.f32.mrb[0].mxu0
        %4205 = vmatprep.mubr.bf16.mxu0 %v3272
        %4206 = vmatmul.mubr.bf16.gmra.mrb[0].mxu0 %v3140
        %v4207 = vpop.f32.mrb[0].mxu0
        %v4208 = vadd.f32 %v4047, %v4207
        %v4209 = vpop.f32.mrb[0].mxu0
        %v4210 = vpop.f32.mrb[0].mxu0
        %v4211 = vadd.f32 %v4050, %v4210
        %v4212 = vpop.f32.mrb[0].mxu0
        %4213 = vmatprep.mubr.bf16.mxu0 %v3275
        %4214 = vmatmul.mubr.bf16.gmra.mrb[0].mxu0 %v3152
        %v4215 = vpop.f32.mrb[0].mxu0
        %v4216 = vadd.f32 %v4055, %v4215
        %v4217 = vpop.f32.mrb[0].mxu0
        %v4218 = vpop.f32.mrb[0].mxu0
        %v4219 = vadd.f32 %v4058, %v4218
        %v4220 = vpop.f32.mrb[0].mxu0
        %4221 = vmatprep.mubr.bf16.mxu0 %v3278
        %4222 = vmatmul.mubr.bf16.gmra.mrb[0].mxu0 %v3164
        %v4223 = vpop.f32.mrb[0].mxu0
        %v4224 = vadd.f32 %v4063, %v4223
        %v4225 = vpop.f32.mrb[0].mxu0
        %v4226 = vpop.f32.mrb[0].mxu0
        %v4227 = vadd.f32 %v4066, %v4226
        %v4228 = vpop.f32.mrb[0].mxu0
        %4229 = vmatprep.mubr.bf16.mxu0 %v3281
        %4230 = vmatmul.mubr.bf16.gmra.mrb[0].mxu0 %v3176
        %v4231 = vpop.f32.mrb[0].mxu0
        %v4232 = vadd.f32 %v4071, %v4231
        %v4233 = vpop.f32.mrb[0].mxu0
        %v4234 = vpop.f32.mrb[0].mxu0
        %v4235 = vadd.f32 %v4074, %v4234
        %v4236 = vpop.f32.mrb[0].mxu0
        %4237 = vmatprep.mubr.bf16.mxu0 %v3284
        %4238 = vmatmul.mubr.bf16.gmra.mrb[0].mxu0 %v3188
        %v4239 = vpop.f32.mrb[0].mxu0
        %v4240 = vadd.f32 %v4079, %v4239
        %v4241 = vpop.f32.mrb[0].mxu0
        %v4242 = vpop.f32.mrb[0].mxu0
        %v4243 = vadd.f32 %v4082, %v4242
        %v4244 = vpop.f32.mrb[0].mxu0
        %4245 = vmatprep.mubr.bf16.mxu0 %v3318
        %4246 = vmatmul.mubr.bf16.gmra.mrb[0].mxu0 %v3312
        %v4247 = vpop.f32.mrb[0].mxu0
        %v4248 = vadd.f32 %v4087, %v4247
        %v4249 = vpop.f32.mrb[0].mxu0
        %v4250 = vpop.f32.mrb[0].mxu0
        %v4251 = vadd.f32 %v4090, %v4250
        %v4252 = vpop.f32.mrb[0].mxu0
        %4253 = vdwg.mxu0
        %4254 = vmatprep.subr.bf16.mxu0 0
        %4255 = vmatpush1.bf16.msra.mxu0 %v3675
        %4256 = vmatprep.subr.bf16.mxu0 0
        %4257 = vmatpush1.bf16.msra.mxu0 %v3676
        %4258 = vmatprep.subr.bf16.mxu0 0
        %4259 = vmatpush1.bf16.msra.mxu0 %v3677
        %4260 = vmatprep.subr.bf16.mxu0 0
        %4261 = vmatpush1.bf16.msra.mxu0 %v3678
        %4262 = vmatprep.subr.bf16.mxu0 0
        %4263 = vmatpush1.bf16.msra.mxu0 %v3679
        %4264 = vmatprep.subr.bf16.mxu0 0
        %4265 = vmatpush1.bf16.msra.mxu0 %v3680
        %4266 = vmatprep.subr.bf16.mxu0 0
        %4267 = vmatpush1.bf16.msra.mxu0 %v3681
        %4268 = vmatprep.subr.bf16.mxu0 0
        %4269 = vmatpush1.bf16.msra.mxu0 %v3682
        %4270 = vmatprep.subr.bf16.mxu0 0
        %4271 = vmatpush1.bf16.msra.mxu0 %v3683
        %4272 = vmatprep.subr.bf16.mxu0 0
        %4273 = vmatpush1.bf16.msra.mxu0 %v3684
        %4274 = vmatprep.subr.bf16.mxu0 0
        %4275 = vmatpush1.bf16.msra.mxu0 %v3685
        %4276 = vmatprep.subr.bf16.mxu0 0
        %4277 = vmatpush1.bf16.msra.mxu0 %v3686
        %4278 = vmatprep.subr.bf16.mxu0 0
        %4279 = vmatpush1.bf16.msra.mxu0 %v3687
        %4280 = vmatprep.subr.bf16.mxu0 0
        %4281 = vmatpush1.bf16.msra.mxu0 %v3688
        %4282 = vmatprep.subr.bf16.mxu0 0
        %4283 = vmatpush1.bf16.msra.mxu0 %v3689
        %4284 = vmatprep.subr.bf16.mxu0 0
        %4285 = vmatpush1.bf16.msra.mxu0 %v3690
        %4286 = vmatprep.mubr.bf16.mxu0 %v3032
        %4287 = vmatmul.mubr.bf16.gmra.mrb[0].mxu0 %v2965
        %v4288 = vpop.f32.mrb[0].mxu0
        %v4289 = vadd.f32 %v4128, %v4288
        %v4290 = vpop.f32.mrb[0].mxu0
        %v4291 = vpop.f32.mrb[0].mxu0
        %v4292 = vadd.f32 %v4131, %v4291
        %v4293 = vpop.f32.mrb[0].mxu0
        %4294 = vmatprep.mubr.bf16.mxu0 %v3044
        %4295 = vmatmul.mubr.bf16.gmra.mrb[0].mxu0 %v2967
        %v4296 = vpop.f32.mrb[0].mxu0
        %v4297 = vadd.f32 %v4136, %v4296
        %v4298 = vpop.f32.mrb[0].mxu0
        %v4299 = vpop.f32.mrb[0].mxu0
        %v4300 = vadd.f32 %v4139, %v4299
        %v4301 = vpop.f32.mrb[0].mxu0
        %4302 = vmatprep.mubr.bf16.mxu0 %v3056
        %4303 = vmatmul.mubr.bf16.gmra.mrb[0].mxu0 %v2969
        %v4304 = vpop.f32.mrb[0].mxu0
        %v4305 = vadd.f32 %v4144, %v4304
        %v4306 = vpop.f32.mrb[0].mxu0
        %v4307 = vpop.f32.mrb[0].mxu0
        %v4308 = vadd.f32 %v4147, %v4307
        %v4309 = vpop.f32.mrb[0].mxu0
        %4310 = vmatprep.mubr.bf16.mxu0 %v3068
        %4311 = vmatmul.mubr.bf16.gmra.mrb[0].mxu0 %v2971
        %v4312 = vpop.f32.mrb[0].mxu0
        %v4313 = vadd.f32 %v4152, %v4312
        %v4314 = vpop.f32.mrb[0].mxu0
        %v4315 = vpop.f32.mrb[0].mxu0
        %v4316 = vadd.f32 %v4155, %v4315
        %v4317 = vpop.f32.mrb[0].mxu0
        %4318 = vmatprep.mubr.bf16.mxu0 %v3080
        %4319 = vmatmul.mubr.bf16.gmra.mrb[0].mxu0 %v2973
        %v4320 = vpop.f32.mrb[0].mxu0
        %v4321 = vadd.f32 %v4160, %v4320
        %v4322 = vpop.f32.mrb[0].mxu0
        %v4323 = vpop.f32.mrb[0].mxu0
        %v4324 = vadd.f32 %v4163, %v4323
        %v4325 = vpop.f32.mrb[0].mxu0
        %4326 = vmatprep.mubr.bf16.mxu0 %v3092
        %4327 = vmatmul.mubr.bf16.gmra.mrb[0].mxu0 %v2975
        %v4328 = vpop.f32.mrb[0].mxu0
        %v4329 = vadd.f32 %v4168, %v4328
        %v4330 = vpop.f32.mrb[0].mxu0
        %v4331 = vpop.f32.mrb[0].mxu0
        %v4332 = vadd.f32 %v4171, %v4331
        %v4333 = vpop.f32.mrb[0].mxu0
        %4334 = vmatprep.mubr.bf16.mxu0 %v3104
        %4335 = vmatmul.mubr.bf16.gmra.mrb[0].mxu0 %v2977
        %v4336 = vpop.f32.mrb[0].mxu0
        %v4337 = vadd.f32 %v4176, %v4336
        %v4338 = vpop.f32.mrb[0].mxu0
        %v4339 = vpop.f32.mrb[0].mxu0
        %v4340 = vadd.f32 %v4179, %v4339
        %v4341 = vpop.f32.mrb[0].mxu0
        %4342 = vmatprep.mubr.bf16.mxu0 %v3116
        %4343 = vmatmul.mubr.bf16.gmra.mrb[0].mxu0 %v2979
        %v4344 = vpop.f32.mrb[0].mxu0
        %v4345 = vadd.f32 %v4184, %v4344
        %v4346 = vpop.f32.mrb[0].mxu0
        %v4347 = vpop.f32.mrb[0].mxu0
        %v4348 = vadd.f32 %v4187, %v4347
        %v4349 = vpop.f32.mrb[0].mxu0
        %4350 = vmatprep.mubr.bf16.mxu0 %v3128
        %4351 = vmatmul.mubr.bf16.gmra.mrb[0].mxu0 %v2981
        %v4352 = vpop.f32.mrb[0].mxu0
        %v4353 = vadd.f32 %v4192, %v4352
        %v4354 = vpop.f32.mrb[0].mxu0
        %v4355 = vpop.f32.mrb[0].mxu0
        %v4356 = vadd.f32 %v4195, %v4355
        %v4357 = vpop.f32.mrb[0].mxu0
        %4358 = vmatprep.mubr.bf16.mxu0 %v3140
        %4359 = vmatmul.mubr.bf16.gmra.mrb[0].mxu0 %v2983
        %v4360 = vpop.f32.mrb[0].mxu0
        %v4361 = vadd.f32 %v4200, %v4360
        %v4362 = vpop.f32.mrb[0].mxu0
        %v4363 = vpop.f32.mrb[0].mxu0
        %v4364 = vadd.f32 %v4203, %v4363
        %v4365 = vpop.f32.mrb[0].mxu0
        %4366 = vmatprep.mubr.bf16.mxu0 %v3152
        %4367 = vmatmul.mubr.bf16.gmra.mrb[0].mxu0 %v2985
        %v4368 = vpop.f32.mrb[0].mxu0
        %v4369 = vadd.f32 %v4208, %v4368
        %v4370 = vpop.f32.mrb[0].mxu0
        %v4371 = vpop.f32.mrb[0].mxu0
        %v4372 = vadd.f32 %v4211, %v4371
        %v4373 = vpop.f32.mrb[0].mxu0
        %4374 = vmatprep.mubr.bf16.mxu0 %v3164
        %4375 = vmatmul.mubr.bf16.gmra.mrb[0].mxu0 %v2987
        %v4376 = vpop.f32.mrb[0].mxu0
        %v4377 = vadd.f32 %v4216, %v4376
        %v4378 = vpop.f32.mrb[0].mxu0
        %v4379 = vpop.f32.mrb[0].mxu0
        %v4380 = vadd.f32 %v4219, %v4379
        %v4381 = vpop.f32.mrb[0].mxu0
        %4382 = vmatprep.mubr.bf16.mxu0 %v3176
        %4383 = vmatmul.mubr.bf16.gmra.mrb[0].mxu0 %v2989
        %v4384 = vpop.f32.mrb[0].mxu0
        %v4385 = vadd.f32 %v4224, %v4384
        %v4386 = vpop.f32.mrb[0].mxu0
        %v4387 = vpop.f32.mrb[0].mxu0
        %v4388 = vadd.f32 %v4227, %v4387
        %v4389 = vpop.f32.mrb[0].mxu0
        %4390 = vmatprep.mubr.bf16.mxu0 %v3188
        %4391 = vmatmul.mubr.bf16.gmra.mrb[0].mxu0 %v2991
        %v4392 = vpop.f32.mrb[0].mxu0
        %v4393 = vadd.f32 %v4232, %v4392
        %v4394 = vpop.f32.mrb[0].mxu0
        %v4395 = vpop.f32.mrb[0].mxu0
        %v4396 = vadd.f32 %v4235, %v4395
        %v4397 = vpop.f32.mrb[0].mxu0
        %4398 = vmatprep.mubr.bf16.mxu0 %v3312
        %4399 = vmatmul.mubr.bf16.gmra.mrb[0].mxu0 %v2993
        %v4400 = vpop.f32.mrb[0].mxu0
        %v4401 = vadd.f32 %v4240, %v4400
        %v4402 = vpop.f32.mrb[0].mxu0
        %v4403 = vpop.f32.mrb[0].mxu0
        %v4404 = vadd.f32 %v4243, %v4403
        %v4405 = vpop.f32.mrb[0].mxu0
        %4406 = vmatprep.mubr.bf16.mxu0 %v3331
        %4407 = vmatmul.mubr.bf16.gmra.mrb[0].mxu0 %v2995
        %v4408 = vpop.f32.mrb[0].mxu0
        %v4409 = vadd.f32 %v4248, %v4408
        %v4410 = vpop.f32.mrb[0].mxu0
        %v4411 = vpop.f32.mrb[0].mxu0
        %v4412 = vadd.f32 %v4251, %v4411
        %v4413 = vpop.f32.mrb[0].mxu0
        %4414 = vdwg.mxu0
        %4415 = vmatprep.subr.bf16.mxu0 0
        %4416 = vmatpush1.bf16.msra.mxu0 %v3691
        %4417 = vmatprep.subr.bf16.mxu0 0
        %4418 = vmatpush1.bf16.msra.mxu0 %v3692
        %4419 = vmatprep.subr.bf16.mxu0 0
        %4420 = vmatpush1.bf16.msra.mxu0 %v3693
        %4421 = vmatprep.subr.bf16.mxu0 0
        %4422 = vmatpush1.bf16.msra.mxu0 %v3694
        %4423 = vmatprep.subr.bf16.mxu0 0
        %4424 = vmatpush1.bf16.msra.mxu0 %v3695
        %4425 = vmatprep.subr.bf16.mxu0 0
        %4426 = vmatpush1.bf16.msra.mxu0 %v3696
        %4427 = vmatprep.subr.bf16.mxu0 0
        %4428 = vmatpush1.bf16.msra.mxu0 %v3697
        %4429 = vmatprep.subr.bf16.mxu0 0
        %4430 = vmatpush1.bf16.msra.mxu0 %v3698
        %4431 = vmatprep.subr.bf16.mxu0 0
        %4432 = vmatpush1.bf16.msra.mxu0 0
        %4433 = vmatprep.subr.bf16.mxu0 0
        %4434 = vmatpush1.bf16.msra.mxu0 0
        %4435 = vmatprep.subr.bf16.mxu0 0
        %4436 = vmatpush1.bf16.msra.mxu0 0
        %4437 = vmatprep.subr.bf16.mxu0 0
        %4438 = vmatpush1.bf16.msra.mxu0 0
        %4439 = vmatprep.subr.bf16.mxu0 0
        %4440 = vmatpush1.bf16.msra.mxu0 0
        %4441 = vmatprep.subr.bf16.mxu0 0
        %4442 = vmatpush1.bf16.msra.mxu0 0
        %4443 = vmatprep.subr.bf16.mxu0 0
        %4444 = vmatpush1.bf16.msra.mxu0 0
        %4445 = vmatprep.subr.bf16.mxu0 0
        %4446 = vmatpush1.bf16.msra.mxu0 0
        %4447 = vmatprep.mubr.bf16.mxu0 0
        %4448 = vmatmul.mubr.bf16.gmra.mrb[0].mxu0 %v3245
        %v4449 = vpop.f32.mrb[0].mxu0
        %v4450 = vadd.f32 %v4289, %v4449
        %v4451 = vpop.f32.mrb[0].mxu0
        %v4452 = vpop.f32.mrb[0].mxu0
        %v4453 = vadd.f32 %v4292, %v4452
        %v4454 = vpop.f32.mrb[0].mxu0
        %4455 = vmatprep.mubr.bf16.mxu0 0
        %4456 = vmatmul.mubr.bf16.gmra.mrb[0].mxu0 %v3248
        %v4457 = vpop.f32.mrb[0].mxu0
        %v4458 = vadd.f32 %v4297, %v4457
        %v4459 = vpop.f32.mrb[0].mxu0
        %v4460 = vpop.f32.mrb[0].mxu0
        %v4461 = vadd.f32 %v4300, %v4460
        %v4462 = vpop.f32.mrb[0].mxu0
        %4463 = vmatprep.mubr.bf16.mxu0 0
        %4464 = vmatmul.mubr.bf16.gmra.mrb[0].mxu0 %v3251
        %v4465 = vpop.f32.mrb[0].mxu0
        %v4466 = vadd.f32 %v4305, %v4465
        %v4467 = vpop.f32.mrb[0].mxu0
        %v4468 = vpop.f32.mrb[0].mxu0
        %v4469 = vadd.f32 %v4308, %v4468
        %v4470 = vpop.f32.mrb[0].mxu0
        %4471 = vmatprep.mubr.bf16.mxu0 0
        %4472 = vmatmul.mubr.bf16.gmra.mrb[0].mxu0 %v3254
        %v4473 = vpop.f32.mrb[0].mxu0
        %v4474 = vadd.f32 %v4313, %v4473
        %v4475 = vpop.f32.mrb[0].mxu0
        %v4476 = vpop.f32.mrb[0].mxu0
        %v4477 = vadd.f32 %v4316, %v4476
        %v4478 = vpop.f32.mrb[0].mxu0
        %4479 = vmatprep.mubr.bf16.mxu0 0
        %4480 = vmatmul.mubr.bf16.gmra.mrb[0].mxu0 %v3257
        %v4481 = vpop.f32.mrb[0].mxu0
        %v4482 = vadd.f32 %v4321, %v4481
        %v4483 = vpop.f32.mrb[0].mxu0
        %v4484 = vpop.f32.mrb[0].mxu0
        %v4485 = vadd.f32 %v4324, %v4484
        %v4486 = vpop.f32.mrb[0].mxu0
        %4487 = vmatprep.mubr.bf16.mxu0 0
        %4488 = vmatmul.mubr.bf16.gmra.mrb[0].mxu0 %v3260
        %v4489 = vpop.f32.mrb[0].mxu0
        %v4490 = vadd.f32 %v4329, %v4489
        %v4491 = vpop.f32.mrb[0].mxu0
        %v4492 = vpop.f32.mrb[0].mxu0
        %v4493 = vadd.f32 %v4332, %v4492
        %v4494 = vpop.f32.mrb[0].mxu0
        %4495 = vmatprep.mubr.bf16.mxu0 0
        %4496 = vmatmul.mubr.bf16.gmra.mrb[0].mxu0 %v3263
        %v4497 = vpop.f32.mrb[0].mxu0
        %v4498 = vadd.f32 %v4337, %v4497
        %v4499 = vpop.f32.mrb[0].mxu0
        %v4500 = vpop.f32.mrb[0].mxu0
        %v4501 = vadd.f32 %v4340, %v4500
        %v4502 = vpop.f32.mrb[0].mxu0
        %4503 = vmatprep.mubr.bf16.mxu0 0
        %4504 = vmatmul.mubr.bf16.gmra.mrb[0].mxu0 %v3266
        %v4505 = vpop.f32.mrb[0].mxu0
        %v4506 = vadd.f32 %v4345, %v4505
        %v4507 = vpop.f32.mrb[0].mxu0
        %v4508 = vpop.f32.mrb[0].mxu0
        %v4509 = vadd.f32 %v4348, %v4508
        %v4510 = vpop.f32.mrb[0].mxu0
        %4511 = vmatprep.mubr.bf16.mxu0 0
        %4512 = vmatmul.mubr.bf16.gmra.mrb[0].mxu0 %v3269
        %v4513 = vpop.f32.mrb[0].mxu0
        %v4514 = vadd.f32 %v4353, %v4513
        %v4515 = vpop.f32.mrb[0].mxu0
        %v4516 = vpop.f32.mrb[0].mxu0
        %v4517 = vadd.f32 %v4356, %v4516
        %v4518 = vpop.f32.mrb[0].mxu0
        %4519 = vmatprep.mubr.bf16.mxu0 0
        %4520 = vmatmul.mubr.bf16.gmra.mrb[0].mxu0 %v3272
        %v4521 = vpop.f32.mrb[0].mxu0
        %v4522 = vadd.f32 %v4361, %v4521
        %v4523 = vpop.f32.mrb[0].mxu0
        %v4524 = vpop.f32.mrb[0].mxu0
        %v4525 = vadd.f32 %v4364, %v4524
        %v4526 = vpop.f32.mrb[0].mxu0
        %4527 = vmatprep.mubr.bf16.mxu0 0
        %4528 = vmatmul.mubr.bf16.gmra.mrb[0].mxu0 %v3275
        %v4529 = vpop.f32.mrb[0].mxu0
        %v4530 = vadd.f32 %v4369, %v4529
        %v4531 = vpop.f32.mrb[0].mxu0
        %v4532 = vpop.f32.mrb[0].mxu0
        %v4533 = vadd.f32 %v4372, %v4532
        %v4534 = vpop.f32.mrb[0].mxu0
        %4535 = vmatprep.mubr.bf16.mxu0 0
        %4536 = vmatmul.mubr.bf16.gmra.mrb[0].mxu0 %v3278
        %v4537 = vpop.f32.mrb[0].mxu0
        %v4538 = vadd.f32 %v4377, %v4537
        %v4539 = vpop.f32.mrb[0].mxu0
        %v4540 = vpop.f32.mrb[0].mxu0
        %v4541 = vadd.f32 %v4380, %v4540
        %v4542 = vpop.f32.mrb[0].mxu0
        %4543 = vmatprep.mubr.bf16.mxu0 0
        %4544 = vmatmul.mubr.bf16.gmra.mrb[0].mxu0 %v3281
        %v4545 = vpop.f32.mrb[0].mxu0
        %v4546 = vadd.f32 %v4385, %v4545
        %v4547 = vpop.f32.mrb[0].mxu0
        %v4548 = vpop.f32.mrb[0].mxu0
        %v4549 = vadd.f32 %v4388, %v4548
        %v4550 = vpop.f32.mrb[0].mxu0
        %4551 = vmatprep.mubr.bf16.mxu0 0
        %4552 = vmatmul.mubr.bf16.gmra.mrb[0].mxu0 %v3284
        %v4553 = vpop.f32.mrb[0].mxu0
        %v4554 = vadd.f32 %v4393, %v4553
        %v4555 = vpop.f32.mrb[0].mxu0
        %v4556 = vpop.f32.mrb[0].mxu0
        %v4557 = vadd.f32 %v4396, %v4556
        %v4558 = vpop.f32.mrb[0].mxu0
        %4559 = vmatprep.mubr.bf16.mxu0 0
        %4560 = vmatmul.mubr.bf16.gmra.mrb[0].mxu0 %v3318
        %v4561 = vpop.f32.mrb[0].mxu0
        %v4562 = vadd.f32 %v4401, %v4561
        %v4563 = vpop.f32.mrb[0].mxu0
        %v4564 = vpop.f32.mrb[0].mxu0
        %v4565 = vadd.f32 %v4404, %v4564
        %v4566 = vpop.f32.mrb[0].mxu0
        %4567 = vmatprep.mubr.bf16.mxu0 0
        %4568 = vmatmul.mubr.bf16.gmra.mrb[0].mxu0 %v3337
        %v4569 = vpop.f32.mrb[0].mxu0
        %v4570 = vadd.f32 %v4409, %v4569
        %v4571 = vpop.f32.mrb[0].mxu0
        %v4572 = vpop.f32.mrb[0].mxu0
        %v4573 = vadd.f32 %v4412, %v4572
        %v4574 = vpop.f32.mrb[0].mxu0
        %4575 = vdwg.mxu0
        %4576 = vst [vmem:[%s2337] sm:$0xff] %v4450
        %4577 = vst [vmem:[%s2337 + $0x8] sm:$0xff] %v4453
        %4578 = vst [vmem:[%s2337 + $0x10] sm:$0xff] %v4458
        %4579 = vst [vmem:[%s2337 + $0x18] sm:$0xff] %v4461
        %4580 = vst [vmem:[%s2337 + $0x20] sm:$0xff] %v4466
        %4581 = vst [vmem:[%s2337 + $0x28] sm:$0xff] %v4469
        %4582 = vst [vmem:[%s2337 + $0x30] sm:$0xff] %v4474
        %4583 = vst [vmem:[%s2337 + $0x38] sm:$0xff] %v4477
        %4584 = vst [vmem:[%s2337 + $0x40] sm:$0xff] %v4482
        %4585 = vst [vmem:[%s2337 + $0x48] sm:$0xff] %v4485
        %4586 = vst [vmem:[%s2337 + $0x50] sm:$0xff] %v4490
        %4587 = vst [vmem:[%s2337 + $0x58] sm:$0xff] %v4493
        %4588 = vst [vmem:[%s2337 + $0x60] sm:$0xff] %v4498
        %4589 = vst [vmem:[%s2337 + $0x68] sm:$0xff] %v4501
        %4590 = vst [vmem:[%s2337 + $0x70] sm:$0xff] %v4506
        %4591 = vst [vmem:[%s2337 + $0x78] sm:$0xff] %v4509
        %4592 = vst [vmem:[%s2337 + $0x80] sm:$0xff] %v4514
        %4593 = vst [vmem:[%s2337 + $0x88] sm:$0xff] %v4517
        %4594 = vst [vmem:[%s2337 + $0x90] sm:$0xff] %v4522
        %4595 = vst [vmem:[%s2337 + $0x98] sm:$0xff] %v4525
        %4596 = vst [vmem:[%s2337 + $0xa0] sm:$0xff] %v4530
        %4597 = vst [vmem:[%s2337 + $0xa8] sm:$0xff] %v4533
        %4598 = vst [vmem:[%s2337 + $0xb0] sm:$0xff] %v4538
        %4599 = vst [vmem:[%s2337 + $0xb8] sm:$0xff] %v4541
        %4600 = vst [vmem:[%s2337 + $0xc0] sm:$0xff] %v4546
        %4601 = vst [vmem:[%s2337 + $0xc8] sm:$0xff] %v4549
        %4602 = vst [vmem:[%s2337 + $0xd0] sm:$0xff] %v4554
        %4603 = vst [vmem:[%s2337 + $0xd8] sm:$0xff] %v4557
        %4604 = vst [vmem:[%s2337 + $0xe0] sm:$0xff] %v4562
        %4605 = vst [vmem:[%s2337 + $0xe8] sm:$0xff] %v4565
        %4606 = vst [vmem:[%s2337 + $0xf0] sm:$0xff] %v4570
        %4607 = vst [vmem:[%s2337 + $0xf8] sm:$0xff] %v4573
        %v4608 = vld [vmem:[%s375] sm:$0xff]
        %v4609 = vld [vmem:[%s375 + $0x8] sm:$0xff]
        %v4610 = vld [vmem:[%s375 + $0x10] sm:$0xff]
        %v4611 = vld [vmem:[%s375 + $0x18] sm:$0xff]
        %v4612 = vld [vmem:[%s375 + $0x20] sm:$0xff]
        %v4613 = vld [vmem:[%s375 + $0x28] sm:$0xff]
        %v4614 = vld [vmem:[%s375 + $0x30] sm:$0xff]
        %v4615 = vld [vmem:[%s375 + $0x38] sm:$0xff]
        %v4616 = vld [vmem:[%s375 + $0x40] sm:$0xff]
        %v4617 = vld [vmem:[%s375 + $0x48] sm:$0xff]
        %v4618 = vld [vmem:[%s375 + $0x50] sm:$0xff]
        %v4619 = vld [vmem:[%s375 + $0x58] sm:$0xff]
        %v4620 = vld [vmem:[%s375 + $0x60] sm:$0xff]
        %v4621 = vld [vmem:[%s375 + $0x68] sm:$0xff]
        %v4622 = vld [vmem:[%s375 + $0x70] sm:$0xff]
        %v4623 = vld [vmem:[%s375 + $0x78] sm:$0xff]
        %v4624 = vld [vmem:[%s375 + $0x80] sm:$0xff]
        %v4625 = vld [vmem:[%s375 + $0x88] sm:$0xff]
        %v4626 = vld [vmem:[%s375 + $0x90] sm:$0xff]
        %v4627 = vld [vmem:[%s375 + $0x98] sm:$0xff]
        %v4628 = vld [vmem:[%s375 + $0xa0] sm:$0xff]
        %v4629 = vld [vmem:[%s375 + $0xa8] sm:$0xff]
        %v4630 = vld [vmem:[%s375 + $0xb0] sm:$0xff]
        %v4631 = vld [vmem:[%s375 + $0xb8] sm:$0xff]
        %v4632 = vld [vmem:[%s375 + $0xc0] sm:$0xff]
        %v4633 = vld [vmem:[%s375 + $0xc8] sm:$0xff]
        %v4634 = vld [vmem:[%s375 + $0xd0] sm:$0xff]
        %v4635 = vld [vmem:[%s375 + $0xd8] sm:$0xff]
        %v4636 = vld [vmem:[%s375 + $0xe0] sm:$0xff]
        %v4637 = vld [vmem:[%s375 + $0xe8] sm:$0xff]
        %v4638 = vld [vmem:[%s375 + $0xf0] sm:$0xff]
        %v4639 = vld [vmem:[%s375 + $0xf8] sm:$0xff]
        %v4640 = vadd.f32 %v4608, %v4609
        %v4641 = vadd.f32 %v4640, %v4610
        %v4642 = vadd.f32 %v4641, %v4611
        %v4643 = vadd.f32 %v4642, %v4612
        %v4644 = vadd.f32 %v4643, %v4613
        %v4645 = vadd.f32 %v4644, %v4614
        %v4646 = vadd.f32 %v4645, %v4615
        %v4647 = vadd.f32 %v4646, %v4616
        %v4648 = vadd.f32 %v4647, %v4617
        %v4649 = vadd.f32 %v4648, %v4618
        %v4650 = vadd.f32 %v4649, %v4619
        %v4651 = vadd.f32 %v4650, %v4620
        %v4652 = vadd.f32 %v4651, %v4621
        %v4653 = vadd.f32 %v4652, %v4622
        %v4654 = vadd.f32 %v4653, %v4623
        %v4655 = vadd.f32 %v4654, %v4624
        %v4656 = vadd.f32 %v4655, %v4625
        %v4657 = vadd.f32 %v4656, %v4626
        %v4658 = vadd.f32 %v4657, %v4627
        %v4659 = vadd.f32 %v4658, %v4628
        %v4660 = vadd.f32 %v4659, %v4629
        %v4661 = vadd.f32 %v4660, %v4630
        %v4662 = vadd.f32 %v4661, %v4631
        %v4663 = vadd.f32 %v4662, %v4632
        %v4664 = vadd.f32 %v4663, %v4633
        %v4665 = vadd.f32 %v4664, %v4634
        %v4666 = vadd.f32 %v4665, %v4635
        %v4667 = vadd.f32 %v4666, %v4636
        %v4668 = vadd.f32 %v4667, %v4637
        %v4669 = vadd.f32 %v4668, %v4638
        %v4670 = vadd.f32 %v4669, %v4639
        %v4671 = vrot.slane %v4670, 4
        %v4672 = vadd.f32 %v4670, %v4671
        %v4673 = vrot.slane %v4672, 2
        %v4674 = vadd.f32 %v4672, %v4673
        %v4675 = vrot.slane %v4674, 1
        %v4676 = vadd.f32 %v4674, %v4675
        %v4677 = vmul.f32 %v4676, 0.00390625
        %v4678 = vsub.f32 %v4608, %v4677
        %v4679 = vsub.f32 %v4609, %v4677
        %v4680 = vsub.f32 %v4610, %v4677
        %v4681 = vsub.f32 %v4611, %v4677
        %v4682 = vsub.f32 %v4612, %v4677
        %v4683 = vsub.f32 %v4613, %v4677
        %v4684 = vsub.f32 %v4614, %v4677
        %v4685 = vsub.f32 %v4615, %v4677
        %v4686 = vsub.f32 %v4616, %v4677
        %v4687 = vsub.f32 %v4617, %v4677
        %v4688 = vsub.f32 %v4618, %v4677
        %v4689 = vsub.f32 %v4619, %v4677
        %v4690 = vsub.f32 %v4620, %v4677
        %v4691 = vsub.f32 %v4621, %v4677
        %v4692 = vsub.f32 %v4622, %v4677
        %v4693 = vsub.f32 %v4623, %v4677
        %v4694 = vsub.f32 %v4624, %v4677
        %v4695 = vsub.f32 %v4625, %v4677
        %v4696 = vsub.f32 %v4626, %v4677
        %v4697 = vsub.f32 %v4627, %v4677
        %v4698 = vsub.f32 %v4628, %v4677
        %v4699 = vsub.f32 %v4629, %v4677
        %v4700 = vsub.f32 %v4630, %v4677
        %v4701 = vsub.f32 %v4631, %v4677
        %v4702 = vsub.f32 %v4632, %v4677
        %v4703 = vsub.f32 %v4633, %v4677
        %v4704 = vsub.f32 %v4634, %v4677
        %v4705 = vsub.f32 %v4635, %v4677
        %v4706 = vsub.f32 %v4636, %v4677
        %v4707 = vsub.f32 %v4637, %v4677
        %v4708 = vsub.f32 %v4638, %v4677
        %v4709 = vsub.f32 %v4639, %v4677
        %v4710 = vmul.f32 %v4678, %v4678
        %v4711 = vmul.f32 %v4679, %v4679
        %v4712 = vmul.f32 %v4680, %v4680
        %v4713 = vmul.f32 %v4681, %v4681
        %v4714 = vmul.f32 %v4682, %v4682
        %v4715 = vmul.f32 %v4683, %v4683
        %v4716 = vmul.f32 %v4684, %v4684
        %v4717 = vmul.f32 %v4685, %v4685
        %v4718 = vmul.f32 %v4686, %v4686
        %v4719 = vmul.f32 %v4687, %v4687
        %v4720 = vmul.f32 %v4688, %v4688
        %v4721 = vmul.f32 %v4689, %v4689
        %v4722 = vmul.f32 %v4690, %v4690
        %v4723 = vmul.f32 %v4691, %v4691
        %v4724 = vmul.f32 %v4692, %v4692
        %v4725 = vmul.f32 %v4693, %v4693
        %v4726 = vmul.f32 %v4694, %v4694
        %v4727 = vmul.f32 %v4695, %v4695
        %v4728 = vmul.f32 %v4696, %v4696
        %v4729 = vmul.f32 %v4697, %v4697
        %v4730 = vmul.f32 %v4698, %v4698
        %v4731 = vmul.f32 %v4699, %v4699
        %v4732 = vmul.f32 %v4700, %v4700
        %v4733 = vmul.f32 %v4701, %v4701
        %v4734 = vmul.f32 %v4702, %v4702
        %v4735 = vmul.f32 %v4703, %v4703
        %v4736 = vmul.f32 %v4704, %v4704
        %v4737 = vmul.f32 %v4705, %v4705
        %v4738 = vmul.f32 %v4706, %v4706
        %v4739 = vmul.f32 %v4707, %v4707
        %v4740 = vmul.f32 %v4708, %v4708
        %v4741 = vmul.f32 %v4709, %v4709
        %v4742 = vadd.f32 %v4710, %v4711
        %v4743 = vadd.f32 %v4742, %v4712
        %v4744 = vadd.f32 %v4743, %v4713
        %v4745 = vadd.f32 %v4744, %v4714
        %v4746 = vadd.f32 %v4745, %v4715
        %v4747 = vadd.f32 %v4746, %v4716
        %v4748 = vadd.f32 %v4747, %v4717
        %v4749 = vadd.f32 %v4748, %v4718
        %v4750 = vadd.f32 %v4749, %v4719
        %v4751 = vadd.f32 %v4750, %v4720
        %v4752 = vadd.f32 %v4751, %v4721
        %v4753 = vadd.f32 %v4752, %v4722
        %v4754 = vadd.f32 %v4753, %v4723
        %v4755 = vadd.f32 %v4754, %v4724
        %v4756 = vadd.f32 %v4755, %v4725
        %v4757 = vadd.f32 %v4756, %v4726
        %v4758 = vadd.f32 %v4757, %v4727
        %v4759 = vadd.f32 %v4758, %v4728
        %v4760 = vadd.f32 %v4759, %v4729
        %v4761 = vadd.f32 %v4760, %v4730
        %v4762 = vadd.f32 %v4761, %v4731
        %v4763 = vadd.f32 %v4762, %v4732
        %v4764 = vadd.f32 %v4763, %v4733
        %v4765 = vadd.f32 %v4764, %v4734
        %v4766 = vadd.f32 %v4765, %v4735
        %v4767 = vadd.f32 %v4766, %v4736
        %v4768 = vadd.f32 %v4767, %v4737
        %v4769 = vadd.f32 %v4768, %v4738
        %v4770 = vadd.f32 %v4769, %v4739
        %v4771 = vadd.f32 %v4770, %v4740
        %v4772 = vadd.f32 %v4771, %v4741
        %v4773 = vrot.slane %v4772, 4
        %v4774 = vadd.f32 %v4772, %v4773
        %v4775 = vrot.slane %v4774, 2
        %v4776 = vadd.f32 %v4774, %v4775
        %v4777 = vrot.slane %v4776, 1
        %v4778 = vadd.f32 %v4776, %v4777
        %v4779 = vmul.f32 %v4778, 0.00390625
        %v4780 = vld [vmem:[#allocation12] sm:$0x1]
        %v4781 = vadd.f32 %v4779, 1e-05
        %v4782 = vrsqrt.pop %v4781
        %v4783 = vmul.f32 %v4780, %v4782
        %v4785 = vlaneseq
        %v4786 = vshrl.u32 %v4785, 7
        %v4787 = vsub.s32 0, %v4786
        %v4788 = vrot.slane %v4783, %v4787
        %v4790 = vmul.f32 %v4678, %v4788
        %v4791 = vmul.f32 %v4679, %v4788
        %v4792 = vmul.f32 %v4680, %v4788
        %v4793 = vmul.f32 %v4681, %v4788
        %v4794 = vmul.f32 %v4682, %v4788
        %v4795 = vmul.f32 %v4683, %v4788
        %v4796 = vmul.f32 %v4684, %v4788
        %v4797 = vmul.f32 %v4685, %v4788
        %v4798 = vmul.f32 %v4686, %v4788
        %v4799 = vmul.f32 %v4687, %v4788
        %v4800 = vmul.f32 %v4688, %v4788
        %v4801 = vmul.f32 %v4689, %v4788
        %v4802 = vmul.f32 %v4690, %v4788
        %v4803 = vmul.f32 %v4691, %v4788
        %v4804 = vmul.f32 %v4692, %v4788
        %v4805 = vmul.f32 %v4693, %v4788
        %v4806 = vmul.f32 %v4694, %v4788
        %v4807 = vmul.f32 %v4695, %v4788
        %v4808 = vmul.f32 %v4696, %v4788
        %v4809 = vmul.f32 %v4697, %v4788
        %v4810 = vmul.f32 %v4698, %v4788
        %v4811 = vmul.f32 %v4699, %v4788
        %v4812 = vmul.f32 %v4700, %v4788
        %v4813 = vmul.f32 %v4701, %v4788
        %v4814 = vmul.f32 %v4702, %v4788
        %v4815 = vmul.f32 %v4703, %v4788
        %v4816 = vmul.f32 %v4704, %v4788
        %v4817 = vmul.f32 %v4705, %v4788
        %v4818 = vmul.f32 %v4706, %v4788
        %v4819 = vmul.f32 %v4707, %v4788
        %v4820 = vmul.f32 %v4708, %v4788
        %v4821 = vmul.f32 %v4709, %v4788
        %v4822 = vld [vmem:[#allocation14] sm:$0x1]
        %v4824 = vlaneseq
        %v4825 = vshrl.u32 %v4824, 7
        %v4826 = vsub.s32 0, %v4825
        %v4827 = vrot.slane %v4822, %v4826
        %v4829 = vadd.f32 %v4790, %v4827
        %v4830 = vadd.f32 %v4791, %v4827
        %v4831 = vadd.f32 %v4792, %v4827
        %v4832 = vadd.f32 %v4793, %v4827
        %v4833 = vadd.f32 %v4794, %v4827
        %v4834 = vadd.f32 %v4795, %v4827
        %v4835 = vadd.f32 %v4796, %v4827
        %v4836 = vadd.f32 %v4797, %v4827
        %v4837 = vadd.f32 %v4798, %v4827
        %v4838 = vadd.f32 %v4799, %v4827
        %v4839 = vadd.f32 %v4800, %v4827
        %v4840 = vadd.f32 %v4801, %v4827
        %v4841 = vadd.f32 %v4802, %v4827
        %v4842 = vadd.f32 %v4803, %v4827
        %v4843 = vadd.f32 %v4804, %v4827
        %v4844 = vadd.f32 %v4805, %v4827
        %v4845 = vadd.f32 %v4806, %v4827
        %v4846 = vadd.f32 %v4807, %v4827
        %v4847 = vadd.f32 %v4808, %v4827
        %v4848 = vadd.f32 %v4809, %v4827
        %v4849 = vadd.f32 %v4810, %v4827
        %v4850 = vadd.f32 %v4811, %v4827
        %v4851 = vadd.f32 %v4812, %v4827
        %v4852 = vadd.f32 %v4813, %v4827
        %v4853 = vadd.f32 %v4814, %v4827
        %v4854 = vadd.f32 %v4815, %v4827
        %v4855 = vadd.f32 %v4816, %v4827
        %v4856 = vadd.f32 %v4817, %v4827
        %v4857 = vadd.f32 %v4818, %v4827
        %v4858 = vadd.f32 %v4819, %v4827
        %v4859 = vadd.f32 %v4820, %v4827
        %v4860 = vadd.f32 %v4821, %v4827
        %v4861 = vld [vmem:[%s321] sm:$0xff]
        %v4862 = vld [vmem:[%s321 + $0x8] sm:$0xff]
        %v4863 = vld [vmem:[%s321 + $0x10] sm:$0xff]
        %v4864 = vld [vmem:[%s321 + $0x18] sm:$0xff]
        %v4865 = vld [vmem:[%s321 + $0x20] sm:$0xff]
        %v4866 = vld [vmem:[%s321 + $0x28] sm:$0xff]
        %v4867 = vld [vmem:[%s321 + $0x30] sm:$0xff]
        %v4868 = vld [vmem:[%s321 + $0x38] sm:$0xff]
        %v4869 = vld [vmem:[%s321 + $0x40] sm:$0xff]
        %v4870 = vld [vmem:[%s321 + $0x48] sm:$0xff]
        %v4871 = vld [vmem:[%s321 + $0x50] sm:$0xff]
        %v4872 = vld [vmem:[%s321 + $0x58] sm:$0xff]
        %v4873 = vld [vmem:[%s321 + $0x60] sm:$0xff]
        %v4874 = vld [vmem:[%s321 + $0x68] sm:$0xff]
        %v4875 = vld [vmem:[%s321 + $0x70] sm:$0xff]
        %v4876 = vld [vmem:[%s321 + $0x78] sm:$0xff]
        %v4877 = vld [vmem:[%s321 + $0x80] sm:$0xff]
        %v4878 = vld [vmem:[%s321 + $0x88] sm:$0xff]
        %v4879 = vld [vmem:[%s321 + $0x90] sm:$0xff]
        %v4880 = vld [vmem:[%s321 + $0x98] sm:$0xff]
        %v4881 = vld [vmem:[%s321 + $0xa0] sm:$0xff]
        %v4882 = vld [vmem:[%s321 + $0xa8] sm:$0xff]
        %v4883 = vld [vmem:[%s321 + $0xb0] sm:$0xff]
        %v4884 = vld [vmem:[%s321 + $0xb8] sm:$0xff]
        %v4885 = vld [vmem:[%s321 + $0xc0] sm:$0xff]
        %v4886 = vld [vmem:[%s321 + $0xc8] sm:$0xff]
        %v4887 = vld [vmem:[%s321 + $0xd0] sm:$0xff]
        %v4888 = vld [vmem:[%s321 + $0xd8] sm:$0xff]
        %v4889 = vld [vmem:[%s321 + $0xe0] sm:$0xff]
        %v4890 = vld [vmem:[%s321 + $0xe8] sm:$0xff]
        %v4891 = vld [vmem:[%s321 + $0xf0] sm:$0xff]
        %v4892 = vld [vmem:[%s321 + $0xf8] sm:$0xff]
        %v4893 = vadd.f32 %v4829, %v4861
        %v4894 = vadd.f32 %v4830, %v4862
        %v4895 = vadd.f32 %v4831, %v4863
        %v4896 = vadd.f32 %v4832, %v4864
        %v4897 = vadd.f32 %v4833, %v4865
        %v4898 = vadd.f32 %v4834, %v4866
        %v4899 = vadd.f32 %v4835, %v4867
        %v4900 = vadd.f32 %v4836, %v4868
        %v4901 = vadd.f32 %v4837, %v4869
        %v4902 = vadd.f32 %v4838, %v4870
        %v4903 = vadd.f32 %v4839, %v4871
        %v4904 = vadd.f32 %v4840, %v4872
        %v4905 = vadd.f32 %v4841, %v4873
        %v4906 = vadd.f32 %v4842, %v4874
        %v4907 = vadd.f32 %v4843, %v4875
        %v4908 = vadd.f32 %v4844, %v4876
        %v4909 = vadd.f32 %v4845, %v4877
        %v4910 = vadd.f32 %v4846, %v4878
        %v4911 = vadd.f32 %v4847, %v4879
        %v4912 = vadd.f32 %v4848, %v4880
        %v4913 = vadd.f32 %v4849, %v4881
        %v4914 = vadd.f32 %v4850, %v4882
        %v4915 = vadd.f32 %v4851, %v4883
        %v4916 = vadd.f32 %v4852, %v4884
        %v4917 = vadd.f32 %v4853, %v4885
        %v4918 = vadd.f32 %v4854, %v4886
        %v4919 = vadd.f32 %v4855, %v4887
        %v4920 = vadd.f32 %v4856, %v4888
        %v4921 = vadd.f32 %v4857, %v4889
        %v4922 = vadd.f32 %v4858, %v4890
        %v4923 = vadd.f32 %v4859, %v4891
        %v4924 = vadd.f32 %v4860, %v4892
        %4925 = vst [vmem:[%s375] sm:$0xff] %v4893
        %4926 = vst [vmem:[%s375 + $0x8] sm:$0xff] %v4894
        %4927 = vst [vmem:[%s375 + $0x10] sm:$0xff] %v4895
        %4928 = vst [vmem:[%s375 + $0x18] sm:$0xff] %v4896
        %4929 = vst [vmem:[%s375 + $0x20] sm:$0xff] %v4897
        %4930 = vst [vmem:[%s375 + $0x28] sm:$0xff] %v4898
        %4931 = vst [vmem:[%s375 + $0x30] sm:$0xff] %v4899
        %4932 = vst [vmem:[%s375 + $0x38] sm:$0xff] %v4900
        %4933 = vst [vmem:[%s375 + $0x40] sm:$0xff] %v4901
        %4934 = vst [vmem:[%s375 + $0x48] sm:$0xff] %v4902
        %4935 = vst [vmem:[%s375 + $0x50] sm:$0xff] %v4903
        %4936 = vst [vmem:[%s375 + $0x58] sm:$0xff] %v4904
        %4937 = vst [vmem:[%s375 + $0x60] sm:$0xff] %v4905
        %4938 = vst [vmem:[%s375 + $0x68] sm:$0xff] %v4906
        %4939 = vst [vmem:[%s375 + $0x70] sm:$0xff] %v4907
        %4940 = vst [vmem:[%s375 + $0x78] sm:$0xff] %v4908
        %4941 = vst [vmem:[%s375 + $0x80] sm:$0xff] %v4909
        %4942 = vst [vmem:[%s375 + $0x88] sm:$0xff] %v4910
        %4943 = vst [vmem:[%s375 + $0x90] sm:$0xff] %v4911
        %4944 = vst [vmem:[%s375 + $0x98] sm:$0xff] %v4912
        %4945 = vst [vmem:[%s375 + $0xa0] sm:$0xff] %v4913
        %4946 = vst [vmem:[%s375 + $0xa8] sm:$0xff] %v4914
        %4947 = vst [vmem:[%s375 + $0xb0] sm:$0xff] %v4915
        %4948 = vst [vmem:[%s375 + $0xb8] sm:$0xff] %v4916
        %4949 = vst [vmem:[%s375 + $0xc0] sm:$0xff] %v4917
        %4950 = vst [vmem:[%s375 + $0xc8] sm:$0xff] %v4918
        %4951 = vst [vmem:[%s375 + $0xd0] sm:$0xff] %v4919
        %4952 = vst [vmem:[%s375 + $0xd8] sm:$0xff] %v4920
        %4953 = vst [vmem:[%s375 + $0xe0] sm:$0xff] %v4921
        %4954 = vst [vmem:[%s375 + $0xe8] sm:$0xff] %v4922
        %4955 = vst [vmem:[%s375 + $0xf0] sm:$0xff] %v4923
        %4956 = vst [vmem:[%s375 + $0xf8] sm:$0xff] %v4924
        %s4957 = sand.u32 %s187, 1
        %s4958 = scalar_lea.sflag [#allocation5], %s4957
        %s4959 = sand.u32 %s187, 1
        %s4960 = smul.addr %s4959, 256
        %s4961 = scalar_lea.vmem [#allocation15], %s4960
        // Predicated region
        $region77: #{tpu_custom_call.1} parent=47 // pred_check
          %p4962 = pneg %p197
        $region78: #{tpu_custom_call.1} parent=47 // pred_check_branch
          %4964 = sbr.rel (%p4962) target = $region80
        $region79: #{tpu_custom_call.1} parent=47 // pred_region
          %s4966 = ssub.s32 4096, 4096
          %4967 = vsyncadd %s4958, %s4966
          %s4968 = smul.addr %s27, 32
          %s4969 = smul.addr %s4968, 128
          %s4970 = scalar_lea.hbm %s7, %s4969
          %s4971 = sshll.u32 %s4961, 4
          %s4972 = int_to_ptr.vmem [resolvable:$true] %s4971
          %4977 = dma.vmem_to_hbm [thread:$0]  %s4972, 4096, %s4970, %s4958, 128, 128, 8
        $region80: #{tpu_custom_call.1} parent=47 // pred_fallthru
          _
      $region48: #{tpu_custom_call.1} parent=5 // pred_fallthru
        _
      %p4978 = scmp.le.s32.totalorder 2, %s22
      // Predicated region
      $region81: #{tpu_custom_call.1} parent=5 // pred_check
        %p4979 = pneg %p4978
      $region82: #{tpu_custom_call.1} parent=5 // pred_check_branch
        %4981 = sbr.rel (%p4979) target = $region84
      $region83: #{tpu_custom_call.1} parent=5 // pred_region
        %s4982 = ssub.s32 %s22, 2
        // Predicated region
        $region85: #{tpu_custom_call.1} parent=83 // pred_check
          %p4983 = pneg %p203
        $region86: #{tpu_custom_call.1} parent=83 // pred_check_branch
          %4985 = sbr.rel (%p4983) target = $region88
        $region87: #{tpu_custom_call.1} parent=83 // pred_region
          %s4986 = sand.u32 %s188, 1
          %s4987 = scalar_lea.sflag [#allocation5], %s4986
          %s4988 = sand.u32 %s188, 1
          %s4989 = smul.addr %s4988, 256
          %s4990 = scalar_lea.vmem [#allocation15], %s4989
          %4991 = dma.done %s4987, 4096
        $region88: #{tpu_custom_call.1} parent=83 // pred_fallthru
          _
      $region84: #{tpu_custom_call.1} parent=5 // pred_fallthru
        _
    $region6: #{tpu_custom_call.1} parent=1 // loop_footer
      %s26 = sadd.s32 1, %s22
    $region7: #{tpu_custom_call.1} parent=1 // loop_footer_branch
      %21 = sbr.rel target = $region3
    $region8: #{tpu_custom_call.1} parent=1 // loop_exit
      _
    %4992 = vsyncpa [#allocation4], 1
    %s4993 = scalar_lea.sflag [#allocation4], 1
    %4994 = vsyncpa %s4993, 1
    %4995 = vsyncpa [#allocation7], 1
    %4996 = vsyncpa [#allocation10], 1
    %4997 = vsyncpa [#allocation13], 1
    %4998 = vsyncpa [#allocation5], 1
    %s4999 = scalar_lea.sflag [#allocation5], 1
    %5000 = vsyncpa %s4999, 1

</llo_original>
